<compile_context>
chip_gen: v7x
topology: tpu7x:2x2x1
jax: 0.10.0
libtpu: 0.0.40
codegen_flags: <defaults>
</compile_context>

<pallas_src>
import jax
import jax.numpy as jnp
from jax.experimental import pallas as pl
from jax.experimental.pallas import tpu as pltpu

_VMEM_LIMIT = 48 * 1024 * 1024        # safe on v7x (64 MiB physical) and v5e/v6e (128 MiB)
_ROW_BUDGET = 6 * 1024 * 1024         # per-grid-step activation byte budget


def _row_tile(n_rows, bytes_per_row, budget=_ROW_BUDGET):
    """Pick a row-tile size: everything if it fits, else a multiple of 8 within budget."""
    fit = budget // max(1, bytes_per_row)
    if fit >= n_rows:
        return n_rows
    return max(8, (int(fit) // 8) * 8)


# ----------------------------- conv3x3 (VALID) + bias + ReLU -----------------------------

def _conv3x3_relu_kernel(x_ref, w_ref, b_ref, o_ref):
    # x_ref: (TILE*W, 3*Cin) bf16  -- dy taps concatenated on the channel axis
    # w_ref: (3, 3*Cin, Cout) bf16 -- leading axis = kx (dx), resident in VMEM
    # b_ref: (1, Cout) f32         -- resident in VMEM
    # o_ref: (TILE*W, Cout) bf16
    n = x_ref.shape[0]
    x = x_ref[...]
    # dx = 0
    acc = jnp.dot(x, w_ref[0], preferred_element_type=jnp.float32)
    # dx = 1: partial product shifted up by one flattened row (sublane roll, f32 -> safe/cheap)
    p1 = jnp.dot(x, w_ref[1], preferred_element_type=jnp.float32)
    acc = acc + pltpu.roll(p1, shift=n - 1, axis=0)
    # dx = 2
    p2 = jnp.dot(x, w_ref[2], preferred_element_type=jnp.float32)
    acc = acc + pltpu.roll(p2, shift=n - 2, axis=0)
    acc = acc + b_ref[...]
    o_ref[...] = jnp.maximum(acc, 0.0).astype(o_ref.dtype)


def conv3x3_valid_relu(x, w3, b):
    """3x3 VALID conv + bias + ReLU.  x: (N,H,W,Cin) float; w3: (3, 3*Cin, Cout) bf16;
    b: (1, Cout) f32.  Returns (N, H-2, W-2, Cout) bf16."""
    N, H, W, Cin = x.shape
    Cout = w3.shape[-1]
    Ho, Wo = H - 2, W - 2

    xb = x.astype(jnp.bfloat16)
    # 3 dy-shifted copies concatenated on channels (3x traffic; dx handled in-kernel).
    xd = jnp.concatenate([xb[:, dy:dy + Ho] for dy in range(3)], axis=-1)   # (N,Ho,W,3Cin)
    R = N * Ho
    xd2 = xd.reshape(R * W, 3 * Cin)                                        # metadata only

    # VMEM budget per image row: x (bf16, double buffered) + out (bf16, db) + f32 temporaries.
    bytes_per_row = W * (3 * Cin) * 2 * 2 + W * Cout * 2 * 2 + W * Cout * 4 * 2
    tr = _row_tile(R, bytes_per_row)
    blk_rows = tr * W

    out = pl.pallas_call(
        _conv3x3_relu_kernel,
        out_shape=jax.ShapeDtypeStruct((R * W, Cout), jnp.bfloat16),
        grid=(pl.cdiv(R, tr),),
        in_specs=[
            pl.BlockSpec((blk_rows, 3 * Cin), lambda i: (i, 0)),
            pl.BlockSpec((3, 3 * Cin, Cout), lambda i: (0, 0, 0)),   # resident weights
            pl.BlockSpec((1, Cout), lambda i: (0, 0)),               # resident bias
        ],
        out_specs=pl.BlockSpec((blk_rows, Cout), lambda i: (i, 0)),
        compiler_params=pltpu.CompilerParams(
            dimension_semantics=("parallel",),
            vmem_limit_bytes=_VMEM_LIMIT,
        ),
        cost_estimate=pl.CostEstimate(
            flops=2 * R * W * 9 * Cin * Cout,
            transcendentals=0,
            bytes_accessed=xd2.size * 2 + w3.size * 2 + b.size * 4 + R * W * Cout * 2,
        ),
    )(xd2, w3, b)

    # Columns >= Wo of each image row are junk (cross an image-row boundary): drop them.
    return out.reshape(N, Ho, W, Cout)[:, :, :Wo, :]


# ----------------------------- 2x2 / stride-2 max-pool (ceil_mode) -----------------------------

def _maxpool_kernel(x_ref, o_ref):
    # x_ref: (TILE, 2, W2, C)  (H-pair folded into the block);  o_ref: (TILE, W2, C) f32
    v = x_ref[...].astype(jnp.float32)
    m = jnp.maximum(v[:, 0], v[:, 1])                       # reduce the H pair
    w2 = m.shape[1]
    # pairwise max along W via a sublane roll; only even columns are kept by the wrapper.
    o_ref[...] = jnp.maximum(m, pltpu.roll(m, shift=w2 - 1, axis=1))


def maxpool2x2_ceil(x):
    """F.max_pool2d(kernel=2, stride=2, ceil_mode=True) on NHWC; returns float32."""
    N, H, W, C = x.shape
    Ho, Wo = pl.cdiv(H, 2), pl.cdiv(W, 2)
    ph, pw = 2 * Ho - H, 2 * Wo - W
    if ph or pw:  # ceil_mode: implicit -inf padding on the bottom/right
        x = jnp.pad(x, ((0, 0), (0, ph), (0, pw), (0, 0)), constant_values=-jnp.inf)
    W2 = 2 * Wo
    R = N * Ho
    xr = x.reshape(R, 2, W2, C)                             # metadata only

    bytes_per_row = 2 * W2 * C * 2 * 2 + W2 * C * 4 * 2 + W2 * C * 4 * 2
    tr = _row_tile(R, bytes_per_row)

    out = pl.pallas_call(
        _maxpool_kernel,
        out_shape=jax.ShapeDtypeStruct((R, W2, C), jnp.float32),
        grid=(pl.cdiv(R, tr),),
        in_specs=[pl.BlockSpec((tr, 2, W2, C), lambda i: (i, 0, 0, 0))],
        out_specs=pl.BlockSpec((tr, W2, C), lambda i: (i, 0, 0)),
        compiler_params=pltpu.CompilerParams(
            dimension_semantics=("parallel",),
            vmem_limit_bytes=_VMEM_LIMIT,
        ),
    )(xr)
    return out.reshape(N, Ho, W2, C)[:, :, 0::2, :]


# ----------------------------------- module forward -----------------------------------

def _pack_conv_weight(w_hwio):
    """(3,3,Cin,Cout) HWIO -> (3, 3*Cin, Cout) with leading axis = kx and K ordered (ky, cin)."""
    kh, kw, cin, cout = w_hwio.shape
    return jnp.transpose(w_hwio, (1, 0, 2, 3)).reshape(kw, kh * cin, cout).astype(jnp.bfloat16)


def unet_dec_forward(params, x_nchw):
    x = jnp.transpose(x_nchw, (0, 2, 3, 1))                 # NCHW -> NHWC
    h = conv3x3_valid_relu(x, params['w1'], params['b1'])
    h = conv3x3_valid_relu(h, params['w2'], params['b2'])
    # TODO(synk): nn.Dropout(0.5) is only added when dropout=True; module default is False.
    y = maxpool2x2_ceil(h)
    return jnp.transpose(y, (0, 3, 1, 2))                   # NHWC -> NCHW


# ----------------------------------- reference (plain JAX) -----------------------------------

def _reference_forward(x_nchw, w1, b1, w2, b2):
    dn = ('NHWC', 'HWIO', 'NHWC')
    x = jnp.transpose(x_nchw, (0, 2, 3, 1))
    h = jax.lax.conv_general_dilated(x, w1, (1, 1), 'VALID', dimension_numbers=dn) + b1
    h = jnp.maximum(h, 0.0)
    h = jax.lax.conv_general_dilated(h, w2, (1, 1), 'VALID', dimension_numbers=dn) + b2
    h = jnp.maximum(h, 0.0)
    N, H, W, C = h.shape
    ph, pw = (-H) % 2, (-W) % 2
    y = jax.lax.reduce_window(h, jnp.array(-jnp.inf, h.dtype), jax.lax.max,
                              (1, 2, 2, 1), (1, 2, 2, 1),
                              ((0, 0), (0, ph), (0, pw), (0, 0)))
    return jnp.transpose(y, (0, 3, 1, 2))


if __name__ == "__main__":
    N, Cin, Cout, H, W = 2, 4, 64, 16, 16
    key = jax.random.PRNGKey(0)
    k1, k2, k3, k4, kx = jax.random.split(key, 5)

    w1 = (jax.random.normal(k1, (3, 3, Cin, Cout)) * (2.0 / (9 * Cin)) ** 0.5).astype(jnp.float32)
    b1 = (0.01 * jax.random.normal(k2, (Cout,))).astype(jnp.float32)
    w2 = (jax.random.normal(k3, (3, 3, Cout, Cout)) * (2.0 / (9 * Cout)) ** 0.5).astype(jnp.float32)
    b2 = (0.01 * jax.random.normal(k4, (Cout,))).astype(jnp.float32)
    x = jax.random.normal(kx, (N, Cin, H, W), dtype=jnp.float32)

    params = {
        'w1': _pack_conv_weight(w1), 'b1': b1.reshape(1, Cout).astype(jnp.float32),
        'w2': _pack_conv_weight(w2), 'b2': b2.reshape(1, Cout).astype(jnp.float32),
    }

    fwd = jax.jit(unet_dec_forward)
    out = jax.block_until_ready(fwd(params, x))

    # H,W: 16 -> conv 14 -> conv 12 -> ceil-pool 6
    assert out.shape == (N, Cout, 6, 6), out.shape
    assert bool(jnp.all(jnp.isfinite(out)))

    ref = _reference_forward(x, w1, b1, w2, b2)
    assert ref.shape == out.shape
    # bf16 MXU path vs f32 reference: loose tolerance.
    assert bool(jnp.allclose(out, ref, atol=1e-1, rtol=1e-1)), float(jnp.max(jnp.abs(out - ref)))

    print("KERNEL_OK")
</pallas_src>

<mosaic_0001>
module attributes {stable_mosaic.version = 11 : i64} {
  func.func @_conv3x3_relu_kernel(%arg0: i32, %arg1: memref<448x12xbf16, #tpu.memory_space<vmem>>, %arg2: memref<3x12x64xbf16, #tpu.memory_space<vmem>>, %arg3: memref<1x64xf32, #tpu.memory_space<vmem>>, %arg4: memref<448x64xbf16, #tpu.memory_space<vmem>>) attributes {dimension_semantics = [#tpu.dimension_semantics<parallel>], iteration_bounds = array<i64: 1>, scalar_prefetch = 0 : i64, scratch_operands = 0 : i64, tpu.core_type = #tpu.core_type<tc>, window_params = [{transform_indices = @transform_0, window_bounds = array<i64: 448, 12>}, {pipeline_mode = #tpu.pipeline_mode<synchronous>, transform_indices = @transform_1, window_bounds = array<i64: 3, 12, 64>}, {pipeline_mode = #tpu.pipeline_mode<synchronous>, transform_indices = @transform_2, window_bounds = array<i64: 1, 64>}, {transform_indices = @transform_3, window_bounds = array<i64: 448, 64>}]} {
    %c0 = arith.constant 0 : index
    %c0_0 = arith.constant 0 : index
    %0 = vector.load %arg1[%c0, %c0_0] : memref<448x12xbf16, #tpu.memory_space<vmem>>, vector<448x12xbf16>
    %c0_1 = arith.constant 0 : index
    %c0_2 = arith.constant 0 : index
    %c0_3 = arith.constant 0 : index
    %1 = vector.load %arg2[%c0_1, %c0_2, %c0_3] : memref<3x12x64xbf16, #tpu.memory_space<vmem>>, vector<1x12x64xbf16>
    %2 = vector.shape_cast %1 : vector<1x12x64xbf16> to vector<12x64xbf16>
    %cst = arith.constant dense<0.000000e+00> : vector<448x64xf32>
    %3 = tpu.matmul %0, %2, %cst {dimension_numbers = #tpu.dot_dimension_numbers<[1], [0], [0], [1], [0, 0, 1, 1], [], []>} : vector<448x12xbf16>, vector<12x64xbf16>, vector<448x64xf32> -> vector<448x64xf32>
    %c1 = arith.constant 1 : index
    %c0_4 = arith.constant 0 : index
    %c0_5 = arith.constant 0 : index
    %4 = vector.load %arg2[%c1, %c0_4, %c0_5] : memref<3x12x64xbf16, #tpu.memory_space<vmem>>, vector<1x12x64xbf16>
    %5 = vector.shape_cast %4 : vector<1x12x64xbf16> to vector<12x64xbf16>
    %cst_6 = arith.constant dense<0.000000e+00> : vector<448x64xf32>
    %6 = tpu.matmul %0, %5, %cst_6 {dimension_numbers = #tpu.dot_dimension_numbers<[1], [0], [0], [1], [0, 0, 1, 1], [], []>} : vector<448x12xbf16>, vector<12x64xbf16>, vector<448x64xf32> -> vector<448x64xf32>
    %c447_i32 = arith.constant 447 : i32
    %7 = tpu.dynamic_rotate %6 by %c447_i32 dim 0 : vector<448x64xf32>, i32 -> vector<448x64xf32>
    %8 = arith.addf %3, %7 : vector<448x64xf32>
    %c2 = arith.constant 2 : index
    %c0_7 = arith.constant 0 : index
    %c0_8 = arith.constant 0 : index
    %9 = vector.load %arg2[%c2, %c0_7, %c0_8] : memref<3x12x64xbf16, #tpu.memory_space<vmem>>, vector<1x12x64xbf16>
    %10 = vector.shape_cast %9 : vector<1x12x64xbf16> to vector<12x64xbf16>
    %cst_9 = arith.constant dense<0.000000e+00> : vector<448x64xf32>
    %11 = tpu.matmul %0, %10, %cst_9 {dimension_numbers = #tpu.dot_dimension_numbers<[1], [0], [0], [1], [0, 0, 1, 1], [], []>} : vector<448x12xbf16>, vector<12x64xbf16>, vector<448x64xf32> -> vector<448x64xf32>
    %c446_i32 = arith.constant 446 : i32
    %12 = tpu.dynamic_rotate %11 by %c446_i32 dim 0 : vector<448x64xf32>, i32 -> vector<448x64xf32>
    %13 = arith.addf %8, %12 : vector<448x64xf32>
    %c0_10 = arith.constant 0 : index
    %c0_11 = arith.constant 0 : index
    %14 = vector.load %arg3[%c0_10, %c0_11] : memref<1x64xf32, #tpu.memory_space<vmem>>, vector<1x64xf32>
    %15 = vector.broadcast %14 : vector<1x64xf32> to vector<448x64xf32>
    %16 = arith.addf %13, %15 : vector<448x64xf32>
    %cst_12 = arith.constant 0.000000e+00 : f32
    %17 = vector.broadcast %cst_12 : f32 to vector<448x64xf32>
    %18 = arith.maximumf %16, %17 : vector<448x64xf32>
    %19 = arith.truncf %18 : vector<448x64xf32> to vector<448x64xbf16>
    %c0_13 = arith.constant 0 : index
    %c0_14 = arith.constant 0 : index
    %20 = vector.load %arg4[%c0_13, %c0_14] : memref<448x64xbf16, #tpu.memory_space<vmem>>, vector<448x64xbf16>
    tpu.vector_store %arg4[%c0_13, %c0_14], %19 {strides = array<i32>} : memref<448x64xbf16, #tpu.memory_space<vmem>>, vector<448x64xbf16>,
    return
  }
  func.func @transform_0(%arg0: i32) -> (i32, i32) {
    %c0_i32 = arith.constant 0 : i32
    %c0_i32_0 = arith.constant 0 : i32
    return %arg0, %c0_i32 : i32, i32
  }
  func.func @transform_1(%arg0: i32) -> (i32, i32, i32) {
    %c0_i32 = arith.constant 0 : i32
    %c0_i32_0 = arith.constant 0 : i32
    %c0_i32_1 = arith.constant 0 : i32
    %c0_i32_2 = arith.constant 0 : i32
    return %c0_i32, %c0_i32_0, %c0_i32_1 : i32, i32, i32
  }
  func.func @transform_2(%arg0: i32) -> (i32, i32) {
    %c0_i32 = arith.constant 0 : i32
    %c0_i32_0 = arith.constant 0 : i32
    %c0_i32_1 = arith.constant 0 : i32
    return %c0_i32, %c0_i32_0 : i32, i32
  }
  func.func @transform_3(%arg0: i32) -> (i32, i32) {
    %c0_i32 = arith.constant 0 : i32
    %c0_i32_0 = arith.constant 0 : i32
    return %arg0, %c0_i32 : i32, i32
  }
}

module attributes {stable_mosaic.version = 11 : i64} {
  func.func @_conv3x3_relu_kernel(%arg0: i32, %arg1: memref<336x192xbf16, #tpu.memory_space<vmem>>, %arg2: memref<3x192x64xbf16, #tpu.memory_space<vmem>>, %arg3: memref<1x64xf32, #tpu.memory_space<vmem>>, %arg4: memref<336x64xbf16, #tpu.memory_space<vmem>>) attributes {dimension_semantics = [#tpu.dimension_semantics<parallel>], iteration_bounds = array<i64: 1>, scalar_prefetch = 0 : i64, scratch_operands = 0 : i64, tpu.core_type = #tpu.core_type<tc>, window_params = [{transform_indices = @transform_0, window_bounds = array<i64: 336, 192>}, {pipeline_mode = #tpu.pipeline_mode<synchronous>, transform_indices = @transform_1, window_bounds = array<i64: 3, 192, 64>}, {pipeline_mode = #tpu.pipeline_mode<synchronous>, transform_indices = @transform_2, window_bounds = array<i64: 1, 64>}, {transform_indices = @transform_3, window_bounds = array<i64: 336, 64>}]} {
    %c0 = arith.constant 0 : index
    %c0_0 = arith.constant 0 : index
    %0 = vector.load %arg1[%c0, %c0_0] : memref<336x192xbf16, #tpu.memory_space<vmem>>, vector<336x192xbf16>
    %c0_1 = arith.constant 0 : index
    %c0_2 = arith.constant 0 : index
    %c0_3 = arith.constant 0 : index
    %1 = vector.load %arg2[%c0_1, %c0_2, %c0_3] : memref<3x192x64xbf16, #tpu.memory_space<vmem>>, vector<1x192x64xbf16>
    %2 = vector.shape_cast %1 : vector<1x192x64xbf16> to vector<192x64xbf16>
    %cst = arith.constant dense<0.000000e+00> : vector<336x64xf32>
    %3 = tpu.matmul %0, %2, %cst {dimension_numbers = #tpu.dot_dimension_numbers<[1], [0], [0], [1], [0, 0, 1, 1], [], []>} : vector<336x192xbf16>, vector<192x64xbf16>, vector<336x64xf32> -> vector<336x64xf32>
    %c1 = arith.constant 1 : index
    %c0_4 = arith.constant 0 : index
    %c0_5 = arith.constant 0 : index
    %4 = vector.load %arg2[%c1, %c0_4, %c0_5] : memref<3x192x64xbf16, #tpu.memory_space<vmem>>, vector<1x192x64xbf16>
    %5 = vector.shape_cast %4 : vector<1x192x64xbf16> to vector<192x64xbf16>
    %cst_6 = arith.constant dense<0.000000e+00> : vector<336x64xf32>
    %6 = tpu.matmul %0, %5, %cst_6 {dimension_numbers = #tpu.dot_dimension_numbers<[1], [0], [0], [1], [0, 0, 1, 1], [], []>} : vector<336x192xbf16>, vector<192x64xbf16>, vector<336x64xf32> -> vector<336x64xf32>
    %c335_i32 = arith.constant 335 : i32
    %7 = tpu.dynamic_rotate %6 by %c335_i32 dim 0 : vector<336x64xf32>, i32 -> vector<336x64xf32>
    %8 = arith.addf %3, %7 : vector<336x64xf32>
    %c2 = arith.constant 2 : index
    %c0_7 = arith.constant 0 : index
    %c0_8 = arith.constant 0 : index
    %9 = vector.load %arg2[%c2, %c0_7, %c0_8] : memref<3x192x64xbf16, #tpu.memory_space<vmem>>, vector<1x192x64xbf16>
    %10 = vector.shape_cast %9 : vector<1x192x64xbf16> to vector<192x64xbf16>
    %cst_9 = arith.constant dense<0.000000e+00> : vector<336x64xf32>
    %11 = tpu.matmul %0, %10, %cst_9 {dimension_numbers = #tpu.dot_dimension_numbers<[1], [0], [0], [1], [0, 0, 1, 1], [], []>} : vector<336x192xbf16>, vector<192x64xbf16>, vector<336x64xf32> -> vector<336x64xf32>
    %c334_i32 = arith.constant 334 : i32
    %12 = tpu.dynamic_rotate %11 by %c334_i32 dim 0 : vector<336x64xf32>, i32 -> vector<336x64xf32>
    %13 = arith.addf %8, %12 : vector<336x64xf32>
    %c0_10 = arith.constant 0 : index
    %c0_11 = arith.constant 0 : index
    %14 = vector.load %arg3[%c0_10, %c0_11] : memref<1x64xf32, #tpu.memory_space<vmem>>, vector<1x64xf32>
    %15 = vector.broadcast %14 : vector<1x64xf32> to vector<336x64xf32>
    %16 = arith.addf %13, %15 : vector<336x64xf32>
    %cst_12 = arith.constant 0.000000e+00 : f32
    %17 = vector.broadcast %cst_12 : f32 to vector<336x64xf32>
    %18 = arith.maximumf %16, %17 : vector<336x64xf32>
    %19 = arith.truncf %18 : vector<336x64xf32> to vector<336x64xbf16>
    %c0_13 = arith.constant 0 : index
    %c0_14 = arith.constant 0 : index
    %20 = vector.load %arg4[%c0_13, %c0_14] : memref<336x64xbf16, #tpu.memory_space<vmem>>, vector<336x64xbf16>
    tpu.vector_store %arg4[%c0_13, %c0_14], %19 {strides = array<i32>} : memref<336x64xbf16, #tpu.memory_space<vmem>>, vector<336x64xbf16>,
    return
  }
  func.func @transform_0(%arg0: i32) -> (i32, i32) {
    %c0_i32 = arith.constant 0 : i32
    %c0_i32_0 = arith.constant 0 : i32
    return %arg0, %c0_i32 : i32, i32
  }
  func.func @transform_1(%arg0: i32) -> (i32, i32, i32) {
    %c0_i32 = arith.constant 0 : i32
    %c0_i32_0 = arith.constant 0 : i32
    %c0_i32_1 = arith.constant 0 : i32
    %c0_i32_2 = arith.constant 0 : i32
    return %c0_i32, %c0_i32_0, %c0_i32_1 : i32, i32, i32
  }
  func.func @transform_2(%arg0: i32) -> (i32, i32) {
    %c0_i32 = arith.constant 0 : i32
    %c0_i32_0 = arith.constant 0 : i32
    %c0_i32_1 = arith.constant 0 : i32
    return %c0_i32, %c0_i32_0 : i32, i32
  }
  func.func @transform_3(%arg0: i32) -> (i32, i32) {
    %c0_i32 = arith.constant 0 : i32
    %c0_i32_0 = arith.constant 0 : i32
    return %arg0, %c0_i32 : i32, i32
  }
}

module attributes {stable_mosaic.version = 11 : i64} {
  func.func @_maxpool_kernel(%arg0: i32, %arg1: memref<12x2x12x64xbf16, #tpu.memory_space<vmem>>, %arg2: memref<12x12x64xf32, #tpu.memory_space<vmem>>) attributes {dimension_semantics = [#tpu.dimension_semantics<parallel>], iteration_bounds = array<i64: 1>, scalar_prefetch = 0 : i64, scratch_operands = 0 : i64, tpu.core_type = #tpu.core_type<tc>, window_params = [{transform_indices = @transform_0, window_bounds = array<i64: 12, 2, 12, 64>}, {transform_indices = @transform_1, window_bounds = array<i64: 12, 12, 64>}]} {
    %c0 = arith.constant 0 : index
    %c0_0 = arith.constant 0 : index
    %c0_1 = arith.constant 0 : index
    %c0_2 = arith.constant 0 : index
    %0 = vector.load %arg1[%c0, %c0_0, %c0_1, %c0_2] : memref<12x2x12x64xbf16, #tpu.memory_space<vmem>>, vector<12x2x12x64xbf16>
    %1 = arith.extf %0 : vector<12x2x12x64xbf16> to vector<12x2x12x64xf32>
    %2 = vector.extract_strided_slice %1 {offsets = [0, 0, 0, 0], sizes = [12, 1, 12, 64], strides = [1, 1, 1, 1]} : vector<12x2x12x64xf32> to vector<12x1x12x64xf32>
    %3 = vector.shape_cast %2 : vector<12x1x12x64xf32> to vector<12x12x64xf32>
    %4 = vector.extract_strided_slice %1 {offsets = [0, 1, 0, 0], sizes = [12, 1, 12, 64], strides = [1, 1, 1, 1]} : vector<12x2x12x64xf32> to vector<12x1x12x64xf32>
    %5 = vector.shape_cast %4 : vector<12x1x12x64xf32> to vector<12x12x64xf32>
    %6 = arith.maximumf %3, %5 : vector<12x12x64xf32>
    %c11_i32 = arith.constant 11 : i32
    %7 = tpu.dynamic_rotate %6 by %c11_i32 dim 1 : vector<12x12x64xf32>, i32 -> vector<12x12x64xf32>
    %8 = arith.maximumf %6, %7 : vector<12x12x64xf32>
    %c0_3 = arith.constant 0 : index
    %c0_4 = arith.constant 0 : index
    %c0_5 = arith.constant 0 : index
    %9 = vector.load %arg2[%c0_3, %c0_4, %c0_5] : memref<12x12x64xf32, #tpu.memory_space<vmem>>, vector<12x12x64xf32>
    tpu.vector_store %arg2[%c0_3, %c0_4, %c0_5], %8 {strides = array<i32>} : memref<12x12x64xf32, #tpu.memory_space<vmem>>, vector<12x12x64xf32>,
    return
  }
  func.func @transform_0(%arg0: i32) -> (i32, i32, i32, i32) {
    %c0_i32 = arith.constant 0 : i32
    %c0_i32_0 = arith.constant 0 : i32
    %c0_i32_1 = arith.constant 0 : i32
    %c0_i32_2 = arith.constant 0 : i32
    return %arg0, %c0_i32, %c0_i32_0, %c0_i32_1 : i32, i32, i32, i32
  }
  func.func @transform_1(%arg0: i32) -> (i32, i32, i32) {
    %c0_i32 = arith.constant 0 : i32
    %c0_i32_0 = arith.constant 0 : i32
    %c0_i32_1 = arith.constant 0 : i32
    return %arg0, %c0_i32, %c0_i32_0 : i32, i32, i32
  }
}

</mosaic_0001>

<llo_original>
// kernel: unet_dec_forward.3
$region0: #{unet_dec_forward.3}
  #allocation0 [shape = 'u32[]', space=smem, size = 0x4, offset = 0x4, fixed_abs, tag = 'smem constant byte address 0x4 - core index']
  #allocation1 [shape = 'u32[144,128]{1,0:T(1,128)}', space=vmem, size = 0x12000, scoped, tag = 'internal scratch']
  %s0 = inlined_call_operand.vmem [shape: bf16[448,12], index: 0, kind: input, shape index: {}]
  %s1 = inlined_call_operand.vmem [shape: bf16[3,12,64], index: 1, kind: input, shape index: {}]
  %s2 = inlined_call_operand.vmem [shape: f32[1,64], index: 2, kind: input, shape index: {}]
  %s3 = inlined_call_operand.vmem [shape: bf16[448,64], index: 3, kind: output, shape index: {}]
  %s4 = sld [smem:[#allocation0]]
  $region22: #{unet_dec_forward.3} parent=0
    _
  %s6 = ssub.s32 1, %s4
  %s7 = scalar_select 0, %s6, %s4
  // Predicated region
  $region2: #{unet_dec_forward.3} parent=0 // pred_check
    _
  $region3: #{unet_dec_forward.3} parent=0 // pred_check_branch
    %9 = sbr.rel (0) target = $region5
  $region4: #{unet_dec_forward.3} parent=0 // pred_region
    _
  $region5: #{unet_dec_forward.3} parent=0 // pred_fallthru
    _
  // Predicated region
  $region6: #{unet_dec_forward.3} parent=0 // pred_check
    _
  $region7: #{unet_dec_forward.3} parent=0 // pred_check_branch
    %11 = sbr.rel (0) target = $region9
  $region8: #{unet_dec_forward.3} parent=0 // pred_region
    _
  $region9: #{unet_dec_forward.3} parent=0 // pred_fallthru
    _
  // Predicated region
  $region10: #{unet_dec_forward.3} parent=0 // pred_check
    _
  $region11: #{unet_dec_forward.3} parent=0 // pred_check_branch
    %13 = sbr.rel (0) target = $region13
  $region12: #{unet_dec_forward.3} parent=0 // pred_region
    _
  $region13: #{unet_dec_forward.3} parent=0 // pred_fallthru
    _
  %v15 = vld [vmem:[%s0] sm:$0xf]
  %v16 = vld [vmem:[%s0 + $0x4] sm:$0xf]
  %v17 = vld [vmem:[%s0 + $0x8] sm:$0xf]
  %v18 = vld [vmem:[%s0 + $0xc] sm:$0xf]
  %v19 = vld [vmem:[%s0 + $0x10] sm:$0xf]
  %v20 = vld [vmem:[%s0 + $0x14] sm:$0xf]
  %v21 = vld [vmem:[%s0 + $0x18] sm:$0xf]
  %v22 = vld [vmem:[%s0 + $0x1c] sm:$0xf]
  %v23 = vld [vmem:[%s0 + $0x20] sm:$0xf]
  %v24 = vld [vmem:[%s0 + $0x24] sm:$0xf]
  %v25 = vld [vmem:[%s0 + $0x28] sm:$0xf]
  %v26 = vld [vmem:[%s0 + $0x2c] sm:$0xf]
  %v27 = vld [vmem:[%s0 + $0x30] sm:$0xf]
  %v28 = vld [vmem:[%s0 + $0x34] sm:$0xf]
  %v29 = vld [vmem:[%s0 + $0x38] sm:$0xf]
  %v30 = vld [vmem:[%s0 + $0x3c] sm:$0xf]
  %v31 = vld [vmem:[%s0 + $0x40] sm:$0xf]
  %v32 = vld [vmem:[%s0 + $0x44] sm:$0xf]
  %v33 = vld [vmem:[%s0 + $0x48] sm:$0xf]
  %v34 = vld [vmem:[%s0 + $0x4c] sm:$0xf]
  %v35 = vld [vmem:[%s0 + $0x50] sm:$0xf]
  %v36 = vld [vmem:[%s0 + $0x54] sm:$0xf]
  %v37 = vld [vmem:[%s0 + $0x58] sm:$0xf]
  %v38 = vld [vmem:[%s0 + $0x5c] sm:$0xf]
  %v39 = vld [vmem:[%s0 + $0x60] sm:$0xf]
  %v40 = vld [vmem:[%s0 + $0x64] sm:$0xf]
  %v41 = vld [vmem:[%s0 + $0x68] sm:$0xf]
  %v42 = vld [vmem:[%s0 + $0x6c] sm:$0xf]
  %v43 = vld [vmem:[%s0 + $0x70] sm:$0xf]
  %v44 = vld [vmem:[%s0 + $0x74] sm:$0xf]
  %v45 = vld [vmem:[%s0 + $0x78] sm:$0xf]
  %v46 = vld [vmem:[%s0 + $0x7c] sm:$0xf]
  %v47 = vld [vmem:[%s0 + $0x80] sm:$0xf]
  %v48 = vld [vmem:[%s0 + $0x84] sm:$0xf]
  %v49 = vld [vmem:[%s0 + $0x88] sm:$0xf]
  %v50 = vld [vmem:[%s0 + $0x8c] sm:$0xf]
  %v51 = vld [vmem:[%s0 + $0x90] sm:$0xf]
  %v52 = vld [vmem:[%s0 + $0x94] sm:$0xf]
  %v53 = vld [vmem:[%s0 + $0x98] sm:$0xf]
  %v54 = vld [vmem:[%s0 + $0x9c] sm:$0xf]
  %v55 = vld [vmem:[%s0 + $0xa0] sm:$0xf]
  %v56 = vld [vmem:[%s0 + $0xa4] sm:$0xf]
  %v57 = vld [vmem:[%s0 + $0xa8] sm:$0xf]
  %v58 = vld [vmem:[%s0 + $0xac] sm:$0xf]
  %v59 = vld [vmem:[%s0 + $0xb0] sm:$0xf]
  %v60 = vld [vmem:[%s0 + $0xb4] sm:$0xf]
  %v61 = vld [vmem:[%s0 + $0xb8] sm:$0xf]
  %v62 = vld [vmem:[%s0 + $0xbc] sm:$0xf]
  %v63 = vld [vmem:[%s0 + $0xc0] sm:$0xf]
  %v64 = vld [vmem:[%s0 + $0xc4] sm:$0xf]
  %v65 = vld [vmem:[%s0 + $0xc8] sm:$0xf]
  %v66 = vld [vmem:[%s0 + $0xcc] sm:$0xf]
  %v67 = vld [vmem:[%s0 + $0xd0] sm:$0xf]
  %v68 = vld [vmem:[%s0 + $0xd4] sm:$0xf]
  %v69 = vld [vmem:[%s0 + $0xd8] sm:$0xf]
  %v70 = vld [vmem:[%s0 + $0xdc] sm:$0xf]
  %v71 = vld [vmem:[%s1] sm:$0xf]
  %v72 = vld [vmem:[%s1 + $0x4] sm:$0x3]
  %s73 = scalar_lea.vmem %s1, 8
  %v74 = vld [vmem:[%s73] sm:$0xf]
  %v75 = vld [vmem:[%s73 + $0x4] sm:$0x3]
  %v132 = vunpack.c.l.b16 %v15
  %v133 = vunpack.c.l.b16 %v16
  %v134 = vunpack.c.l.b16 %v17
  %v135 = vunpack.c.l.b16 %v18
  %v136 = vunpack.c.l.b16 %v19
  %v137 = vunpack.c.l.b16 %v20
  %v138 = vunpack.c.l.b16 %v21
  %v139 = vunpack.c.l.b16 %v22
  %v140 = vunpack.c.l.b16 %v23
  %v141 = vunpack.c.l.b16 %v24
  %v142 = vunpack.c.l.b16 %v25
  %v143 = vunpack.c.l.b16 %v26
  %v144 = vunpack.c.l.b16 %v27
  %v145 = vunpack.c.l.b16 %v28
  %v146 = vunpack.c.l.b16 %v29
  %v147 = vunpack.c.l.b16 %v30
  %v148 = vunpack.c.l.b16 %v31
  %v149 = vunpack.c.l.b16 %v32
  %v150 = vunpack.c.l.b16 %v33
  %v151 = vunpack.c.l.b16 %v34
  %v152 = vunpack.c.l.b16 %v35
  %v153 = vunpack.c.l.b16 %v36
  %v154 = vunpack.c.l.b16 %v37
  %v155 = vunpack.c.l.b16 %v38
  %v156 = vunpack.c.l.b16 %v39
  %v157 = vunpack.c.l.b16 %v40
  %v158 = vunpack.c.l.b16 %v41
  %v159 = vunpack.c.l.b16 %v42
  %v160 = vunpack.c.l.b16 %v43
  %v161 = vunpack.c.l.b16 %v44
  %v162 = vunpack.c.l.b16 %v45
  %v163 = vunpack.c.l.b16 %v46
  %v164 = vunpack.c.l.b16 %v47
  %v165 = vunpack.c.l.b16 %v48
  %v166 = vunpack.c.l.b16 %v49
  %v167 = vunpack.c.l.b16 %v50
  %v168 = vunpack.c.l.b16 %v51
  %v169 = vunpack.c.l.b16 %v52
  %v170 = vunpack.c.l.b16 %v53
  %v171 = vunpack.c.l.b16 %v54
  %v172 = vunpack.c.l.b16 %v55
  %v173 = vunpack.c.l.b16 %v56
  %v174 = vunpack.c.l.b16 %v57
  %v175 = vunpack.c.l.b16 %v58
  %v176 = vunpack.c.l.b16 %v59
  %v177 = vunpack.c.l.b16 %v60
  %v178 = vunpack.c.l.b16 %v61
  %v179 = vunpack.c.l.b16 %v62
  %v180 = vunpack.c.l.b16 %v63
  %v181 = vunpack.c.l.b16 %v64
  %v182 = vunpack.c.l.b16 %v65
  %v183 = vunpack.c.l.b16 %v66
  %v184 = vunpack.c.l.b16 %v67
  %v185 = vunpack.c.l.b16 %v68
  %v186 = vunpack.c.l.b16 %v69
  %v187 = vunpack.c.l.b16 %v70
  %v188 = vpack.c.b16 %v133, %v132
  %v189 = vpack.c.b16 %v135, %v134
  %v190 = vpack.c.b16 %v137, %v136
  %v191 = vpack.c.b16 %v139, %v138
  %v192 = vpack.c.b16 %v141, %v140
  %v193 = vpack.c.b16 %v143, %v142
  %v194 = vpack.c.b16 %v145, %v144
  %v195 = vpack.c.b16 %v147, %v146
  %v196 = vpack.c.b16 %v149, %v148
  %v197 = vpack.c.b16 %v151, %v150
  %v198 = vpack.c.b16 %v153, %v152
  %v199 = vpack.c.b16 %v155, %v154
  %v200 = vpack.c.b16 %v157, %v156
  %v201 = vpack.c.b16 %v159, %v158
  %v202 = vpack.c.b16 %v161, %v160
  %v203 = vpack.c.b16 %v163, %v162
  %v204 = vpack.c.b16 %v165, %v164
  %v205 = vpack.c.b16 %v167, %v166
  %v206 = vpack.c.b16 %v169, %v168
  %v207 = vpack.c.b16 %v171, %v170
  %v208 = vpack.c.b16 %v173, %v172
  %v209 = vpack.c.b16 %v175, %v174
  %v210 = vpack.c.b16 %v177, %v176
  %v211 = vpack.c.b16 %v179, %v178
  %v212 = vpack.c.b16 %v181, %v180
  %v213 = vpack.c.b16 %v183, %v182
  %v214 = vpack.c.b16 %v185, %v184
  %v215 = vpack.c.b16 %v187, %v186
  %v218 = vunpack.c.l.b16 %v74
  %v219 = vunpack.c.l.b16 %v75
  %v220 = vpack.c.b16 %v219, %v218
  %vm221 = vcmask 97280
  %v223 = vsel %vm221, %v188, 0
  %v226 = vsel %vm221, %v189, 0
  %v229 = vsel %vm221, %v190, 0
  %v232 = vsel %vm221, %v191, 0
  %v235 = vsel %vm221, %v192, 0
  %v238 = vsel %vm221, %v193, 0
  %v241 = vsel %vm221, %v194, 0
  %v244 = vsel %vm221, %v195, 0
  %v247 = vsel %vm221, %v196, 0
  %v250 = vsel %vm221, %v197, 0
  %v253 = vsel %vm221, %v198, 0
  %v256 = vsel %vm221, %v199, 0
  %v259 = vsel %vm221, %v200, 0
  %v262 = vsel %vm221, %v201, 0
  %v265 = vsel %vm221, %v202, 0
  %v268 = vsel %vm221, %v203, 0
  %v271 = vsel %vm221, %v204, 0
  %v274 = vsel %vm221, %v205, 0
  %v277 = vsel %vm221, %v206, 0
  %v280 = vsel %vm221, %v207, 0
  %v283 = vsel %vm221, %v208, 0
  %v286 = vsel %vm221, %v209, 0
  %v289 = vsel %vm221, %v210, 0
  %v292 = vsel %vm221, %v211, 0
  %v295 = vsel %vm221, %v212, 0
  %v298 = vsel %vm221, %v213, 0
  %v301 = vsel %vm221, %v214, 0
  %v304 = vsel %vm221, %v215, 0
  %vm306 = vcmask 1045504
  %v308 = vsel %vm306, %v220, 0
  %310 = vmatprep.subr.bf16.mxu0 0
  %311 = vmatpush1.bf16.msra.mxu0 %v308
  %312 = vmatprep.subr.bf16.mxu0 0
  %313 = vmatpush1.bf16.msra.mxu0 0
  %314 = vmatprep.subr.bf16.mxu0 0
  %315 = vmatpush1.bf16.msra.mxu0 0
  %316 = vmatprep.subr.bf16.mxu0 0
  %317 = vmatpush1.bf16.msra.mxu0 0
  %318 = vmatprep.subr.bf16.mxu0 0
  %319 = vmatpush1.bf16.msra.mxu0 0
  %320 = vmatprep.subr.bf16.mxu0 0
  %321 = vmatpush1.bf16.msra.mxu0 0
  %322 = vmatprep.subr.bf16.mxu0 0
  %323 = vmatpush1.bf16.msra.mxu0 0
  %324 = vmatprep.subr.bf16.mxu0 0
  %325 = vmatpush1.bf16.msra.mxu0 0
  %326 = vmatprep.subr.bf16.mxu0 0
  %327 = vmatpush1.bf16.msra.mxu0 0
  %328 = vmatprep.subr.bf16.mxu0 0
  %329 = vmatpush1.bf16.msra.mxu0 0
  %330 = vmatprep.subr.bf16.mxu0 0
  %331 = vmatpush1.bf16.msra.mxu0 0
  %332 = vmatprep.subr.bf16.mxu0 0
  %333 = vmatpush1.bf16.msra.mxu0 0
  %334 = vmatprep.subr.bf16.mxu0 0
  %335 = vmatpush1.bf16.msra.mxu0 0
  %336 = vmatprep.subr.bf16.mxu0 0
  %337 = vmatpush1.bf16.msra.mxu0 0
  %338 = vmatprep.subr.bf16.mxu0 0
  %339 = vmatpush1.bf16.msra.mxu0 0
  %340 = vmatprep.subr.bf16.mxu0 0
  %341 = vmatpush1.bf16.msra.mxu0 0
  %342 = vmatprep.mubr.bf16.mxu0 0
  %343 = vmatmul.mubr.bf16.gmra.mrb[0].mxu0 %v223
  %v344 = vpop.f32.mrb[0].mxu0
  %v345 = vadd.f32 0.0, %v344
  %v346 = vpop.f32.mrb[0].mxu0
  %v347 = vpop.f32.mrb[0].mxu0
  %v348 = vadd.f32 0.0, %v347
  %v349 = vpop.f32.mrb[0].mxu0
  %350 = vmatprep.mubr.bf16.mxu0 0
  %351 = vmatmul.mubr.bf16.gmra.mrb[0].mxu0 %v226
  %v352 = vpop.f32.mrb[0].mxu0
  %v353 = vadd.f32 0.0, %v352
  %v354 = vpop.f32.mrb[0].mxu0
  %v355 = vpop.f32.mrb[0].mxu0
  %v356 = vadd.f32 0.0, %v355
  %v357 = vpop.f32.mrb[0].mxu0
  %358 = vmatprep.mubr.bf16.mxu0 0
  %359 = vmatmul.mubr.bf16.gmra.mrb[0].mxu0 %v229
  %v360 = vpop.f32.mrb[0].mxu0
  %v361 = vadd.f32 0.0, %v360
  %v362 = vpop.f32.mrb[0].mxu0
  %v363 = vpop.f32.mrb[0].mxu0
  %v364 = vadd.f32 0.0, %v363
  %v365 = vpop.f32.mrb[0].mxu0
  %366 = vmatprep.mubr.bf16.mxu0 0
  %367 = vmatmul.mubr.bf16.gmra.mrb[0].mxu0 %v232
  %v368 = vpop.f32.mrb[0].mxu0
  %v369 = vadd.f32 0.0, %v368
  %v370 = vpop.f32.mrb[0].mxu0
  %v371 = vpop.f32.mrb[0].mxu0
  %v372 = vadd.f32 0.0, %v371
  %v373 = vpop.f32.mrb[0].mxu0
  %374 = vmatprep.mubr.bf16.mxu0 0
  %375 = vmatmul.mubr.bf16.gmra.mrb[0].mxu0 %v235
  %v376 = vpop.f32.mrb[0].mxu0
  %v377 = vadd.f32 0.0, %v376
  %v378 = vpop.f32.mrb[0].mxu0
  %v379 = vpop.f32.mrb[0].mxu0
  %v380 = vadd.f32 0.0, %v379
  %v381 = vpop.f32.mrb[0].mxu0
  %382 = vmatprep.mubr.bf16.mxu0 0
  %383 = vmatmul.mubr.bf16.gmra.mrb[0].mxu0 %v238
  %v384 = vpop.f32.mrb[0].mxu0
  %v385 = vadd.f32 0.0, %v384
  %v386 = vpop.f32.mrb[0].mxu0
  %v387 = vpop.f32.mrb[0].mxu0
  %v388 = vadd.f32 0.0, %v387
  %v389 = vpop.f32.mrb[0].mxu0
  %390 = vmatprep.mubr.bf16.mxu0 0
  %391 = vmatmul.mubr.bf16.gmra.mrb[0].mxu0 %v241
  %v392 = vpop.f32.mrb[0].mxu0
  %v393 = vadd.f32 0.0, %v392
  %v394 = vpop.f32.mrb[0].mxu0
  %v395 = vpop.f32.mrb[0].mxu0
  %v396 = vadd.f32 0.0, %v395
  %v397 = vpop.f32.mrb[0].mxu0
  %398 = vmatprep.mubr.bf16.mxu0 0
  %399 = vmatmul.mubr.bf16.gmra.mrb[0].mxu0 %v244
  %v400 = vpop.f32.mrb[0].mxu0
  %v401 = vadd.f32 0.0, %v400
  %v402 = vpop.f32.mrb[0].mxu0
  %v403 = vpop.f32.mrb[0].mxu0
  %v404 = vadd.f32 0.0, %v403
  %v405 = vpop.f32.mrb[0].mxu0
  %406 = vmatprep.mubr.bf16.mxu0 0
  %407 = vmatmul.mubr.bf16.gmra.mrb[0].mxu0 %v247
  %v408 = vpop.f32.mrb[0].mxu0
  %v409 = vadd.f32 0.0, %v408
  %v410 = vpop.f32.mrb[0].mxu0
  %v411 = vpop.f32.mrb[0].mxu0
  %v412 = vadd.f32 0.0, %v411
  %v413 = vpop.f32.mrb[0].mxu0
  %414 = vmatprep.mubr.bf16.mxu0 0
  %415 = vmatmul.mubr.bf16.gmra.mrb[0].mxu0 %v250
  %v416 = vpop.f32.mrb[0].mxu0
  %v417 = vadd.f32 0.0, %v416
  %v418 = vpop.f32.mrb[0].mxu0
  %v419 = vpop.f32.mrb[0].mxu0
  %v420 = vadd.f32 0.0, %v419
  %v421 = vpop.f32.mrb[0].mxu0
  %422 = vmatprep.mubr.bf16.mxu0 0
  %423 = vmatmul.mubr.bf16.gmra.mrb[0].mxu0 %v253
  %v424 = vpop.f32.mrb[0].mxu0
  %v425 = vadd.f32 0.0, %v424
  %v426 = vpop.f32.mrb[0].mxu0
  %v427 = vpop.f32.mrb[0].mxu0
  %v428 = vadd.f32 0.0, %v427
  %v429 = vpop.f32.mrb[0].mxu0
  %430 = vmatprep.mubr.bf16.mxu0 0
  %431 = vmatmul.mubr.bf16.gmra.mrb[0].mxu0 %v256
  %v432 = vpop.f32.mrb[0].mxu0
  %v433 = vadd.f32 0.0, %v432
  %v434 = vpop.f32.mrb[0].mxu0
  %v435 = vpop.f32.mrb[0].mxu0
  %v436 = vadd.f32 0.0, %v435
  %v437 = vpop.f32.mrb[0].mxu0
  %438 = vmatprep.mubr.bf16.mxu0 0
  %439 = vmatmul.mubr.bf16.gmra.mrb[0].mxu0 %v259
  %v440 = vpop.f32.mrb[0].mxu0
  %v441 = vadd.f32 0.0, %v440
  %v442 = vpop.f32.mrb[0].mxu0
  %v443 = vpop.f32.mrb[0].mxu0
  %v444 = vadd.f32 0.0, %v443
  %v445 = vpop.f32.mrb[0].mxu0
  %446 = vmatprep.mubr.bf16.mxu0 0
  %447 = vmatmul.mubr.bf16.gmra.mrb[0].mxu0 %v262
  %v448 = vpop.f32.mrb[0].mxu0
  %v449 = vadd.f32 0.0, %v448
  %v450 = vpop.f32.mrb[0].mxu0
  %v451 = vpop.f32.mrb[0].mxu0
  %v452 = vadd.f32 0.0, %v451
  %v453 = vpop.f32.mrb[0].mxu0
  %454 = vmatprep.mubr.bf16.mxu0 0
  %455 = vmatmul.mubr.bf16.gmra.mrb[0].mxu0 %v265
  %v456 = vpop.f32.mrb[0].mxu0
  %v457 = vadd.f32 0.0, %v456
  %v458 = vpop.f32.mrb[0].mxu0
  %v459 = vpop.f32.mrb[0].mxu0
  %v460 = vadd.f32 0.0, %v459
  %v461 = vpop.f32.mrb[0].mxu0
  %462 = vmatprep.mubr.bf16.mxu0 0
  %463 = vmatmul.mubr.bf16.gmra.mrb[0].mxu0 %v268
  %v464 = vpop.f32.mrb[0].mxu0
  %v465 = vadd.f32 0.0, %v464
  %v466 = vpop.f32.mrb[0].mxu0
  %v467 = vpop.f32.mrb[0].mxu0
  %v468 = vadd.f32 0.0, %v467
  %v469 = vpop.f32.mrb[0].mxu0
  %470 = vmatprep.mubr.bf16.mxu0 0
  %471 = vmatmul.mubr.bf16.gmra.mrb[0].mxu0 %v271
  %v472 = vpop.f32.mrb[0].mxu0
  %v473 = vadd.f32 0.0, %v472
  %v474 = vpop.f32.mrb[0].mxu0
  %v475 = vpop.f32.mrb[0].mxu0
  %v476 = vadd.f32 0.0, %v475
  %v477 = vpop.f32.mrb[0].mxu0
  %478 = vmatprep.mubr.bf16.mxu0 0
  %479 = vmatmul.mubr.bf16.gmra.mrb[0].mxu0 %v274
  %v480 = vpop.f32.mrb[0].mxu0
  %v481 = vadd.f32 0.0, %v480
  %v482 = vpop.f32.mrb[0].mxu0
  %v483 = vpop.f32.mrb[0].mxu0
  %v484 = vadd.f32 0.0, %v483
  %v485 = vpop.f32.mrb[0].mxu0
  %486 = vmatprep.mubr.bf16.mxu0 0
  %487 = vmatmul.mubr.bf16.gmra.mrb[0].mxu0 %v277
  %v488 = vpop.f32.mrb[0].mxu0
  %v489 = vadd.f32 0.0, %v488
  %v490 = vpop.f32.mrb[0].mxu0
  %v491 = vpop.f32.mrb[0].mxu0
  %v492 = vadd.f32 0.0, %v491
  %v493 = vpop.f32.mrb[0].mxu0
  %494 = vmatprep.mubr.bf16.mxu0 0
  %495 = vmatmul.mubr.bf16.gmra.mrb[0].mxu0 %v280
  %v496 = vpop.f32.mrb[0].mxu0
  %v497 = vadd.f32 0.0, %v496
  %v498 = vpop.f32.mrb[0].mxu0
  %v499 = vpop.f32.mrb[0].mxu0
  %v500 = vadd.f32 0.0, %v499
  %v501 = vpop.f32.mrb[0].mxu0
  %502 = vmatprep.mubr.bf16.mxu0 0
  %503 = vmatmul.mubr.bf16.gmra.mrb[0].mxu0 %v283
  %v504 = vpop.f32.mrb[0].mxu0
  %v505 = vadd.f32 0.0, %v504
  %v506 = vpop.f32.mrb[0].mxu0
  %v507 = vpop.f32.mrb[0].mxu0
  %v508 = vadd.f32 0.0, %v507
  %v509 = vpop.f32.mrb[0].mxu0
  %510 = vmatprep.mubr.bf16.mxu0 0
  %511 = vmatmul.mubr.bf16.gmra.mrb[0].mxu0 %v286
  %v512 = vpop.f32.mrb[0].mxu0
  %v513 = vadd.f32 0.0, %v512
  %v514 = vpop.f32.mrb[0].mxu0
  %v515 = vpop.f32.mrb[0].mxu0
  %v516 = vadd.f32 0.0, %v515
  %v517 = vpop.f32.mrb[0].mxu0
  %518 = vmatprep.mubr.bf16.mxu0 0
  %519 = vmatmul.mubr.bf16.gmra.mrb[0].mxu0 %v289
  %v520 = vpop.f32.mrb[0].mxu0
  %v521 = vadd.f32 0.0, %v520
  %v522 = vpop.f32.mrb[0].mxu0
  %v523 = vpop.f32.mrb[0].mxu0
  %v524 = vadd.f32 0.0, %v523
  %v525 = vpop.f32.mrb[0].mxu0
  %526 = vmatprep.mubr.bf16.mxu0 0
  %527 = vmatmul.mubr.bf16.gmra.mrb[0].mxu0 %v292
  %v528 = vpop.f32.mrb[0].mxu0
  %v529 = vadd.f32 0.0, %v528
  %v530 = vpop.f32.mrb[0].mxu0
  %v531 = vpop.f32.mrb[0].mxu0
  %v532 = vadd.f32 0.0, %v531
  %v533 = vpop.f32.mrb[0].mxu0
  %534 = vmatprep.mubr.bf16.mxu0 0
  %535 = vmatmul.mubr.bf16.gmra.mrb[0].mxu0 %v295
  %v536 = vpop.f32.mrb[0].mxu0
  %v537 = vadd.f32 0.0, %v536
  %v538 = vpop.f32.mrb[0].mxu0
  %v539 = vpop.f32.mrb[0].mxu0
  %v540 = vadd.f32 0.0, %v539
  %v541 = vpop.f32.mrb[0].mxu0
  %542 = vmatprep.mubr.bf16.mxu0 0
  %543 = vmatmul.mubr.bf16.gmra.mrb[0].mxu0 %v298
  %v544 = vpop.f32.mrb[0].mxu0
  %v545 = vadd.f32 0.0, %v544
  %v546 = vpop.f32.mrb[0].mxu0
  %v547 = vpop.f32.mrb[0].mxu0
  %v548 = vadd.f32 0.0, %v547
  %v549 = vpop.f32.mrb[0].mxu0
  %550 = vmatprep.mubr.bf16.mxu0 0
  %551 = vmatmul.mubr.bf16.gmra.mrb[0].mxu0 %v301
  %v552 = vpop.f32.mrb[0].mxu0
  %v553 = vadd.f32 0.0, %v552
  %v554 = vpop.f32.mrb[0].mxu0
  %v555 = vpop.f32.mrb[0].mxu0
  %v556 = vadd.f32 0.0, %v555
  %v557 = vpop.f32.mrb[0].mxu0
  %558 = vmatprep.mubr.bf16.mxu0 0
  %559 = vmatmul.mubr.bf16.gmra.mrb[0].mxu0 %v304
  %v560 = vpop.f32.mrb[0].mxu0
  %v561 = vadd.f32 0.0, %v560
  %v562 = vpop.f32.mrb[0].mxu0
  %v563 = vpop.f32.mrb[0].mxu0
  %v564 = vadd.f32 0.0, %v563
  %v565 = vpop.f32.mrb[0].mxu0
  %566 = vdwg.mxu0
  %v567 = vrot.slane %v345, 1
  %v568 = vrot.slane %v348, 1
  %v569 = vrot.slane %v353, 1
  %v570 = vrot.slane %v356, 1
  %v571 = vrot.slane %v361, 1
  %v572 = vrot.slane %v364, 1
  %v573 = vrot.slane %v369, 1
  %v574 = vrot.slane %v372, 1
  %v575 = vrot.slane %v377, 1
  %v576 = vrot.slane %v380, 1
  %v577 = vrot.slane %v385, 1
  %v578 = vrot.slane %v388, 1
  %v579 = vrot.slane %v393, 1
  %v580 = vrot.slane %v396, 1
  %v581 = vrot.slane %v401, 1
  %v582 = vrot.slane %v404, 1
  %v583 = vrot.slane %v409, 1
  %v584 = vrot.slane %v412, 1
  %v585 = vrot.slane %v417, 1
  %v586 = vrot.slane %v420, 1
  %v587 = vrot.slane %v425, 1
  %v588 = vrot.slane %v428, 1
  %v589 = vrot.slane %v433, 1
  %v590 = vrot.slane %v436, 1
  %v591 = vrot.slane %v441, 1
  %v592 = vrot.slane %v444, 1
  %v593 = vrot.slane %v449, 1
  %v594 = vrot.slane %v452, 1
  %v595 = vrot.slane %v457, 1
  %v596 = vrot.slane %v460, 1
  %v597 = vrot.slane %v465, 1
  %v598 = vrot.slane %v468, 1
  %v599 = vrot.slane %v473, 1
  %v600 = vrot.slane %v476, 1
  %v601 = vrot.slane %v481, 1
  %v602 = vrot.slane %v484, 1
  %v603 = vrot.slane %v489, 1
  %v604 = vrot.slane %v492, 1
  %v605 = vrot.slane %v497, 1
  %v606 = vrot.slane %v500, 1
  %v607 = vrot.slane %v505, 1
  %v608 = vrot.slane %v508, 1
  %v609 = vrot.slane %v513, 1
  %v610 = vrot.slane %v516, 1
  %v611 = vrot.slane %v521, 1
  %v612 = vrot.slane %v524, 1
  %v613 = vrot.slane %v529, 1
  %v614 = vrot.slane %v532, 1
  %v615 = vrot.slane %v537, 1
  %v616 = vrot.slane %v540, 1
  %v617 = vrot.slane %v545, 1
  %v618 = vrot.slane %v548, 1
  %v619 = vrot.slane %v553, 1
  %v620 = vrot.slane %v556, 1
  %v621 = vrot.slane %v561, 1
  %v622 = vrot.slane %v564, 1
  %v623 = vlaneseq
  %v624 = vshrl.u32 %v623, 7
  %vm625 = vcmp.lt.s32.totalorder %v624, 7
  %v626 = vsel %vm625, %v621, %v622
  %v627 = vsel %vm625, %v620, %v621
  %v628 = vsel %vm625, %v619, %v620
  %v629 = vsel %vm625, %v618, %v619
  %v630 = vsel %vm625, %v617, %v618
  %v631 = vsel %vm625, %v616, %v617
  %v632 = vsel %vm625, %v615, %v616
  %v633 = vsel %vm625, %v614, %v615
  %v634 = vsel %vm625, %v613, %v614
  %v635 = vsel %vm625, %v612, %v613
  %v636 = vsel %vm625, %v611, %v612
  %v637 = vsel %vm625, %v610, %v611
  %v638 = vsel %vm625, %v609, %v610
  %v639 = vsel %vm625, %v608, %v609
  %v640 = vsel %vm625, %v607, %v608
  %v641 = vsel %vm625, %v606, %v607
  %v642 = vsel %vm625, %v605, %v606
  %v643 = vsel %vm625, %v604, %v605
  %v644 = vsel %vm625, %v603, %v604
  %v645 = vsel %vm625, %v602, %v603
  %v646 = vsel %vm625, %v601, %v602
  %v647 = vsel %vm625, %v600, %v601
  %v648 = vsel %vm625, %v599, %v600
  %v649 = vsel %vm625, %v598, %v599
  %v650 = vsel %vm625, %v597, %v598
  %v651 = vsel %vm625, %v596, %v597
  %v652 = vsel %vm625, %v595, %v596
  %v653 = vsel %vm625, %v594, %v595
  %v654 = vsel %vm625, %v593, %v594
  %v655 = vsel %vm625, %v592, %v593
  %v656 = vsel %vm625, %v591, %v592
  %v657 = vsel %vm625, %v590, %v591
  %v658 = vsel %vm625, %v589, %v590
  %v659 = vsel %vm625, %v588, %v589
  %v660 = vsel %vm625, %v587, %v588
  %v661 = vsel %vm625, %v586, %v587
  %v662 = vsel %vm625, %v585, %v586
  %v663 = vsel %vm625, %v584, %v585
  %v664 = vsel %vm625, %v583, %v584
  %v665 = vsel %vm625, %v582, %v583
  %v666 = vsel %vm625, %v581, %v582
  %v667 = vsel %vm625, %v580, %v581
  %v668 = vsel %vm625, %v579, %v580
  %v669 = vsel %vm625, %v578, %v579
  %v670 = vsel %vm625, %v577, %v578
  %v671 = vsel %vm625, %v576, %v577
  %v672 = vsel %vm625, %v575, %v576
  %v673 = vsel %vm625, %v574, %v575
  %v674 = vsel %vm625, %v573, %v574
  %v675 = vsel %vm625, %v572, %v573
  %v676 = vsel %vm625, %v571, %v572
  %v677 = vsel %vm625, %v570, %v571
  %v678 = vsel %vm625, %v569, %v570
  %v679 = vsel %vm625, %v568, %v569
  %v680 = vsel %vm625, %v567, %v568
  %v681 = vsel %vm625, %v622, %v567
  %v684 = vunpack.c.l.b16 %v71
  %v685 = vunpack.c.l.b16 %v72
  %v686 = vpack.c.b16 %v685, %v684
  %v688 = vsel %vm306, %v686, 0
  %690 = vmatprep.subr.bf16.mxu0 0
  %691 = vmatpush1.bf16.msra.mxu0 %v688
  %692 = vmatprep.subr.bf16.mxu0 0
  %693 = vmatpush1.bf16.msra.mxu0 0
  %694 = vmatprep.subr.bf16.mxu0 0
  %695 = vmatpush1.bf16.msra.mxu0 0
  %696 = vmatprep.subr.bf16.mxu0 0
  %697 = vmatpush1.bf16.msra.mxu0 0
  %698 = vmatprep.subr.bf16.mxu0 0
  %699 = vmatpush1.bf16.msra.mxu0 0
  %700 = vmatprep.subr.bf16.mxu0 0
  %701 = vmatpush1.bf16.msra.mxu0 0
  %702 = vmatprep.subr.bf16.mxu0 0
  %703 = vmatpush1.bf16.msra.mxu0 0
  %704 = vmatprep.subr.bf16.mxu0 0
  %705 = vmatpush1.bf16.msra.mxu0 0
  %706 = vmatprep.subr.bf16.mxu0 0
  %707 = vmatpush1.bf16.msra.mxu0 0
  %708 = vmatprep.subr.bf16.mxu0 0
  %709 = vmatpush1.bf16.msra.mxu0 0
  %710 = vmatprep.subr.bf16.mxu0 0
  %711 = vmatpush1.bf16.msra.mxu0 0
  %712 = vmatprep.subr.bf16.mxu0 0
  %713 = vmatpush1.bf16.msra.mxu0 0
  %714 = vmatprep.subr.bf16.mxu0 0
  %715 = vmatpush1.bf16.msra.mxu0 0
  %716 = vmatprep.subr.bf16.mxu0 0
  %717 = vmatpush1.bf16.msra.mxu0 0
  %718 = vmatprep.subr.bf16.mxu0 0
  %719 = vmatpush1.bf16.msra.mxu0 0
  %720 = vmatprep.subr.bf16.mxu0 0
  %721 = vmatpush1.bf16.msra.mxu0 0
  %722 = vmatprep.mubr.bf16.mxu0 0
  %723 = vmatmul.mubr.bf16.gmra.mrb[0].mxu0 %v223
  %v724 = vpop.f32.mrb[0].mxu0
  %v725 = vadd.f32 %v680, %v724
  %v726 = vpop.f32.mrb[0].mxu0
  %v727 = vpop.f32.mrb[0].mxu0
  %v728 = vadd.f32 %v679, %v727
  %v729 = vpop.f32.mrb[0].mxu0
  %730 = vmatprep.mubr.bf16.mxu0 0
  %731 = vmatmul.mubr.bf16.gmra.mrb[0].mxu0 %v226
  %v732 = vpop.f32.mrb[0].mxu0
  %v733 = vadd.f32 %v678, %v732
  %v734 = vpop.f32.mrb[0].mxu0
  %v735 = vpop.f32.mrb[0].mxu0
  %v736 = vadd.f32 %v677, %v735
  %v737 = vpop.f32.mrb[0].mxu0
  %738 = vmatprep.mubr.bf16.mxu0 0
  %739 = vmatmul.mubr.bf16.gmra.mrb[0].mxu0 %v229
  %v740 = vpop.f32.mrb[0].mxu0
  %v741 = vadd.f32 %v676, %v740
  %v742 = vpop.f32.mrb[0].mxu0
  %v743 = vpop.f32.mrb[0].mxu0
  %v744 = vadd.f32 %v675, %v743
  %v745 = vpop.f32.mrb[0].mxu0
  %746 = vmatprep.mubr.bf16.mxu0 0
  %747 = vmatmul.mubr.bf16.gmra.mrb[0].mxu0 %v232
  %v748 = vpop.f32.mrb[0].mxu0
  %v749 = vadd.f32 %v674, %v748
  %v750 = vpop.f32.mrb[0].mxu0
  %v751 = vpop.f32.mrb[0].mxu0
  %v752 = vadd.f32 %v673, %v751
  %v753 = vpop.f32.mrb[0].mxu0
  %754 = vmatprep.mubr.bf16.mxu0 0
  %755 = vmatmul.mubr.bf16.gmra.mrb[0].mxu0 %v235
  %v756 = vpop.f32.mrb[0].mxu0
  %v757 = vadd.f32 %v672, %v756
  %v758 = vpop.f32.mrb[0].mxu0
  %v759 = vpop.f32.mrb[0].mxu0
  %v760 = vadd.f32 %v671, %v759
  %v761 = vpop.f32.mrb[0].mxu0
  %762 = vmatprep.mubr.bf16.mxu0 0
  %763 = vmatmul.mubr.bf16.gmra.mrb[0].mxu0 %v238
  %v764 = vpop.f32.mrb[0].mxu0
  %v765 = vadd.f32 %v670, %v764
  %v766 = vpop.f32.mrb[0].mxu0
  %v767 = vpop.f32.mrb[0].mxu0
  %v768 = vadd.f32 %v669, %v767
  %v769 = vpop.f32.mrb[0].mxu0
  %770 = vmatprep.mubr.bf16.mxu0 0
  %771 = vmatmul.mubr.bf16.gmra.mrb[0].mxu0 %v241
  %v772 = vpop.f32.mrb[0].mxu0
  %v773 = vadd.f32 %v668, %v772
  %v774 = vpop.f32.mrb[0].mxu0
  %v775 = vpop.f32.mrb[0].mxu0
  %v776 = vadd.f32 %v667, %v775
  %v777 = vpop.f32.mrb[0].mxu0
  %778 = vmatprep.mubr.bf16.mxu0 0
  %779 = vmatmul.mubr.bf16.gmra.mrb[0].mxu0 %v244
  %v780 = vpop.f32.mrb[0].mxu0
  %v781 = vadd.f32 %v666, %v780
  %v782 = vpop.f32.mrb[0].mxu0
  %v783 = vpop.f32.mrb[0].mxu0
  %v784 = vadd.f32 %v665, %v783
  %v785 = vpop.f32.mrb[0].mxu0
  %786 = vmatprep.mubr.bf16.mxu0 0
  %787 = vmatmul.mubr.bf16.gmra.mrb[0].mxu0 %v247
  %v788 = vpop.f32.mrb[0].mxu0
  %v789 = vadd.f32 %v664, %v788
  %v790 = vpop.f32.mrb[0].mxu0
  %v791 = vpop.f32.mrb[0].mxu0
  %v792 = vadd.f32 %v663, %v791
  %v793 = vpop.f32.mrb[0].mxu0
  %794 = vmatprep.mubr.bf16.mxu0 0
  %795 = vmatmul.mubr.bf16.gmra.mrb[0].mxu0 %v250
  %v796 = vpop.f32.mrb[0].mxu0
  %v797 = vadd.f32 %v662, %v796
  %v798 = vpop.f32.mrb[0].mxu0
  %v799 = vpop.f32.mrb[0].mxu0
  %v800 = vadd.f32 %v661, %v799
  %v801 = vpop.f32.mrb[0].mxu0
  %802 = vmatprep.mubr.bf16.mxu0 0
  %803 = vmatmul.mubr.bf16.gmra.mrb[0].mxu0 %v253
  %v804 = vpop.f32.mrb[0].mxu0
  %v805 = vadd.f32 %v660, %v804
  %v806 = vpop.f32.mrb[0].mxu0
  %v807 = vpop.f32.mrb[0].mxu0
  %v808 = vadd.f32 %v659, %v807
  %v809 = vpop.f32.mrb[0].mxu0
  %810 = vmatprep.mubr.bf16.mxu0 0
  %811 = vmatmul.mubr.bf16.gmra.mrb[0].mxu0 %v256
  %v812 = vpop.f32.mrb[0].mxu0
  %v813 = vadd.f32 %v658, %v812
  %v814 = vpop.f32.mrb[0].mxu0
  %v815 = vpop.f32.mrb[0].mxu0
  %v816 = vadd.f32 %v657, %v815
  %v817 = vpop.f32.mrb[0].mxu0
  %818 = vmatprep.mubr.bf16.mxu0 0
  %819 = vmatmul.mubr.bf16.gmra.mrb[0].mxu0 %v259
  %v820 = vpop.f32.mrb[0].mxu0
  %v821 = vadd.f32 %v656, %v820
  %v822 = vpop.f32.mrb[0].mxu0
  %v823 = vpop.f32.mrb[0].mxu0
  %v824 = vadd.f32 %v655, %v823
  %v825 = vpop.f32.mrb[0].mxu0
  %826 = vmatprep.mubr.bf16.mxu0 0
  %827 = vmatmul.mubr.bf16.gmra.mrb[0].mxu0 %v262
  %v828 = vpop.f32.mrb[0].mxu0
  %v829 = vadd.f32 %v654, %v828
  %v830 = vpop.f32.mrb[0].mxu0
  %v831 = vpop.f32.mrb[0].mxu0
  %v832 = vadd.f32 %v653, %v831
  %v833 = vpop.f32.mrb[0].mxu0
  %834 = vmatprep.mubr.bf16.mxu0 0
  %835 = vmatmul.mubr.bf16.gmra.mrb[0].mxu0 %v265
  %v836 = vpop.f32.mrb[0].mxu0
  %v837 = vadd.f32 %v652, %v836
  %v838 = vpop.f32.mrb[0].mxu0
  %v839 = vpop.f32.mrb[0].mxu0
  %v840 = vadd.f32 %v651, %v839
  %v841 = vpop.f32.mrb[0].mxu0
  %842 = vmatprep.mubr.bf16.mxu0 0
  %843 = vmatmul.mubr.bf16.gmra.mrb[0].mxu0 %v268
  %v844 = vpop.f32.mrb[0].mxu0
  %v845 = vadd.f32 %v650, %v844
  %v846 = vpop.f32.mrb[0].mxu0
  %v847 = vpop.f32.mrb[0].mxu0
  %v848 = vadd.f32 %v649, %v847
  %v849 = vpop.f32.mrb[0].mxu0
  %850 = vmatprep.mubr.bf16.mxu0 0
  %851 = vmatmul.mubr.bf16.gmra.mrb[0].mxu0 %v271
  %v852 = vpop.f32.mrb[0].mxu0
  %v853 = vadd.f32 %v648, %v852
  %v854 = vpop.f32.mrb[0].mxu0
  %v855 = vpop.f32.mrb[0].mxu0
  %v856 = vadd.f32 %v647, %v855
  %v857 = vpop.f32.mrb[0].mxu0
  %858 = vmatprep.mubr.bf16.mxu0 0
  %859 = vmatmul.mubr.bf16.gmra.mrb[0].mxu0 %v274
  %v860 = vpop.f32.mrb[0].mxu0
  %v861 = vadd.f32 %v646, %v860
  %v862 = vpop.f32.mrb[0].mxu0
  %v863 = vpop.f32.mrb[0].mxu0
  %v864 = vadd.f32 %v645, %v863
  %v865 = vpop.f32.mrb[0].mxu0
  %866 = vmatprep.mubr.bf16.mxu0 0
  %867 = vmatmul.mubr.bf16.gmra.mrb[0].mxu0 %v277
  %v868 = vpop.f32.mrb[0].mxu0
  %v869 = vadd.f32 %v644, %v868
  %v870 = vpop.f32.mrb[0].mxu0
  %v871 = vpop.f32.mrb[0].mxu0
  %v872 = vadd.f32 %v643, %v871
  %v873 = vpop.f32.mrb[0].mxu0
  %874 = vmatprep.mubr.bf16.mxu0 0
  %875 = vmatmul.mubr.bf16.gmra.mrb[0].mxu0 %v280
  %v876 = vpop.f32.mrb[0].mxu0
  %v877 = vadd.f32 %v642, %v876
  %v878 = vpop.f32.mrb[0].mxu0
  %v879 = vpop.f32.mrb[0].mxu0
  %v880 = vadd.f32 %v641, %v879
  %v881 = vpop.f32.mrb[0].mxu0
  %882 = vmatprep.mubr.bf16.mxu0 0
  %883 = vmatmul.mubr.bf16.gmra.mrb[0].mxu0 %v283
  %v884 = vpop.f32.mrb[0].mxu0
  %v885 = vadd.f32 %v640, %v884
  %v886 = vpop.f32.mrb[0].mxu0
  %v887 = vpop.f32.mrb[0].mxu0
  %v888 = vadd.f32 %v639, %v887
  %v889 = vpop.f32.mrb[0].mxu0
  %890 = vmatprep.mubr.bf16.mxu0 0
  %891 = vmatmul.mubr.bf16.gmra.mrb[0].mxu0 %v286
  %v892 = vpop.f32.mrb[0].mxu0
  %v893 = vadd.f32 %v638, %v892
  %v894 = vpop.f32.mrb[0].mxu0
  %v895 = vpop.f32.mrb[0].mxu0
  %v896 = vadd.f32 %v637, %v895
  %v897 = vpop.f32.mrb[0].mxu0
  %898 = vmatprep.mubr.bf16.mxu0 0
  %899 = vmatmul.mubr.bf16.gmra.mrb[0].mxu0 %v289
  %v900 = vpop.f32.mrb[0].mxu0
  %v901 = vadd.f32 %v636, %v900
  %v902 = vpop.f32.mrb[0].mxu0
  %v903 = vpop.f32.mrb[0].mxu0
  %v904 = vadd.f32 %v635, %v903
  %v905 = vpop.f32.mrb[0].mxu0
  %906 = vmatprep.mubr.bf16.mxu0 0
  %907 = vmatmul.mubr.bf16.gmra.mrb[0].mxu0 %v292
  %v908 = vpop.f32.mrb[0].mxu0
  %v909 = vadd.f32 %v634, %v908
  %v910 = vpop.f32.mrb[0].mxu0
  %v911 = vpop.f32.mrb[0].mxu0
  %v912 = vadd.f32 %v633, %v911
  %v913 = vpop.f32.mrb[0].mxu0
  %914 = vmatprep.mubr.bf16.mxu0 0
  %915 = vmatmul.mubr.bf16.gmra.mrb[0].mxu0 %v295
  %v916 = vpop.f32.mrb[0].mxu0
  %v917 = vadd.f32 %v632, %v916
  %v918 = vpop.f32.mrb[0].mxu0
  %v919 = vpop.f32.mrb[0].mxu0
  %v920 = vadd.f32 %v631, %v919
  %v921 = vpop.f32.mrb[0].mxu0
  %922 = vmatprep.mubr.bf16.mxu0 0
  %923 = vmatmul.mubr.bf16.gmra.mrb[0].mxu0 %v298
  %v924 = vpop.f32.mrb[0].mxu0
  %v925 = vadd.f32 %v630, %v924
  %v926 = vpop.f32.mrb[0].mxu0
  %v927 = vpop.f32.mrb[0].mxu0
  %v928 = vadd.f32 %v629, %v927
  %v929 = vpop.f32.mrb[0].mxu0
  %930 = vmatprep.mubr.bf16.mxu0 0
  %931 = vmatmul.mubr.bf16.gmra.mrb[0].mxu0 %v301
  %v932 = vpop.f32.mrb[0].mxu0
  %v933 = vadd.f32 %v628, %v932
  %v934 = vpop.f32.mrb[0].mxu0
  %v935 = vpop.f32.mrb[0].mxu0
  %v936 = vadd.f32 %v627, %v935
  %v937 = vpop.f32.mrb[0].mxu0
  %938 = vmatprep.mubr.bf16.mxu0 0
  %939 = vmatmul.mubr.bf16.gmra.mrb[0].mxu0 %v304
  %v940 = vpop.f32.mrb[0].mxu0
  %v941 = vadd.f32 %v626, %v940
  %v942 = vpop.f32.mrb[0].mxu0
  %v943 = vpop.f32.mrb[0].mxu0
  %v944 = vadd.f32 %v681, %v943
  %v945 = vpop.f32.mrb[0].mxu0
  %946 = vdwg.mxu0
  %s947 = scalar_lea.vmem %s1, 16
  %v948 = vld [vmem:[%s947] sm:$0xf]
  %v949 = vld [vmem:[%s947 + $0x4] sm:$0x3]
  %v952 = vunpack.c.l.b16 %v948
  %v953 = vunpack.c.l.b16 %v949
  %v954 = vpack.c.b16 %v953, %v952
  %v956 = vsel %vm306, %v954, 0
  %958 = vmatprep.subr.bf16.mxu0 0
  %959 = vmatpush1.bf16.msra.mxu0 %v956
  %960 = vmatprep.subr.bf16.mxu0 0
  %961 = vmatpush1.bf16.msra.mxu0 0
  %962 = vmatprep.subr.bf16.mxu0 0
  %963 = vmatpush1.bf16.msra.mxu0 0
  %964 = vmatprep.subr.bf16.mxu0 0
  %965 = vmatpush1.bf16.msra.mxu0 0
  %966 = vmatprep.subr.bf16.mxu0 0
  %967 = vmatpush1.bf16.msra.mxu0 0
  %968 = vmatprep.subr.bf16.mxu0 0
  %969 = vmatpush1.bf16.msra.mxu0 0
  %970 = vmatprep.subr.bf16.mxu0 0
  %971 = vmatpush1.bf16.msra.mxu0 0
  %972 = vmatprep.subr.bf16.mxu0 0
  %973 = vmatpush1.bf16.msra.mxu0 0
  %974 = vmatprep.subr.bf16.mxu0 0
  %975 = vmatpush1.bf16.msra.mxu0 0
  %976 = vmatprep.subr.bf16.mxu0 0
  %977 = vmatpush1.bf16.msra.mxu0 0
  %978 = vmatprep.subr.bf16.mxu0 0
  %979 = vmatpush1.bf16.msra.mxu0 0
  %980 = vmatprep.subr.bf16.mxu0 0
  %981 = vmatpush1.bf16.msra.mxu0 0
  %982 = vmatprep.subr.bf16.mxu0 0
  %983 = vmatpush1.bf16.msra.mxu0 0
  %984 = vmatprep.subr.bf16.mxu0 0
  %985 = vmatpush1.bf16.msra.mxu0 0
  %986 = vmatprep.subr.bf16.mxu0 0
  %987 = vmatpush1.bf16.msra.mxu0 0
  %988 = vmatprep.subr.bf16.mxu0 0
  %989 = vmatpush1.bf16.msra.mxu0 0
  %990 = vmatprep.mubr.bf16.mxu0 0
  %991 = vmatmul.mubr.bf16.gmra.mrb[0].mxu0 %v223
  %v992 = vpop.f32.mrb[0].mxu0
  %v993 = vadd.f32 0.0, %v992
  %v994 = vpop.f32.mrb[0].mxu0
  %v995 = vpop.f32.mrb[0].mxu0
  %v996 = vadd.f32 0.0, %v995
  %v997 = vpop.f32.mrb[0].mxu0
  %998 = vmatprep.mubr.bf16.mxu0 0
  %999 = vmatmul.mubr.bf16.gmra.mrb[0].mxu0 %v226
  %v1000 = vpop.f32.mrb[0].mxu0
  %v1001 = vadd.f32 0.0, %v1000
  %v1002 = vpop.f32.mrb[0].mxu0
  %v1003 = vpop.f32.mrb[0].mxu0
  %v1004 = vadd.f32 0.0, %v1003
  %v1005 = vpop.f32.mrb[0].mxu0
  %1006 = vmatprep.mubr.bf16.mxu0 0
  %1007 = vmatmul.mubr.bf16.gmra.mrb[0].mxu0 %v229
  %v1008 = vpop.f32.mrb[0].mxu0
  %v1009 = vadd.f32 0.0, %v1008
  %v1010 = vpop.f32.mrb[0].mxu0
  %v1011 = vpop.f32.mrb[0].mxu0
  %v1012 = vadd.f32 0.0, %v1011
  %v1013 = vpop.f32.mrb[0].mxu0
  %1014 = vmatprep.mubr.bf16.mxu0 0
  %1015 = vmatmul.mubr.bf16.gmra.mrb[0].mxu0 %v232
  %v1016 = vpop.f32.mrb[0].mxu0
  %v1017 = vadd.f32 0.0, %v1016
  %v1018 = vpop.f32.mrb[0].mxu0
  %v1019 = vpop.f32.mrb[0].mxu0
  %v1020 = vadd.f32 0.0, %v1019
  %v1021 = vpop.f32.mrb[0].mxu0
  %1022 = vmatprep.mubr.bf16.mxu0 0
  %1023 = vmatmul.mubr.bf16.gmra.mrb[0].mxu0 %v235
  %v1024 = vpop.f32.mrb[0].mxu0
  %v1025 = vadd.f32 0.0, %v1024
  %v1026 = vpop.f32.mrb[0].mxu0
  %v1027 = vpop.f32.mrb[0].mxu0
  %v1028 = vadd.f32 0.0, %v1027
  %v1029 = vpop.f32.mrb[0].mxu0
  %1030 = vmatprep.mubr.bf16.mxu0 0
  %1031 = vmatmul.mubr.bf16.gmra.mrb[0].mxu0 %v238
  %v1032 = vpop.f32.mrb[0].mxu0
  %v1033 = vadd.f32 0.0, %v1032
  %v1034 = vpop.f32.mrb[0].mxu0
  %v1035 = vpop.f32.mrb[0].mxu0
  %v1036 = vadd.f32 0.0, %v1035
  %v1037 = vpop.f32.mrb[0].mxu0
  %1038 = vmatprep.mubr.bf16.mxu0 0
  %1039 = vmatmul.mubr.bf16.gmra.mrb[0].mxu0 %v241
  %v1040 = vpop.f32.mrb[0].mxu0
  %v1041 = vadd.f32 0.0, %v1040
  %v1042 = vpop.f32.mrb[0].mxu0
  %v1043 = vpop.f32.mrb[0].mxu0
  %v1044 = vadd.f32 0.0, %v1043
  %v1045 = vpop.f32.mrb[0].mxu0
  %1046 = vmatprep.mubr.bf16.mxu0 0
  %1047 = vmatmul.mubr.bf16.gmra.mrb[0].mxu0 %v244
  %v1048 = vpop.f32.mrb[0].mxu0
  %v1049 = vadd.f32 0.0, %v1048
  %v1050 = vpop.f32.mrb[0].mxu0
  %v1051 = vpop.f32.mrb[0].mxu0
  %v1052 = vadd.f32 0.0, %v1051
  %v1053 = vpop.f32.mrb[0].mxu0
  %1054 = vmatprep.mubr.bf16.mxu0 0
  %1055 = vmatmul.mubr.bf16.gmra.mrb[0].mxu0 %v247
  %v1056 = vpop.f32.mrb[0].mxu0
  %v1057 = vadd.f32 0.0, %v1056
  %v1058 = vpop.f32.mrb[0].mxu0
  %v1059 = vpop.f32.mrb[0].mxu0
  %v1060 = vadd.f32 0.0, %v1059
  %v1061 = vpop.f32.mrb[0].mxu0
  %1062 = vmatprep.mubr.bf16.mxu0 0
  %1063 = vmatmul.mubr.bf16.gmra.mrb[0].mxu0 %v250
  %v1064 = vpop.f32.mrb[0].mxu0
  %v1065 = vadd.f32 0.0, %v1064
  %v1066 = vpop.f32.mrb[0].mxu0
  %v1067 = vpop.f32.mrb[0].mxu0
  %v1068 = vadd.f32 0.0, %v1067
  %v1069 = vpop.f32.mrb[0].mxu0
  %1070 = vmatprep.mubr.bf16.mxu0 0
  %1071 = vmatmul.mubr.bf16.gmra.mrb[0].mxu0 %v253
  %v1072 = vpop.f32.mrb[0].mxu0
  %v1073 = vadd.f32 0.0, %v1072
  %v1074 = vpop.f32.mrb[0].mxu0
  %v1075 = vpop.f32.mrb[0].mxu0
  %v1076 = vadd.f32 0.0, %v1075
  %v1077 = vpop.f32.mrb[0].mxu0
  %1078 = vmatprep.mubr.bf16.mxu0 0
  %1079 = vmatmul.mubr.bf16.gmra.mrb[0].mxu0 %v256
  %v1080 = vpop.f32.mrb[0].mxu0
  %v1081 = vadd.f32 0.0, %v1080
  %v1082 = vpop.f32.mrb[0].mxu0
  %v1083 = vpop.f32.mrb[0].mxu0
  %v1084 = vadd.f32 0.0, %v1083
  %v1085 = vpop.f32.mrb[0].mxu0
  %1086 = vmatprep.mubr.bf16.mxu0 0
  %1087 = vmatmul.mubr.bf16.gmra.mrb[0].mxu0 %v259
  %v1088 = vpop.f32.mrb[0].mxu0
  %v1089 = vadd.f32 0.0, %v1088
  %v1090 = vpop.f32.mrb[0].mxu0
  %v1091 = vpop.f32.mrb[0].mxu0
  %v1092 = vadd.f32 0.0, %v1091
  %v1093 = vpop.f32.mrb[0].mxu0
  %1094 = vmatprep.mubr.bf16.mxu0 0
  %1095 = vmatmul.mubr.bf16.gmra.mrb[0].mxu0 %v262
  %v1096 = vpop.f32.mrb[0].mxu0
  %v1097 = vadd.f32 0.0, %v1096
  %v1098 = vpop.f32.mrb[0].mxu0
  %v1099 = vpop.f32.mrb[0].mxu0
  %v1100 = vadd.f32 0.0, %v1099
  %v1101 = vpop.f32.mrb[0].mxu0
  %1102 = vmatprep.mubr.bf16.mxu0 0
  %1103 = vmatmul.mubr.bf16.gmra.mrb[0].mxu0 %v265
  %v1104 = vpop.f32.mrb[0].mxu0
  %v1105 = vadd.f32 0.0, %v1104
  %v1106 = vpop.f32.mrb[0].mxu0
  %v1107 = vpop.f32.mrb[0].mxu0
  %v1108 = vadd.f32 0.0, %v1107
  %v1109 = vpop.f32.mrb[0].mxu0
  %1110 = vmatprep.mubr.bf16.mxu0 0
  %1111 = vmatmul.mubr.bf16.gmra.mrb[0].mxu0 %v268
  %v1112 = vpop.f32.mrb[0].mxu0
  %v1113 = vadd.f32 0.0, %v1112
  %v1114 = vpop.f32.mrb[0].mxu0
  %v1115 = vpop.f32.mrb[0].mxu0
  %v1116 = vadd.f32 0.0, %v1115
  %v1117 = vpop.f32.mrb[0].mxu0
  %1118 = vmatprep.mubr.bf16.mxu0 0
  %1119 = vmatmul.mubr.bf16.gmra.mrb[0].mxu0 %v271
  %v1120 = vpop.f32.mrb[0].mxu0
  %v1121 = vadd.f32 0.0, %v1120
  %v1122 = vpop.f32.mrb[0].mxu0
  %v1123 = vpop.f32.mrb[0].mxu0
  %v1124 = vadd.f32 0.0, %v1123
  %v1125 = vpop.f32.mrb[0].mxu0
  %1126 = vmatprep.mubr.bf16.mxu0 0
  %1127 = vmatmul.mubr.bf16.gmra.mrb[0].mxu0 %v274
  %v1128 = vpop.f32.mrb[0].mxu0
  %v1129 = vadd.f32 0.0, %v1128
  %v1130 = vpop.f32.mrb[0].mxu0
  %v1131 = vpop.f32.mrb[0].mxu0
  %v1132 = vadd.f32 0.0, %v1131
  %v1133 = vpop.f32.mrb[0].mxu0
  %1134 = vmatprep.mubr.bf16.mxu0 0
  %1135 = vmatmul.mubr.bf16.gmra.mrb[0].mxu0 %v277
  %v1136 = vpop.f32.mrb[0].mxu0
  %v1137 = vadd.f32 0.0, %v1136
  %v1138 = vpop.f32.mrb[0].mxu0
  %v1139 = vpop.f32.mrb[0].mxu0
  %v1140 = vadd.f32 0.0, %v1139
  %v1141 = vpop.f32.mrb[0].mxu0
  %1142 = vmatprep.mubr.bf16.mxu0 0
  %1143 = vmatmul.mubr.bf16.gmra.mrb[0].mxu0 %v280
  %v1144 = vpop.f32.mrb[0].mxu0
  %v1145 = vadd.f32 0.0, %v1144
  %v1146 = vpop.f32.mrb[0].mxu0
  %v1147 = vpop.f32.mrb[0].mxu0
  %v1148 = vadd.f32 0.0, %v1147
  %v1149 = vpop.f32.mrb[0].mxu0
  %1150 = vmatprep.mubr.bf16.mxu0 0
  %1151 = vmatmul.mubr.bf16.gmra.mrb[0].mxu0 %v283
  %v1152 = vpop.f32.mrb[0].mxu0
  %v1153 = vadd.f32 0.0, %v1152
  %v1154 = vpop.f32.mrb[0].mxu0
  %v1155 = vpop.f32.mrb[0].mxu0
  %v1156 = vadd.f32 0.0, %v1155
  %v1157 = vpop.f32.mrb[0].mxu0
  %1158 = vmatprep.mubr.bf16.mxu0 0
  %1159 = vmatmul.mubr.bf16.gmra.mrb[0].mxu0 %v286
  %v1160 = vpop.f32.mrb[0].mxu0
  %v1161 = vadd.f32 0.0, %v1160
  %v1162 = vpop.f32.mrb[0].mxu0
  %v1163 = vpop.f32.mrb[0].mxu0
  %v1164 = vadd.f32 0.0, %v1163
  %v1165 = vpop.f32.mrb[0].mxu0
  %1166 = vmatprep.mubr.bf16.mxu0 0
  %1167 = vmatmul.mubr.bf16.gmra.mrb[0].mxu0 %v289
  %v1168 = vpop.f32.mrb[0].mxu0
  %v1169 = vadd.f32 0.0, %v1168
  %v1170 = vpop.f32.mrb[0].mxu0
  %v1171 = vpop.f32.mrb[0].mxu0
  %v1172 = vadd.f32 0.0, %v1171
  %v1173 = vpop.f32.mrb[0].mxu0
  %1174 = vmatprep.mubr.bf16.mxu0 0
  %1175 = vmatmul.mubr.bf16.gmra.mrb[0].mxu0 %v292
  %v1176 = vpop.f32.mrb[0].mxu0
  %v1177 = vadd.f32 0.0, %v1176
  %v1178 = vpop.f32.mrb[0].mxu0
  %v1179 = vpop.f32.mrb[0].mxu0
  %v1180 = vadd.f32 0.0, %v1179
  %v1181 = vpop.f32.mrb[0].mxu0
  %1182 = vmatprep.mubr.bf16.mxu0 0
  %1183 = vmatmul.mubr.bf16.gmra.mrb[0].mxu0 %v295
  %v1184 = vpop.f32.mrb[0].mxu0
  %v1185 = vadd.f32 0.0, %v1184
  %v1186 = vpop.f32.mrb[0].mxu0
  %v1187 = vpop.f32.mrb[0].mxu0
  %v1188 = vadd.f32 0.0, %v1187
  %v1189 = vpop.f32.mrb[0].mxu0
  %1190 = vmatprep.mubr.bf16.mxu0 0
  %1191 = vmatmul.mubr.bf16.gmra.mrb[0].mxu0 %v298
  %v1192 = vpop.f32.mrb[0].mxu0
  %v1193 = vadd.f32 0.0, %v1192
  %v1194 = vpop.f32.mrb[0].mxu0
  %v1195 = vpop.f32.mrb[0].mxu0
  %v1196 = vadd.f32 0.0, %v1195
  %v1197 = vpop.f32.mrb[0].mxu0
  %1198 = vmatprep.mubr.bf16.mxu0 0
  %1199 = vmatmul.mubr.bf16.gmra.mrb[0].mxu0 %v301
  %v1200 = vpop.f32.mrb[0].mxu0
  %v1201 = vadd.f32 0.0, %v1200
  %v1202 = vpop.f32.mrb[0].mxu0
  %v1203 = vpop.f32.mrb[0].mxu0
  %v1204 = vadd.f32 0.0, %v1203
  %v1205 = vpop.f32.mrb[0].mxu0
  %1206 = vmatprep.mubr.bf16.mxu0 0
  %1207 = vmatmul.mubr.bf16.gmra.mrb[0].mxu0 %v304
  %v1208 = vpop.f32.mrb[0].mxu0
  %v1209 = vadd.f32 0.0, %v1208
  %v1210 = vpop.f32.mrb[0].mxu0
  %v1211 = vpop.f32.mrb[0].mxu0
  %v1212 = vadd.f32 0.0, %v1211
  %v1213 = vpop.f32.mrb[0].mxu0
  %1214 = vdwg.mxu0
  %v1215 = vrot.slane %v993, 2
  %v1216 = vrot.slane %v996, 2
  %v1217 = vrot.slane %v1001, 2
  %v1218 = vrot.slane %v1004, 2
  %v1219 = vrot.slane %v1009, 2
  %v1220 = vrot.slane %v1012, 2
  %v1221 = vrot.slane %v1017, 2
  %v1222 = vrot.slane %v1020, 2
  %v1223 = vrot.slane %v1025, 2
  %v1224 = vrot.slane %v1028, 2
  %v1225 = vrot.slane %v1033, 2
  %v1226 = vrot.slane %v1036, 2
  %v1227 = vrot.slane %v1041, 2
  %v1228 = vrot.slane %v1044, 2
  %v1229 = vrot.slane %v1049, 2
  %v1230 = vrot.slane %v1052, 2
  %v1231 = vrot.slane %v1057, 2
  %v1232 = vrot.slane %v1060, 2
  %v1233 = vrot.slane %v1065, 2
  %v1234 = vrot.slane %v1068, 2
  %v1235 = vrot.slane %v1073, 2
  %v1236 = vrot.slane %v1076, 2
  %v1237 = vrot.slane %v1081, 2
  %v1238 = vrot.slane %v1084, 2
  %v1239 = vrot.slane %v1089, 2
  %v1240 = vrot.slane %v1092, 2
  %v1241 = vrot.slane %v1097, 2
  %v1242 = vrot.slane %v1100, 2
  %v1243 = vrot.slane %v1105, 2
  %v1244 = vrot.slane %v1108, 2
  %v1245 = vrot.slane %v1113, 2
  %v1246 = vrot.slane %v1116, 2
  %v1247 = vrot.slane %v1121, 2
  %v1248 = vrot.slane %v1124, 2
  %v1249 = vrot.slane %v1129, 2
  %v1250 = vrot.slane %v1132, 2
  %v1251 = vrot.slane %v1137, 2
  %v1252 = vrot.slane %v1140, 2
  %v1253 = vrot.slane %v1145, 2
  %v1254 = vrot.slane %v1148, 2
  %v1255 = vrot.slane %v1153, 2
  %v1256 = vrot.slane %v1156, 2
  %v1257 = vrot.slane %v1161, 2
  %v1258 = vrot.slane %v1164, 2
  %v1259 = vrot.slane %v1169, 2
  %v1260 = vrot.slane %v1172, 2
  %v1261 = vrot.slane %v1177, 2
  %v1262 = vrot.slane %v1180, 2
  %v1263 = vrot.slane %v1185, 2
  %v1264 = vrot.slane %v1188, 2
  %v1265 = vrot.slane %v1193, 2
  %v1266 = vrot.slane %v1196, 2
  %v1267 = vrot.slane %v1201, 2
  %v1268 = vrot.slane %v1204, 2
  %v1269 = vrot.slane %v1209, 2
  %v1270 = vrot.slane %v1212, 2
  %vm1271 = vcmp.lt.s32.totalorder %v624, 6
  %v1272 = vsel %vm1271, %v1269, %v1270
  %v1273 = vsel %vm1271, %v1268, %v1269
  %v1274 = vsel %vm1271, %v1267, %v1268
  %v1275 = vsel %vm1271, %v1266, %v1267
  %v1276 = vsel %vm1271, %v1265, %v1266
  %v1277 = vsel %vm1271, %v1264, %v1265
  %v1278 = vsel %vm1271, %v1263, %v1264
  %v1279 = vsel %vm1271, %v1262, %v1263
  %v1280 = vsel %vm1271, %v1261, %v1262
  %v1281 = vsel %vm1271, %v1260, %v1261
  %v1282 = vsel %vm1271, %v1259, %v1260
  %v1283 = vsel %vm1271, %v1258, %v1259
  %v1284 = vsel %vm1271, %v1257, %v1258
  %v1285 = vsel %vm1271, %v1256, %v1257
  %v1286 = vsel %vm1271, %v1255, %v1256
  %v1287 = vsel %vm1271, %v1254, %v1255
  %v1288 = vsel %vm1271, %v1253, %v1254
  %v1289 = vsel %vm1271, %v1252, %v1253
  %v1290 = vsel %vm1271, %v1251, %v1252
  %v1291 = vsel %vm1271, %v1250, %v1251
  %v1292 = vsel %vm1271, %v1249, %v1250
  %v1293 = vsel %vm1271, %v1248, %v1249
  %v1294 = vsel %vm1271, %v1247, %v1248
  %v1295 = vsel %vm1271, %v1246, %v1247
  %v1296 = vsel %vm1271, %v1245, %v1246
  %v1297 = vsel %vm1271, %v1244, %v1245
  %v1298 = vsel %vm1271, %v1243, %v1244
  %v1299 = vsel %vm1271, %v1242, %v1243
  %v1300 = vsel %vm1271, %v1241, %v1242
  %v1301 = vsel %vm1271, %v1240, %v1241
  %v1302 = vsel %vm1271, %v1239, %v1240
  %v1303 = vsel %vm1271, %v1238, %v1239
  %v1304 = vsel %vm1271, %v1237, %v1238
  %v1305 = vsel %vm1271, %v1236, %v1237
  %v1306 = vsel %vm1271, %v1235, %v1236
  %v1307 = vsel %vm1271, %v1234, %v1235
  %v1308 = vsel %vm1271, %v1233, %v1234
  %v1309 = vsel %vm1271, %v1232, %v1233
  %v1310 = vsel %vm1271, %v1231, %v1232
  %v1311 = vsel %vm1271, %v1230, %v1231
  %v1312 = vsel %vm1271, %v1229, %v1230
  %v1313 = vsel %vm1271, %v1228, %v1229
  %v1314 = vsel %vm1271, %v1227, %v1228
  %v1315 = vsel %vm1271, %v1226, %v1227
  %v1316 = vsel %vm1271, %v1225, %v1226
  %v1317 = vsel %vm1271, %v1224, %v1225
  %v1318 = vsel %vm1271, %v1223, %v1224
  %v1319 = vsel %vm1271, %v1222, %v1223
  %v1320 = vsel %vm1271, %v1221, %v1222
  %v1321 = vsel %vm1271, %v1220, %v1221
  %v1322 = vsel %vm1271, %v1219, %v1220
  %v1323 = vsel %vm1271, %v1218, %v1219
  %v1324 = vsel %vm1271, %v1217, %v1218
  %v1325 = vsel %vm1271, %v1216, %v1217
  %v1326 = vsel %vm1271, %v1215, %v1216
  %v1327 = vsel %vm1271, %v1270, %v1215
  %v1328 = vadd.f32 %v725, %v1326
  %v1329 = vadd.f32 %v728, %v1325
  %v1330 = vadd.f32 %v733, %v1324
  %v1331 = vadd.f32 %v736, %v1323
  %v1332 = vadd.f32 %v741, %v1322
  %v1333 = vadd.f32 %v744, %v1321
  %v1334 = vadd.f32 %v749, %v1320
  %v1335 = vadd.f32 %v752, %v1319
  %v1336 = vadd.f32 %v757, %v1318
  %v1337 = vadd.f32 %v760, %v1317
  %v1338 = vadd.f32 %v765, %v1316
  %v1339 = vadd.f32 %v768, %v1315
  %v1340 = vadd.f32 %v773, %v1314
  %v1341 = vadd.f32 %v776, %v1313
  %v1342 = vadd.f32 %v781, %v1312
  %v1343 = vadd.f32 %v784, %v1311
  %v1344 = vadd.f32 %v789, %v1310
  %v1345 = vadd.f32 %v792, %v1309
  %v1346 = vadd.f32 %v797, %v1308
  %v1347 = vadd.f32 %v800, %v1307
  %v1348 = vadd.f32 %v805, %v1306
  %v1349 = vadd.f32 %v808, %v1305
  %v1350 = vadd.f32 %v813, %v1304
  %v1351 = vadd.f32 %v816, %v1303
  %v1352 = vadd.f32 %v821, %v1302
  %v1353 = vadd.f32 %v824, %v1301
  %v1354 = vadd.f32 %v829, %v1300
  %v1355 = vadd.f32 %v832, %v1299
  %v1356 = vadd.f32 %v837, %v1298
  %v1357 = vadd.f32 %v840, %v1297
  %v1358 = vadd.f32 %v845, %v1296
  %v1359 = vadd.f32 %v848, %v1295
  %v1360 = vadd.f32 %v853, %v1294
  %v1361 = vadd.f32 %v856, %v1293
  %v1362 = vadd.f32 %v861, %v1292
  %v1363 = vadd.f32 %v864, %v1291
  %v1364 = vadd.f32 %v869, %v1290
  %v1365 = vadd.f32 %v872, %v1289
  %v1366 = vadd.f32 %v877, %v1288
  %v1367 = vadd.f32 %v880, %v1287
  %v1368 = vadd.f32 %v885, %v1286
  %v1369 = vadd.f32 %v888, %v1285
  %v1370 = vadd.f32 %v893, %v1284
  %v1371 = vadd.f32 %v896, %v1283
  %v1372 = vadd.f32 %v901, %v1282
  %v1373 = vadd.f32 %v904, %v1281
  %v1374 = vadd.f32 %v909, %v1280
  %v1375 = vadd.f32 %v912, %v1279
  %v1376 = vadd.f32 %v917, %v1278
  %v1377 = vadd.f32 %v920, %v1277
  %v1378 = vadd.f32 %v925, %v1276
  %v1379 = vadd.f32 %v928, %v1275
  %v1380 = vadd.f32 %v933, %v1274
  %v1381 = vadd.f32 %v936, %v1273
  %v1382 = vadd.f32 %v941, %v1272
  %v1383 = vadd.f32 %v944, %v1327
  %v1384 = vld [vmem:[%s2] sm:$0x1]
  %v1386 = vlaneseq
  %v1387 = vshrl.u32 %v1386, 7
  %v1388 = vsub.s32 0, %v1387
  %v1389 = vrot.slane %v1384, %v1388
  %v1391 = vadd.f32 %v1328, %v1389
  %v1392 = vadd.f32 %v1329, %v1389
  %v1393 = vadd.f32 %v1330, %v1389
  %v1394 = vadd.f32 %v1331, %v1389
  %v1395 = vadd.f32 %v1332, %v1389
  %v1396 = vadd.f32 %v1333, %v1389
  %v1397 = vadd.f32 %v1334, %v1389
  %v1398 = vadd.f32 %v1335, %v1389
  %v1399 = vadd.f32 %v1336, %v1389
  %v1400 = vadd.f32 %v1337, %v1389
  %v1401 = vadd.f32 %v1338, %v1389
  %v1402 = vadd.f32 %v1339, %v1389
  %v1403 = vadd.f32 %v1340, %v1389
  %v1404 = vadd.f32 %v1341, %v1389
  %v1405 = vadd.f32 %v1342, %v1389
  %v1406 = vadd.f32 %v1343, %v1389
  %v1407 = vadd.f32 %v1344, %v1389
  %v1408 = vadd.f32 %v1345, %v1389
  %v1409 = vadd.f32 %v1346, %v1389
  %v1410 = vadd.f32 %v1347, %v1389
  %v1411 = vadd.f32 %v1348, %v1389
  %v1412 = vadd.f32 %v1349, %v1389
  %v1413 = vadd.f32 %v1350, %v1389
  %v1414 = vadd.f32 %v1351, %v1389
  %v1415 = vadd.f32 %v1352, %v1389
  %v1416 = vadd.f32 %v1353, %v1389
  %v1417 = vadd.f32 %v1354, %v1389
  %v1418 = vadd.f32 %v1355, %v1389
  %v1419 = vadd.f32 %v1356, %v1389
  %v1420 = vadd.f32 %v1357, %v1389
  %v1421 = vadd.f32 %v1358, %v1389
  %v1422 = vadd.f32 %v1359, %v1389
  %v1423 = vadd.f32 %v1360, %v1389
  %v1424 = vadd.f32 %v1361, %v1389
  %v1425 = vadd.f32 %v1362, %v1389
  %v1426 = vadd.f32 %v1363, %v1389
  %v1427 = vadd.f32 %v1364, %v1389
  %v1428 = vadd.f32 %v1365, %v1389
  %v1429 = vadd.f32 %v1366, %v1389
  %v1430 = vadd.f32 %v1367, %v1389
  %v1431 = vadd.f32 %v1368, %v1389
  %v1432 = vadd.f32 %v1369, %v1389
  %v1433 = vadd.f32 %v1370, %v1389
  %v1434 = vadd.f32 %v1371, %v1389
  %v1435 = vadd.f32 %v1372, %v1389
  %v1436 = vadd.f32 %v1373, %v1389
  %v1437 = vadd.f32 %v1374, %v1389
  %v1438 = vadd.f32 %v1375, %v1389
  %v1439 = vadd.f32 %v1376, %v1389
  %v1440 = vadd.f32 %v1377, %v1389
  %v1441 = vadd.f32 %v1378, %v1389
  %v1442 = vadd.f32 %v1379, %v1389
  %v1443 = vadd.f32 %v1380, %v1389
  %v1444 = vadd.f32 %v1381, %v1389
  %v1445 = vadd.f32 %v1382, %v1389
  %v1446 = vadd.f32 %v1383, %v1389
  %v1447 = vmax.f32 %v1391, 0.0
  %v1448 = vmax.f32 %v1392, 0.0
  %v1449 = vmax.f32 %v1393, 0.0
  %v1450 = vmax.f32 %v1394, 0.0
  %v1451 = vmax.f32 %v1395, 0.0
  %v1452 = vmax.f32 %v1396, 0.0
  %v1453 = vmax.f32 %v1397, 0.0
  %v1454 = vmax.f32 %v1398, 0.0
  %v1455 = vmax.f32 %v1399, 0.0
  %v1456 = vmax.f32 %v1400, 0.0
  %v1457 = vmax.f32 %v1401, 0.0
  %v1458 = vmax.f32 %v1402, 0.0
  %v1459 = vmax.f32 %v1403, 0.0
  %v1460 = vmax.f32 %v1404, 0.0
  %v1461 = vmax.f32 %v1405, 0.0
  %v1462 = vmax.f32 %v1406, 0.0
  %v1463 = vmax.f32 %v1407, 0.0
  %v1464 = vmax.f32 %v1408, 0.0
  %v1465 = vmax.f32 %v1409, 0.0
  %v1466 = vmax.f32 %v1410, 0.0
  %v1467 = vmax.f32 %v1411, 0.0
  %v1468 = vmax.f32 %v1412, 0.0
  %v1469 = vmax.f32 %v1413, 0.0
  %v1470 = vmax.f32 %v1414, 0.0
  %v1471 = vmax.f32 %v1415, 0.0
  %v1472 = vmax.f32 %v1416, 0.0
  %v1473 = vmax.f32 %v1417, 0.0
  %v1474 = vmax.f32 %v1418, 0.0
  %v1475 = vmax.f32 %v1419, 0.0
  %v1476 = vmax.f32 %v1420, 0.0
  %v1477 = vmax.f32 %v1421, 0.0
  %v1478 = vmax.f32 %v1422, 0.0
  %v1479 = vmax.f32 %v1423, 0.0
  %v1480 = vmax.f32 %v1424, 0.0
  %v1481 = vmax.f32 %v1425, 0.0
  %v1482 = vmax.f32 %v1426, 0.0
  %v1483 = vmax.f32 %v1427, 0.0
  %v1484 = vmax.f32 %v1428, 0.0
  %v1485 = vmax.f32 %v1429, 0.0
  %v1486 = vmax.f32 %v1430, 0.0
  %v1487 = vmax.f32 %v1431, 0.0
  %v1488 = vmax.f32 %v1432, 0.0
  %v1489 = vmax.f32 %v1433, 0.0
  %v1490 = vmax.f32 %v1434, 0.0
  %v1491 = vmax.f32 %v1435, 0.0
  %v1492 = vmax.f32 %v1436, 0.0
  %v1493 = vmax.f32 %v1437, 0.0
  %v1494 = vmax.f32 %v1438, 0.0
  %v1495 = vmax.f32 %v1439, 0.0
  %v1496 = vmax.f32 %v1440, 0.0
  %v1497 = vmax.f32 %v1441, 0.0
  %v1498 = vmax.f32 %v1442, 0.0
  %v1499 = vmax.f32 %v1443, 0.0
  %v1500 = vmax.f32 %v1444, 0.0
  %v1501 = vmax.f32 %v1445, 0.0
  %v1502 = vmax.f32 %v1446, 0.0
  %v1503 = vpack.c.bf16 %v1448, %v1447
  %v1504 = vpack.c.bf16 %v1450, %v1449
  %v1505 = vpack.c.bf16 %v1452, %v1451
  %v1506 = vpack.c.bf16 %v1454, %v1453
  %v1507 = vpack.c.bf16 %v1456, %v1455
  %v1508 = vpack.c.bf16 %v1458, %v1457
  %v1509 = vpack.c.bf16 %v1460, %v1459
  %v1510 = vpack.c.bf16 %v1462, %v1461
  %v1511 = vpack.c.bf16 %v1464, %v1463
  %v1512 = vpack.c.bf16 %v1466, %v1465
  %v1513 = vpack.c.bf16 %v1468, %v1467
  %v1514 = vpack.c.bf16 %v1470, %v1469
  %v1515 = vpack.c.bf16 %v1472, %v1471
  %v1516 = vpack.c.bf16 %v1474, %v1473
  %v1517 = vpack.c.bf16 %v1476, %v1475
  %v1518 = vpack.c.bf16 %v1478, %v1477
  %v1519 = vpack.c.bf16 %v1480, %v1479
  %v1520 = vpack.c.bf16 %v1482, %v1481
  %v1521 = vpack.c.bf16 %v1484, %v1483
  %v1522 = vpack.c.bf16 %v1486, %v1485
  %v1523 = vpack.c.bf16 %v1488, %v1487
  %v1524 = vpack.c.bf16 %v1490, %v1489
  %v1525 = vpack.c.bf16 %v1492, %v1491
  %v1526 = vpack.c.bf16 %v1494, %v1493
  %v1527 = vpack.c.bf16 %v1496, %v1495
  %v1528 = vpack.c.bf16 %v1498, %v1497
  %v1529 = vpack.c.bf16 %v1500, %v1499
  %v1530 = vpack.c.bf16 %v1502, %v1501
  %v1559 = vunpack.c.l.b16 %v1503
  %v1560 = vunpack.c.h.b16 %v1503
  %v1561 = vunpack.c.l.b16 %v1504
  %v1562 = vunpack.c.h.b16 %v1504
  %v1563 = vunpack.c.l.b16 %v1505
  %v1564 = vunpack.c.h.b16 %v1505
  %v1565 = vunpack.c.l.b16 %v1506
  %v1566 = vunpack.c.h.b16 %v1506
  %v1567 = vunpack.c.l.b16 %v1507
  %v1568 = vunpack.c.h.b16 %v1507
  %v1569 = vunpack.c.l.b16 %v1508
  %v1570 = vunpack.c.h.b16 %v1508
  %v1571 = vunpack.c.l.b16 %v1509
  %v1572 = vunpack.c.h.b16 %v1509
  %v1573 = vunpack.c.l.b16 %v1510
  %v1574 = vunpack.c.h.b16 %v1510
  %v1575 = vunpack.c.l.b16 %v1511
  %v1576 = vunpack.c.h.b16 %v1511
  %v1577 = vunpack.c.l.b16 %v1512
  %v1578 = vunpack.c.h.b16 %v1512
  %v1579 = vunpack.c.l.b16 %v1513
  %v1580 = vunpack.c.h.b16 %v1513
  %v1581 = vunpack.c.l.b16 %v1514
  %v1582 = vunpack.c.h.b16 %v1514
  %v1583 = vunpack.c.l.b16 %v1515
  %v1584 = vunpack.c.h.b16 %v1515
  %v1585 = vunpack.c.l.b16 %v1516
  %v1586 = vunpack.c.h.b16 %v1516
  %v1587 = vunpack.c.l.b16 %v1517
  %v1588 = vunpack.c.h.b16 %v1517
  %v1589 = vunpack.c.l.b16 %v1518
  %v1590 = vunpack.c.h.b16 %v1518
  %v1591 = vunpack.c.l.b16 %v1519
  %v1592 = vunpack.c.h.b16 %v1519
  %v1593 = vunpack.c.l.b16 %v1520
  %v1594 = vunpack.c.h.b16 %v1520
  %v1595 = vunpack.c.l.b16 %v1521
  %v1596 = vunpack.c.h.b16 %v1521
  %v1597 = vunpack.c.l.b16 %v1522
  %v1598 = vunpack.c.h.b16 %v1522
  %v1599 = vunpack.c.l.b16 %v1523
  %v1600 = vunpack.c.h.b16 %v1523
  %v1601 = vunpack.c.l.b16 %v1524
  %v1602 = vunpack.c.h.b16 %v1524
  %v1603 = vunpack.c.l.b16 %v1525
  %v1604 = vunpack.c.h.b16 %v1525
  %v1605 = vunpack.c.l.b16 %v1526
  %v1606 = vunpack.c.h.b16 %v1526
  %v1607 = vunpack.c.l.b16 %v1527
  %v1608 = vunpack.c.h.b16 %v1527
  %v1609 = vunpack.c.l.b16 %v1528
  %v1610 = vunpack.c.h.b16 %v1528
  %v1611 = vunpack.c.l.b16 %v1529
  %v1612 = vunpack.c.h.b16 %v1529
  %v1613 = vunpack.c.l.b16 %v1530
  %v1614 = vunpack.c.h.b16 %v1530
  %v1615 = vpack.c.b16 %v1559, %v1559
  %v1616 = vpack.c.b16 %v1560, %v1560
  %v1617 = vpack.c.b16 %v1561, %v1561
  %v1618 = vpack.c.b16 %v1562, %v1562
  %v1619 = vpack.c.b16 %v1563, %v1563
  %v1620 = vpack.c.b16 %v1564, %v1564
  %v1621 = vpack.c.b16 %v1565, %v1565
  %v1622 = vpack.c.b16 %v1566, %v1566
  %v1623 = vpack.c.b16 %v1567, %v1567
  %v1624 = vpack.c.b16 %v1568, %v1568
  %v1625 = vpack.c.b16 %v1569, %v1569
  %v1626 = vpack.c.b16 %v1570, %v1570
  %v1627 = vpack.c.b16 %v1571, %v1571
  %v1628 = vpack.c.b16 %v1572, %v1572
  %v1629 = vpack.c.b16 %v1573, %v1573
  %v1630 = vpack.c.b16 %v1574, %v1574
  %v1631 = vpack.c.b16 %v1575, %v1575
  %v1632 = vpack.c.b16 %v1576, %v1576
  %v1633 = vpack.c.b16 %v1577, %v1577
  %v1634 = vpack.c.b16 %v1578, %v1578
  %v1635 = vpack.c.b16 %v1579, %v1579
  %v1636 = vpack.c.b16 %v1580, %v1580
  %v1637 = vpack.c.b16 %v1581, %v1581
  %v1638 = vpack.c.b16 %v1582, %v1582
  %v1639 = vpack.c.b16 %v1583, %v1583
  %v1640 = vpack.c.b16 %v1584, %v1584
  %v1641 = vpack.c.b16 %v1585, %v1585
  %v1642 = vpack.c.b16 %v1586, %v1586
  %v1643 = vpack.c.b16 %v1587, %v1587
  %v1644 = vpack.c.b16 %v1588, %v1588
  %v1645 = vpack.c.b16 %v1589, %v1589
  %v1646 = vpack.c.b16 %v1590, %v1590
  %v1647 = vpack.c.b16 %v1591, %v1591
  %v1648 = vpack.c.b16 %v1592, %v1592
  %v1649 = vpack.c.b16 %v1593, %v1593
  %v1650 = vpack.c.b16 %v1594, %v1594
  %v1651 = vpack.c.b16 %v1595, %v1595
  %v1652 = vpack.c.b16 %v1596, %v1596
  %v1653 = vpack.c.b16 %v1597, %v1597
  %v1654 = vpack.c.b16 %v1598, %v1598
  %v1655 = vpack.c.b16 %v1599, %v1599
  %v1656 = vpack.c.b16 %v1600, %v1600
  %v1657 = vpack.c.b16 %v1601, %v1601
  %v1658 = vpack.c.b16 %v1602, %v1602
  %v1659 = vpack.c.b16 %v1603, %v1603
  %v1660 = vpack.c.b16 %v1604, %v1604
  %v1661 = vpack.c.b16 %v1605, %v1605
  %v1662 = vpack.c.b16 %v1606, %v1606
  %v1663 = vpack.c.b16 %v1607, %v1607
  %v1664 = vpack.c.b16 %v1608, %v1608
  %v1665 = vpack.c.b16 %v1609, %v1609
  %v1666 = vpack.c.b16 %v1610, %v1610
  %v1667 = vpack.c.b16 %v1611, %v1611
  %v1668 = vpack.c.b16 %v1612, %v1612
  %v1669 = vpack.c.b16 %v1613, %v1613
  %v1670 = vpack.c.b16 %v1614, %v1614
  %vm1727 = vcmask 519168
  %1728 = vst.msk [vmem:[%s3] sm:$0xf] %vm1727, %v1615
  %1729 = vst.msk [vmem:[%s3 + $0x4] sm:$0xf] %vm1727, %v1616
  %1730 = vst.msk [vmem:[%s3 + $0x8] sm:$0xf] %vm1727, %v1617
  %1731 = vst.msk [vmem:[%s3 + $0xc] sm:$0xf] %vm1727, %v1618
  %1732 = vst.msk [vmem:[%s3 + $0x10] sm:$0xf] %vm1727, %v1619
  %1733 = vst.msk [vmem:[%s3 + $0x14] sm:$0xf] %vm1727, %v1620
  %1734 = vst.msk [vmem:[%s3 + $0x18] sm:$0xf] %vm1727, %v1621
  %1735 = vst.msk [vmem:[%s3 + $0x1c] sm:$0xf] %vm1727, %v1622
  %1736 = vst.msk [vmem:[%s3 + $0x20] sm:$0xf] %vm1727, %v1623
  %1737 = vst.msk [vmem:[%s3 + $0x24] sm:$0xf] %vm1727, %v1624
  %1738 = vst.msk [vmem:[%s3 + $0x28] sm:$0xf] %vm1727, %v1625
  %1739 = vst.msk [vmem:[%s3 + $0x2c] sm:$0xf] %vm1727, %v1626
  %1740 = vst.msk [vmem:[%s3 + $0x30] sm:$0xf] %vm1727, %v1627
  %1741 = vst.msk [vmem:[%s3 + $0x34] sm:$0xf] %vm1727, %v1628
  %1742 = vst.msk [vmem:[%s3 + $0x38] sm:$0xf] %vm1727, %v1629
  %1743 = vst.msk [vmem:[%s3 + $0x3c] sm:$0xf] %vm1727, %v1630
  %1744 = vst.msk [vmem:[%s3 + $0x40] sm:$0xf] %vm1727, %v1631
  %1745 = vst.msk [vmem:[%s3 + $0x44] sm:$0xf] %vm1727, %v1632
  %1746 = vst.msk [vmem:[%s3 + $0x48] sm:$0xf] %vm1727, %v1633
  %1747 = vst.msk [vmem:[%s3 + $0x4c] sm:$0xf] %vm1727, %v1634
  %1748 = vst.msk [vmem:[%s3 + $0x50] sm:$0xf] %vm1727, %v1635
  %1749 = vst.msk [vmem:[%s3 + $0x54] sm:$0xf] %vm1727, %v1636
  %1750 = vst.msk [vmem:[%s3 + $0x58] sm:$0xf] %vm1727, %v1637
  %1751 = vst.msk [vmem:[%s3 + $0x5c] sm:$0xf] %vm1727, %v1638
  %1752 = vst.msk [vmem:[%s3 + $0x60] sm:$0xf] %vm1727, %v1639
  %1753 = vst.msk [vmem:[%s3 + $0x64] sm:$0xf] %vm1727, %v1640
  %1754 = vst.msk [vmem:[%s3 + $0x68] sm:$0xf] %vm1727, %v1641
  %1755 = vst.msk [vmem:[%s3 + $0x6c] sm:$0xf] %vm1727, %v1642
  %1756 = vst.msk [vmem:[%s3 + $0x70] sm:$0xf] %vm1727, %v1643
  %1757 = vst.msk [vmem:[%s3 + $0x74] sm:$0xf] %vm1727, %v1644
  %1758 = vst.msk [vmem:[%s3 + $0x78] sm:$0xf] %vm1727, %v1645
  %1759 = vst.msk [vmem:[%s3 + $0x7c] sm:$0xf] %vm1727, %v1646
  %1760 = vst.msk [vmem:[%s3 + $0x80] sm:$0xf] %vm1727, %v1647
  %1761 = vst.msk [vmem:[%s3 + $0x84] sm:$0xf] %vm1727, %v1648
  %1762 = vst.msk [vmem:[%s3 + $0x88] sm:$0xf] %vm1727, %v1649
  %1763 = vst.msk [vmem:[%s3 + $0x8c] sm:$0xf] %vm1727, %v1650
  %1764 = vst.msk [vmem:[%s3 + $0x90] sm:$0xf] %vm1727, %v1651
  %1765 = vst.msk [vmem:[%s3 + $0x94] sm:$0xf] %vm1727, %v1652
  %1766 = vst.msk [vmem:[%s3 + $0x98] sm:$0xf] %vm1727, %v1653
  %1767 = vst.msk [vmem:[%s3 + $0x9c] sm:$0xf] %vm1727, %v1654
  %1768 = vst.msk [vmem:[%s3 + $0xa0] sm:$0xf] %vm1727, %v1655
  %1769 = vst.msk [vmem:[%s3 + $0xa4] sm:$0xf] %vm1727, %v1656
  %1770 = vst.msk [vmem:[%s3 + $0xa8] sm:$0xf] %vm1727, %v1657
  %1771 = vst.msk [vmem:[%s3 + $0xac] sm:$0xf] %vm1727, %v1658
  %1772 = vst.msk [vmem:[%s3 + $0xb0] sm:$0xf] %vm1727, %v1659
  %1773 = vst.msk [vmem:[%s3 + $0xb4] sm:$0xf] %vm1727, %v1660
  %1774 = vst.msk [vmem:[%s3 + $0xb8] sm:$0xf] %vm1727, %v1661
  %1775 = vst.msk [vmem:[%s3 + $0xbc] sm:$0xf] %vm1727, %v1662
  %1776 = vst.msk [vmem:[%s3 + $0xc0] sm:$0xf] %vm1727, %v1663
  %1777 = vst.msk [vmem:[%s3 + $0xc4] sm:$0xf] %vm1727, %v1664
  %1778 = vst.msk [vmem:[%s3 + $0xc8] sm:$0xf] %vm1727, %v1665
  %1779 = vst.msk [vmem:[%s3 + $0xcc] sm:$0xf] %vm1727, %v1666
  %1780 = vst.msk [vmem:[%s3 + $0xd0] sm:$0xf] %vm1727, %v1667
  %1781 = vst.msk [vmem:[%s3 + $0xd4] sm:$0xf] %vm1727, %v1668
  %1782 = vst.msk [vmem:[%s3 + $0xd8] sm:$0xf] %vm1727, %v1669
  %1783 = vst.msk [vmem:[%s3 + $0xdc] sm:$0xf] %vm1727, %v1670
  // Predicated region
  $region14: #{unet_dec_forward.3} parent=0 // pred_check
    _
  $region15: #{unet_dec_forward.3} parent=0 // pred_check_branch
    %1785 = sbr.rel (0) target = $region17
  $region16: #{unet_dec_forward.3} parent=0 // pred_region
    _
  $region17: #{unet_dec_forward.3} parent=0 // pred_fallthru
    _
  // Predicated region
  $region18: #{unet_dec_forward.3} parent=0 // pred_check
    _
  $region19: #{unet_dec_forward.3} parent=0 // pred_check_branch
    %1787 = sbr.rel (0) target = $region21
  $region20: #{unet_dec_forward.3} parent=0 // pred_region
    _
  $region21: #{unet_dec_forward.3} parent=0 // pred_fallthru
    _

// kernel: unet_dec_forward.5
$region0: #{unet_dec_forward.5}
  #allocation0 [shape = 'u32[]', space=smem, size = 0x4, offset = 0x4, fixed_abs, tag = 'smem constant byte address 0x4 - core index']
  #allocation1 [shape = 'u32[144,128]{1,0:T(1,128)}', space=vmem, size = 0x12000, scoped, tag = 'internal scratch']
  %s0 = inlined_call_operand.vmem [shape: bf16[12,2,12,64], index: 0, kind: input, shape index: {}]
  %s1 = inlined_call_operand.vmem [shape: f32[12,12,64], index: 1, kind: output, shape index: {}]
  %s2 = sld [smem:[#allocation0]]
  $region14: #{unet_dec_forward.5} parent=0
    _
  %s4 = ssub.s32 1, %s2
  %s5 = scalar_select 0, %s4, %s2
  // Predicated region
  $region2: #{unet_dec_forward.5} parent=0 // pred_check
    _
  $region3: #{unet_dec_forward.5} parent=0 // pred_check_branch
    %7 = sbr.rel (0) target = $region5
  $region4: #{unet_dec_forward.5} parent=0 // pred_region
    _
  $region5: #{unet_dec_forward.5} parent=0 // pred_fallthru
    _
  %v8 = vld [vmem:[%s0] sm:$0xf]
  %v9 = vld [vmem:[%s0 + $0x4] sm:$0x3]
  %v10 = vld [vmem:[%s0 + $0x8] sm:$0xf]
  %v11 = vld [vmem:[%s0 + $0xc] sm:$0x3]
  %v12 = vld [vmem:[%s0 + $0x10] sm:$0xf]
  %v13 = vld [vmem:[%s0 + $0x14] sm:$0x3]
  %v14 = vld [vmem:[%s0 + $0x18] sm:$0xf]
  %v15 = vld [vmem:[%s0 + $0x1c] sm:$0x3]
  %v16 = vld [vmem:[%s0 + $0x20] sm:$0xf]
  %v17 = vld [vmem:[%s0 + $0x24] sm:$0x3]
  %v18 = vld [vmem:[%s0 + $0x28] sm:$0xf]
  %v19 = vld [vmem:[%s0 + $0x2c] sm:$0x3]
  %v20 = vld [vmem:[%s0 + $0x30] sm:$0xf]
  %v21 = vld [vmem:[%s0 + $0x34] sm:$0x3]
  %v22 = vld [vmem:[%s0 + $0x38] sm:$0xf]
  %v23 = vld [vmem:[%s0 + $0x3c] sm:$0x3]
  %v24 = vld [vmem:[%s0 + $0x40] sm:$0xf]
  %v25 = vld [vmem:[%s0 + $0x44] sm:$0x3]
  %v26 = vld [vmem:[%s0 + $0x48] sm:$0xf]
  %v27 = vld [vmem:[%s0 + $0x4c] sm:$0x3]
  %v28 = vld [vmem:[%s0 + $0x50] sm:$0xf]
  %v29 = vld [vmem:[%s0 + $0x54] sm:$0x3]
  %v30 = vld [vmem:[%s0 + $0x58] sm:$0xf]
  %v31 = vld [vmem:[%s0 + $0x5c] sm:$0x3]
  %v32 = vld [vmem:[%s0 + $0x60] sm:$0xf]
  %v33 = vld [vmem:[%s0 + $0x64] sm:$0x3]
  %v34 = vld [vmem:[%s0 + $0x68] sm:$0xf]
  %v35 = vld [vmem:[%s0 + $0x6c] sm:$0x3]
  %v36 = vld [vmem:[%s0 + $0x70] sm:$0xf]
  %v37 = vld [vmem:[%s0 + $0x74] sm:$0x3]
  %v38 = vld [vmem:[%s0 + $0x78] sm:$0xf]
  %v39 = vld [vmem:[%s0 + $0x7c] sm:$0x3]
  %v40 = vld [vmem:[%s0 + $0x80] sm:$0xf]
  %v41 = vld [vmem:[%s0 + $0x84] sm:$0x3]
  %v42 = vld [vmem:[%s0 + $0x88] sm:$0xf]
  %v43 = vld [vmem:[%s0 + $0x8c] sm:$0x3]
  %v44 = vld [vmem:[%s0 + $0x90] sm:$0xf]
  %v45 = vld [vmem:[%s0 + $0x94] sm:$0x3]
  %v46 = vld [vmem:[%s0 + $0x98] sm:$0xf]
  %v47 = vld [vmem:[%s0 + $0x9c] sm:$0x3]
  %v48 = vld [vmem:[%s0 + $0xa0] sm:$0xf]
  %v49 = vld [vmem:[%s0 + $0xa4] sm:$0x3]
  %v50 = vld [vmem:[%s0 + $0xa8] sm:$0xf]
  %v51 = vld [vmem:[%s0 + $0xac] sm:$0x3]
  %v52 = vld [vmem:[%s0 + $0xb0] sm:$0xf]
  %v53 = vld [vmem:[%s0 + $0xb4] sm:$0x3]
  %v54 = vld [vmem:[%s0 + $0xb8] sm:$0xf]
  %v55 = vld [vmem:[%s0 + $0xbc] sm:$0x3]
  %v56 = vunpack.c.l.bf16 %v8
  %v57 = vunpack.c.l.bf16 %v9
  %v58 = vunpack.c.l.bf16 %v10
  %v59 = vunpack.c.l.bf16 %v11
  %v60 = vunpack.c.l.bf16 %v12
  %v61 = vunpack.c.l.bf16 %v13
  %v62 = vunpack.c.l.bf16 %v14
  %v63 = vunpack.c.l.bf16 %v15
  %v64 = vunpack.c.l.bf16 %v16
  %v65 = vunpack.c.l.bf16 %v17
  %v66 = vunpack.c.l.bf16 %v18
  %v67 = vunpack.c.l.bf16 %v19
  %v68 = vunpack.c.l.bf16 %v20
  %v69 = vunpack.c.l.bf16 %v21
  %v70 = vunpack.c.l.bf16 %v22
  %v71 = vunpack.c.l.bf16 %v23
  %v72 = vunpack.c.l.bf16 %v24
  %v73 = vunpack.c.l.bf16 %v25
  %v74 = vunpack.c.l.bf16 %v26
  %v75 = vunpack.c.l.bf16 %v27
  %v76 = vunpack.c.l.bf16 %v28
  %v77 = vunpack.c.l.bf16 %v29
  %v78 = vunpack.c.l.bf16 %v30
  %v79 = vunpack.c.l.bf16 %v31
  %v80 = vunpack.c.l.bf16 %v32
  %v81 = vunpack.c.l.bf16 %v33
  %v82 = vunpack.c.l.bf16 %v34
  %v83 = vunpack.c.l.bf16 %v35
  %v84 = vunpack.c.l.bf16 %v36
  %v85 = vunpack.c.l.bf16 %v37
  %v86 = vunpack.c.l.bf16 %v38
  %v87 = vunpack.c.l.bf16 %v39
  %v88 = vunpack.c.l.bf16 %v40
  %v89 = vunpack.c.l.bf16 %v41
  %v90 = vunpack.c.l.bf16 %v42
  %v91 = vunpack.c.l.bf16 %v43
  %v92 = vunpack.c.l.bf16 %v44
  %v93 = vunpack.c.l.bf16 %v45
  %v94 = vunpack.c.l.bf16 %v46
  %v95 = vunpack.c.l.bf16 %v47
  %v96 = vunpack.c.l.bf16 %v48
  %v97 = vunpack.c.l.bf16 %v49
  %v98 = vunpack.c.l.bf16 %v50
  %v99 = vunpack.c.l.bf16 %v51
  %v100 = vunpack.c.l.bf16 %v52
  %v101 = vunpack.c.l.bf16 %v53
  %v102 = vunpack.c.l.bf16 %v54
  %v103 = vunpack.c.l.bf16 %v55
  %v104 = vmax.f32 %v56, %v58
  %v105 = vmax.f32 %v57, %v59
  %v106 = vmax.f32 %v60, %v62
  %v107 = vmax.f32 %v61, %v63
  %v108 = vmax.f32 %v64, %v66
  %v109 = vmax.f32 %v65, %v67
  %v110 = vmax.f32 %v68, %v70
  %v111 = vmax.f32 %v69, %v71
  %v112 = vmax.f32 %v72, %v74
  %v113 = vmax.f32 %v73, %v75
  %v114 = vmax.f32 %v76, %v78
  %v115 = vmax.f32 %v77, %v79
  %v116 = vmax.f32 %v80, %v82
  %v117 = vmax.f32 %v81, %v83
  %v118 = vmax.f32 %v84, %v86
  %v119 = vmax.f32 %v85, %v87
  %v120 = vmax.f32 %v88, %v90
  %v121 = vmax.f32 %v89, %v91
  %v122 = vmax.f32 %v92, %v94
  %v123 = vmax.f32 %v93, %v95
  %v124 = vmax.f32 %v96, %v98
  %v125 = vmax.f32 %v97, %v99
  %v126 = vmax.f32 %v100, %v102
  %v127 = vmax.f32 %v101, %v103
  %vm128 = vcmask 1047556
  %v129 = vrot.slane %v104, 4
  %v130 = vrot.slane %v106, 4
  %v131 = vrot.slane %v108, 4
  %v132 = vrot.slane %v110, 4
  %v133 = vrot.slane %v112, 4
  %v134 = vrot.slane %v114, 4
  %v135 = vrot.slane %v116, 4
  %v136 = vrot.slane %v118, 4
  %v137 = vrot.slane %v120, 4
  %v138 = vrot.slane %v122, 4
  %v139 = vrot.slane %v124, 4
  %v140 = vrot.slane %v126, 4
  %v141 = vsel %vm128, %v129, %v105
  %v142 = vsel %vm128, %v130, %v107
  %v143 = vsel %vm128, %v131, %v109
  %v144 = vsel %vm128, %v132, %v111
  %v145 = vsel %vm128, %v133, %v113
  %v146 = vsel %vm128, %v134, %v115
  %v147 = vsel %vm128, %v135, %v117
  %v148 = vsel %vm128, %v136, %v119
  %v149 = vsel %vm128, %v137, %v121
  %v150 = vsel %vm128, %v138, %v123
  %v151 = vsel %vm128, %v139, %v125
  %v152 = vsel %vm128, %v140, %v127
  %vm177 = vcmask 1046528
  %v178 = vrot.slane %v104, 1
  %v179 = vrot.slane %v141, 1
  %v180 = vsel %vm177, %v178, %v179
  %v181 = vrot.slane %v106, 1
  %v182 = vrot.slane %v142, 1
  %v183 = vsel %vm177, %v181, %v182
  %v184 = vrot.slane %v108, 1
  %v185 = vrot.slane %v143, 1
  %v186 = vsel %vm177, %v184, %v185
  %v187 = vrot.slane %v110, 1
  %v188 = vrot.slane %v144, 1
  %v189 = vsel %vm177, %v187, %v188
  %v190 = vrot.slane %v112, 1
  %v191 = vrot.slane %v145, 1
  %v192 = vsel %vm177, %v190, %v191
  %v193 = vrot.slane %v114, 1
  %v194 = vrot.slane %v146, 1
  %v195 = vsel %vm177, %v193, %v194
  %v196 = vrot.slane %v116, 1
  %v197 = vrot.slane %v147, 1
  %v198 = vsel %vm177, %v196, %v197
  %v199 = vrot.slane %v118, 1
  %v200 = vrot.slane %v148, 1
  %v201 = vsel %vm177, %v199, %v200
  %v202 = vrot.slane %v120, 1
  %v203 = vrot.slane %v149, 1
  %v204 = vsel %vm177, %v202, %v203
  %v205 = vrot.slane %v122, 1
  %v206 = vrot.slane %v150, 1
  %v207 = vsel %vm177, %v205, %v206
  %v208 = vrot.slane %v124, 1
  %v209 = vrot.slane %v151, 1
  %v210 = vsel %vm177, %v208, %v209
  %v211 = vrot.slane %v126, 1
  %v212 = vrot.slane %v152, 1
  %v213 = vsel %vm177, %v211, %v212
  %v238 = vmax.f32 %v104, %v180
  %v239 = vmax.f32 %v105, %v179
  %v240 = vmax.f32 %v106, %v183
  %v241 = vmax.f32 %v107, %v182
  %v242 = vmax.f32 %v108, %v186
  %v243 = vmax.f32 %v109, %v185
  %v244 = vmax.f32 %v110, %v189
  %v245 = vmax.f32 %v111, %v188
  %v246 = vmax.f32 %v112, %v192
  %v247 = vmax.f32 %v113, %v191
  %v248 = vmax.f32 %v114, %v195
  %v249 = vmax.f32 %v115, %v194
  %v250 = vmax.f32 %v116, %v198
  %v251 = vmax.f32 %v117, %v197
  %v252 = vmax.f32 %v118, %v201
  %v253 = vmax.f32 %v119, %v200
  %v254 = vmax.f32 %v120, %v204
  %v255 = vmax.f32 %v121, %v203
  %v256 = vmax.f32 %v122, %v207
  %v257 = vmax.f32 %v123, %v206
  %v258 = vmax.f32 %v124, %v210
  %v259 = vmax.f32 %v125, %v209
  %v260 = vmax.f32 %v126, %v213
  %v261 = vmax.f32 %v127, %v212
  %vm262 = vcmask 523264
  %263 = vst.msk [vmem:[%s1] sm:$0xff] %vm262, %v238
  %vm264 = vcmask 519168
  %265 = vst.msk [vmem:[%s1 + $0x8] sm:$0xf] %vm264, %v239
  %266 = vst.msk [vmem:[%s1 + $0x10] sm:$0xff] %vm262, %v240
  %267 = vst.msk [vmem:[%s1 + $0x18] sm:$0xf] %vm264, %v241
  %268 = vst.msk [vmem:[%s1 + $0x20] sm:$0xff] %vm262, %v242
  %269 = vst.msk [vmem:[%s1 + $0x28] sm:$0xf] %vm264, %v243
  %270 = vst.msk [vmem:[%s1 + $0x30] sm:$0xff] %vm262, %v244
  %271 = vst.msk [vmem:[%s1 + $0x38] sm:$0xf] %vm264, %v245
  %272 = vst.msk [vmem:[%s1 + $0x40] sm:$0xff] %vm262, %v246
  %273 = vst.msk [vmem:[%s1 + $0x48] sm:$0xf] %vm264, %v247
  %274 = vst.msk [vmem:[%s1 + $0x50] sm:$0xff] %vm262, %v248
  %275 = vst.msk [vmem:[%s1 + $0x58] sm:$0xf] %vm264, %v249
  %276 = vst.msk [vmem:[%s1 + $0x60] sm:$0xff] %vm262, %v250
  %277 = vst.msk [vmem:[%s1 + $0x68] sm:$0xf] %vm264, %v251
  %278 = vst.msk [vmem:[%s1 + $0x70] sm:$0xff] %vm262, %v252
  %279 = vst.msk [vmem:[%s1 + $0x78] sm:$0xf] %vm264, %v253
  %280 = vst.msk [vmem:[%s1 + $0x80] sm:$0xff] %vm262, %v254
  %281 = vst.msk [vmem:[%s1 + $0x88] sm:$0xf] %vm264, %v255
  %282 = vst.msk [vmem:[%s1 + $0x90] sm:$0xff] %vm262, %v256
  %283 = vst.msk [vmem:[%s1 + $0x98] sm:$0xf] %vm264, %v257
  %284 = vst.msk [vmem:[%s1 + $0xa0] sm:$0xff] %vm262, %v258
  %285 = vst.msk [vmem:[%s1 + $0xa8] sm:$0xf] %vm264, %v259
  %286 = vst.msk [vmem:[%s1 + $0xb0] sm:$0xff] %vm262, %v260
  %287 = vst.msk [vmem:[%s1 + $0xb8] sm:$0xf] %vm264, %v261
  // Predicated region
  $region6: #{unet_dec_forward.5} parent=0 // pred_check
    _
  $region7: #{unet_dec_forward.5} parent=0 // pred_check_branch
    %289 = sbr.rel (0) target = $region9
  $region8: #{unet_dec_forward.5} parent=0 // pred_region
    _
  $region9: #{unet_dec_forward.5} parent=0 // pred_fallthru
    _
  // Predicated region
  $region10: #{unet_dec_forward.5} parent=0 // pred_check
    _
  $region11: #{unet_dec_forward.5} parent=0 // pred_check_branch
    %291 = sbr.rel (0) target = $region13
  $region12: #{unet_dec_forward.5} parent=0 // pred_region
    _
  $region13: #{unet_dec_forward.5} parent=0 // pred_fallthru
    _

// kernel: unet_dec_forward.4
$region0: #{unet_dec_forward.4}
  #allocation0 [shape = 'u32[]', space=smem, size = 0x4, offset = 0x4, fixed_abs, tag = 'smem constant byte address 0x4 - core index']
  #allocation1 [shape = 'u32[144,128]{1,0:T(1,128)}', space=vmem, size = 0x12000, scoped, tag = 'internal scratch']
  %s0 = inlined_call_operand.vmem [shape: bf16[336,192], index: 0, kind: input, shape index: {}]
  %s1 = inlined_call_operand.vmem [shape: bf16[3,192,64], index: 1, kind: input, shape index: {}]
  %s2 = inlined_call_operand.vmem [shape: f32[1,64], index: 2, kind: input, shape index: {}]
  %s3 = inlined_call_operand.vmem [shape: bf16[336,64], index: 3, kind: output, shape index: {}]
  %s4 = sld [smem:[#allocation0]]
  $region22: #{unet_dec_forward.4} parent=0
    _
  %s6 = ssub.s32 1, %s4
  %s7 = scalar_select 0, %s6, %s4
  // Predicated region
  $region2: #{unet_dec_forward.4} parent=0 // pred_check
    _
  $region3: #{unet_dec_forward.4} parent=0 // pred_check_branch
    %9 = sbr.rel (0) target = $region5
  $region4: #{unet_dec_forward.4} parent=0 // pred_region
    _
  $region5: #{unet_dec_forward.4} parent=0 // pred_fallthru
    _
  // Predicated region
  $region6: #{unet_dec_forward.4} parent=0 // pred_check
    _
  $region7: #{unet_dec_forward.4} parent=0 // pred_check_branch
    %11 = sbr.rel (0) target = $region9
  $region8: #{unet_dec_forward.4} parent=0 // pred_region
    _
  $region9: #{unet_dec_forward.4} parent=0 // pred_fallthru
    _
  // Predicated region
  $region10: #{unet_dec_forward.4} parent=0 // pred_check
    _
  $region11: #{unet_dec_forward.4} parent=0 // pred_check_branch
    %13 = sbr.rel (0) target = $region13
  $region12: #{unet_dec_forward.4} parent=0 // pred_region
    _
  $region13: #{unet_dec_forward.4} parent=0 // pred_fallthru
    _
  %v15 = vld [vmem:[%s0] sm:$0xff]
  %v16 = vld [vmem:[%s0 + $0x8] sm:$0xff]
  %v17 = vld [vmem:[%s0 + $0x10] sm:$0xff]
  %v18 = vld [vmem:[%s0 + $0x18] sm:$0xff]
  %v19 = vld [vmem:[%s0 + $0x20] sm:$0xff]
  %v20 = vld [vmem:[%s0 + $0x28] sm:$0xff]
  %v21 = vld [vmem:[%s0 + $0x30] sm:$0xff]
  %v22 = vld [vmem:[%s0 + $0x38] sm:$0xff]
  %v23 = vld [vmem:[%s0 + $0x40] sm:$0xff]
  %v24 = vld [vmem:[%s0 + $0x48] sm:$0xff]
  %v25 = vld [vmem:[%s0 + $0x50] sm:$0xff]
  %v26 = vld [vmem:[%s0 + $0x58] sm:$0xff]
  %v27 = vld [vmem:[%s0 + $0x60] sm:$0xff]
  %v28 = vld [vmem:[%s0 + $0x68] sm:$0xff]
  %v29 = vld [vmem:[%s0 + $0x70] sm:$0xff]
  %v30 = vld [vmem:[%s0 + $0x78] sm:$0xff]
  %v31 = vld [vmem:[%s0 + $0x80] sm:$0xff]
  %v32 = vld [vmem:[%s0 + $0x88] sm:$0xff]
  %v33 = vld [vmem:[%s0 + $0x90] sm:$0xff]
  %v34 = vld [vmem:[%s0 + $0x98] sm:$0xff]
  %v35 = vld [vmem:[%s0 + $0xa0] sm:$0xff]
  %v36 = vld [vmem:[%s0 + $0xa8] sm:$0xff]
  %v37 = vld [vmem:[%s0 + $0xb0] sm:$0xff]
  %v38 = vld [vmem:[%s0 + $0xb8] sm:$0xff]
  %v39 = vld [vmem:[%s0 + $0xc0] sm:$0xff]
  %v40 = vld [vmem:[%s0 + $0xc8] sm:$0xff]
  %v41 = vld [vmem:[%s0 + $0xd0] sm:$0xff]
  %v42 = vld [vmem:[%s0 + $0xd8] sm:$0xff]
  %v43 = vld [vmem:[%s0 + $0xe0] sm:$0xff]
  %v44 = vld [vmem:[%s0 + $0xe8] sm:$0xff]
  %v45 = vld [vmem:[%s0 + $0xf0] sm:$0xff]
  %v46 = vld [vmem:[%s0 + $0xf8] sm:$0xff]
  %v47 = vld [vmem:[%s0 + $0x100] sm:$0xff]
  %v48 = vld [vmem:[%s0 + $0x108] sm:$0xff]
  %v49 = vld [vmem:[%s0 + $0x110] sm:$0xff]
  %v50 = vld [vmem:[%s0 + $0x118] sm:$0xff]
  %v51 = vld [vmem:[%s0 + $0x120] sm:$0xff]
  %v52 = vld [vmem:[%s0 + $0x128] sm:$0xff]
  %v53 = vld [vmem:[%s0 + $0x130] sm:$0xff]
  %v54 = vld [vmem:[%s0 + $0x138] sm:$0xff]
  %v55 = vld [vmem:[%s0 + $0x140] sm:$0xff]
  %v56 = vld [vmem:[%s0 + $0x148] sm:$0xff]
  %v57 = vld [vmem:[%s1] sm:$0xf]
  %v58 = vld [vmem:[%s1 + $0x4] sm:$0xf]
  %v59 = vld [vmem:[%s1 + $0x8] sm:$0xf]
  %v60 = vld [vmem:[%s1 + $0xc] sm:$0xf]
  %v61 = vld [vmem:[%s1 + $0x10] sm:$0xf]
  %v62 = vld [vmem:[%s1 + $0x14] sm:$0xf]
  %v63 = vld [vmem:[%s1 + $0x18] sm:$0xf]
  %v64 = vld [vmem:[%s1 + $0x1c] sm:$0xf]
  %v65 = vld [vmem:[%s1 + $0x20] sm:$0xf]
  %v66 = vld [vmem:[%s1 + $0x24] sm:$0xf]
  %v67 = vld [vmem:[%s1 + $0x28] sm:$0xf]
  %v68 = vld [vmem:[%s1 + $0x2c] sm:$0xf]
  %v69 = vld [vmem:[%s1 + $0x30] sm:$0xf]
  %v70 = vld [vmem:[%s1 + $0x34] sm:$0xf]
  %v71 = vld [vmem:[%s1 + $0x38] sm:$0xf]
  %v72 = vld [vmem:[%s1 + $0x3c] sm:$0xf]
  %v73 = vld [vmem:[%s1 + $0x40] sm:$0xf]
  %v74 = vld [vmem:[%s1 + $0x44] sm:$0xf]
  %v75 = vld [vmem:[%s1 + $0x48] sm:$0xf]
  %v76 = vld [vmem:[%s1 + $0x4c] sm:$0xf]
  %v77 = vld [vmem:[%s1 + $0x50] sm:$0xf]
  %v78 = vld [vmem:[%s1 + $0x54] sm:$0xf]
  %v79 = vld [vmem:[%s1 + $0x58] sm:$0xf]
  %v80 = vld [vmem:[%s1 + $0x5c] sm:$0xf]
  %s81 = scalar_lea.vmem %s1, 96
  %v82 = vld [vmem:[%s81] sm:$0xf]
  %v83 = vld [vmem:[%s81 + $0x4] sm:$0xf]
  %v84 = vld [vmem:[%s81 + $0x8] sm:$0xf]
  %v85 = vld [vmem:[%s81 + $0xc] sm:$0xf]
  %v86 = vld [vmem:[%s81 + $0x10] sm:$0xf]
  %v87 = vld [vmem:[%s81 + $0x14] sm:$0xf]
  %v88 = vld [vmem:[%s81 + $0x18] sm:$0xf]
  %v89 = vld [vmem:[%s81 + $0x1c] sm:$0xf]
  %v90 = vld [vmem:[%s81 + $0x20] sm:$0xf]
  %v91 = vld [vmem:[%s81 + $0x24] sm:$0xf]
  %v92 = vld [vmem:[%s81 + $0x28] sm:$0xf]
  %v93 = vld [vmem:[%s81 + $0x2c] sm:$0xf]
  %v94 = vld [vmem:[%s81 + $0x30] sm:$0xf]
  %v95 = vld [vmem:[%s81 + $0x34] sm:$0xf]
  %v96 = vld [vmem:[%s81 + $0x38] sm:$0xf]
  %v97 = vld [vmem:[%s81 + $0x3c] sm:$0xf]
  %v98 = vld [vmem:[%s81 + $0x40] sm:$0xf]
  %v99 = vld [vmem:[%s81 + $0x44] sm:$0xf]
  %v100 = vld [vmem:[%s81 + $0x48] sm:$0xf]
  %v101 = vld [vmem:[%s81 + $0x4c] sm:$0xf]
  %v102 = vld [vmem:[%s81 + $0x50] sm:$0xf]
  %v103 = vld [vmem:[%s81 + $0x54] sm:$0xf]
  %v104 = vld [vmem:[%s81 + $0x58] sm:$0xf]
  %v105 = vld [vmem:[%s81 + $0x5c] sm:$0xf]
  %v148 = vunpack.c.l.b16 %v15
  %v149 = vunpack.c.h.b16 %v15
  %v150 = vunpack.c.l.b16 %v16
  %v151 = vunpack.c.h.b16 %v16
  %v152 = vunpack.c.l.b16 %v17
  %v153 = vunpack.c.h.b16 %v17
  %v154 = vunpack.c.l.b16 %v18
  %v155 = vunpack.c.h.b16 %v18
  %v156 = vunpack.c.l.b16 %v19
  %v157 = vunpack.c.h.b16 %v19
  %v158 = vunpack.c.l.b16 %v20
  %v159 = vunpack.c.h.b16 %v20
  %v160 = vunpack.c.l.b16 %v21
  %v161 = vunpack.c.h.b16 %v21
  %v162 = vunpack.c.l.b16 %v22
  %v163 = vunpack.c.h.b16 %v22
  %v164 = vunpack.c.l.b16 %v23
  %v165 = vunpack.c.h.b16 %v23
  %v166 = vunpack.c.l.b16 %v24
  %v167 = vunpack.c.h.b16 %v24
  %v168 = vunpack.c.l.b16 %v25
  %v169 = vunpack.c.h.b16 %v25
  %v170 = vunpack.c.l.b16 %v26
  %v171 = vunpack.c.h.b16 %v26
  %v172 = vunpack.c.l.b16 %v27
  %v173 = vunpack.c.h.b16 %v27
  %v174 = vunpack.c.l.b16 %v28
  %v175 = vunpack.c.h.b16 %v28
  %v176 = vunpack.c.l.b16 %v29
  %v177 = vunpack.c.h.b16 %v29
  %v178 = vunpack.c.l.b16 %v30
  %v179 = vunpack.c.h.b16 %v30
  %v180 = vunpack.c.l.b16 %v31
  %v181 = vunpack.c.h.b16 %v31
  %v182 = vunpack.c.l.b16 %v32
  %v183 = vunpack.c.h.b16 %v32
  %v184 = vunpack.c.l.b16 %v33
  %v185 = vunpack.c.h.b16 %v33
  %v186 = vunpack.c.l.b16 %v34
  %v187 = vunpack.c.h.b16 %v34
  %v188 = vunpack.c.l.b16 %v35
  %v189 = vunpack.c.h.b16 %v35
  %v190 = vunpack.c.l.b16 %v36
  %v191 = vunpack.c.h.b16 %v36
  %v192 = vunpack.c.l.b16 %v37
  %v193 = vunpack.c.h.b16 %v37
  %v194 = vunpack.c.l.b16 %v38
  %v195 = vunpack.c.h.b16 %v38
  %v196 = vunpack.c.l.b16 %v39
  %v197 = vunpack.c.h.b16 %v39
  %v198 = vunpack.c.l.b16 %v40
  %v199 = vunpack.c.h.b16 %v40
  %v200 = vunpack.c.l.b16 %v41
  %v201 = vunpack.c.h.b16 %v41
  %v202 = vunpack.c.l.b16 %v42
  %v203 = vunpack.c.h.b16 %v42
  %v204 = vunpack.c.l.b16 %v43
  %v205 = vunpack.c.h.b16 %v43
  %v206 = vunpack.c.l.b16 %v44
  %v207 = vunpack.c.h.b16 %v44
  %v208 = vunpack.c.l.b16 %v45
  %v209 = vunpack.c.h.b16 %v45
  %v210 = vunpack.c.l.b16 %v46
  %v211 = vunpack.c.h.b16 %v46
  %v212 = vunpack.c.l.b16 %v47
  %v213 = vunpack.c.h.b16 %v47
  %v214 = vunpack.c.l.b16 %v48
  %v215 = vunpack.c.h.b16 %v48
  %v216 = vunpack.c.l.b16 %v49
  %v217 = vunpack.c.h.b16 %v49
  %v218 = vunpack.c.l.b16 %v50
  %v219 = vunpack.c.h.b16 %v50
  %v220 = vunpack.c.l.b16 %v51
  %v221 = vunpack.c.h.b16 %v51
  %v222 = vunpack.c.l.b16 %v52
  %v223 = vunpack.c.h.b16 %v52
  %v224 = vunpack.c.l.b16 %v53
  %v225 = vunpack.c.h.b16 %v53
  %v226 = vunpack.c.l.b16 %v54
  %v227 = vunpack.c.h.b16 %v54
  %v228 = vunpack.c.l.b16 %v55
  %v229 = vunpack.c.h.b16 %v55
  %v230 = vunpack.c.l.b16 %v56
  %v231 = vunpack.c.h.b16 %v56
  %v232 = vpack.c.b16 %v150, %v148
  %v233 = vpack.c.b16 %v151, %v149
  %v234 = vpack.c.b16 %v154, %v152
  %v235 = vpack.c.b16 %v155, %v153
  %v236 = vpack.c.b16 %v158, %v156
  %v237 = vpack.c.b16 %v159, %v157
  %v238 = vpack.c.b16 %v162, %v160
  %v239 = vpack.c.b16 %v163, %v161
  %v240 = vpack.c.b16 %v166, %v164
  %v241 = vpack.c.b16 %v167, %v165
  %v242 = vpack.c.b16 %v170, %v168
  %v243 = vpack.c.b16 %v171, %v169
  %v244 = vpack.c.b16 %v174, %v172
  %v245 = vpack.c.b16 %v175, %v173
  %v246 = vpack.c.b16 %v178, %v176
  %v247 = vpack.c.b16 %v179, %v177
  %v248 = vpack.c.b16 %v182, %v180
  %v249 = vpack.c.b16 %v183, %v181
  %v250 = vpack.c.b16 %v186, %v184
  %v251 = vpack.c.b16 %v187, %v185
  %v252 = vpack.c.b16 %v190, %v188
  %v253 = vpack.c.b16 %v191, %v189
  %v254 = vpack.c.b16 %v194, %v192
  %v255 = vpack.c.b16 %v195, %v193
  %v256 = vpack.c.b16 %v198, %v196
  %v257 = vpack.c.b16 %v199, %v197
  %v258 = vpack.c.b16 %v202, %v200
  %v259 = vpack.c.b16 %v203, %v201
  %v260 = vpack.c.b16 %v206, %v204
  %v261 = vpack.c.b16 %v207, %v205
  %v262 = vpack.c.b16 %v210, %v208
  %v263 = vpack.c.b16 %v211, %v209
  %v264 = vpack.c.b16 %v214, %v212
  %v265 = vpack.c.b16 %v215, %v213
  %v266 = vpack.c.b16 %v218, %v216
  %v267 = vpack.c.b16 %v219, %v217
  %v268 = vpack.c.b16 %v222, %v220
  %v269 = vpack.c.b16 %v223, %v221
  %v270 = vpack.c.b16 %v226, %v224
  %v271 = vpack.c.b16 %v227, %v225
  %v272 = vpack.c.b16 %v230, %v228
  %v273 = vpack.c.b16 %v231, %v229
  %v319 = vunpack.c.l.b16 %v82
  %v320 = vunpack.c.l.b16 %v83
  %v321 = vunpack.c.l.b16 %v84
  %v322 = vunpack.c.l.b16 %v85
  %v323 = vunpack.c.l.b16 %v86
  %v324 = vunpack.c.l.b16 %v87
  %v325 = vunpack.c.l.b16 %v88
  %v326 = vunpack.c.l.b16 %v89
  %v327 = vunpack.c.l.b16 %v90
  %v328 = vunpack.c.l.b16 %v91
  %v329 = vunpack.c.l.b16 %v92
  %v330 = vunpack.c.l.b16 %v93
  %v331 = vunpack.c.l.b16 %v94
  %v332 = vunpack.c.l.b16 %v95
  %v333 = vunpack.c.l.b16 %v96
  %v334 = vunpack.c.l.b16 %v97
  %v335 = vunpack.c.l.b16 %v98
  %v336 = vunpack.c.l.b16 %v99
  %v337 = vunpack.c.l.b16 %v100
  %v338 = vunpack.c.l.b16 %v101
  %v339 = vunpack.c.l.b16 %v102
  %v340 = vunpack.c.l.b16 %v103
  %v341 = vunpack.c.l.b16 %v104
  %v342 = vunpack.c.l.b16 %v105
  %v343 = vpack.c.b16 %v320, %v319
  %v344 = vpack.c.b16 %v322, %v321
  %v345 = vpack.c.b16 %v324, %v323
  %v346 = vpack.c.b16 %v326, %v325
  %v347 = vpack.c.b16 %v328, %v327
  %v348 = vpack.c.b16 %v330, %v329
  %v349 = vpack.c.b16 %v332, %v331
  %v350 = vpack.c.b16 %v334, %v333
  %v351 = vpack.c.b16 %v336, %v335
  %v352 = vpack.c.b16 %v338, %v337
  %v353 = vpack.c.b16 %v340, %v339
  %v354 = vpack.c.b16 %v342, %v341
  %vm367 = vcmask 523264
  %v369 = vsel %vm367, %v233, 0
  %v372 = vsel %vm367, %v235, 0
  %v375 = vsel %vm367, %v237, 0
  %v378 = vsel %vm367, %v239, 0
  %v381 = vsel %vm367, %v241, 0
  %v384 = vsel %vm367, %v243, 0
  %v387 = vsel %vm367, %v245, 0
  %v390 = vsel %vm367, %v247, 0
  %v393 = vsel %vm367, %v249, 0
  %v396 = vsel %vm367, %v251, 0
  %v399 = vsel %vm367, %v253, 0
  %v402 = vsel %vm367, %v255, 0
  %v405 = vsel %vm367, %v257, 0
  %v408 = vsel %vm367, %v259, 0
  %v411 = vsel %vm367, %v261, 0
  %v414 = vsel %vm367, %v263, 0
  %v417 = vsel %vm367, %v265, 0
  %v420 = vsel %vm367, %v267, 0
  %v423 = vsel %vm367, %v269, 0
  %v426 = vsel %vm367, %v271, 0
  %v429 = vsel %vm367, %v273, 0
  %431 = vmatprep.subr.bf16.mxu0 0
  %432 = vmatpush1.bf16.msra.mxu0 %v343
  %433 = vmatprep.subr.bf16.mxu0 0
  %434 = vmatpush1.bf16.msra.mxu0 %v344
  %435 = vmatprep.subr.bf16.mxu0 0
  %436 = vmatpush1.bf16.msra.mxu0 %v345
  %437 = vmatprep.subr.bf16.mxu0 0
  %438 = vmatpush1.bf16.msra.mxu0 %v346
  %439 = vmatprep.subr.bf16.mxu0 0
  %440 = vmatpush1.bf16.msra.mxu0 %v347
  %441 = vmatprep.subr.bf16.mxu0 0
  %442 = vmatpush1.bf16.msra.mxu0 %v348
  %443 = vmatprep.subr.bf16.mxu0 0
  %444 = vmatpush1.bf16.msra.mxu0 %v349
  %445 = vmatprep.subr.bf16.mxu0 0
  %446 = vmatpush1.bf16.msra.mxu0 %v350
  %447 = vmatprep.subr.bf16.mxu0 0
  %448 = vmatpush1.bf16.msra.mxu0 %v351
  %449 = vmatprep.subr.bf16.mxu0 0
  %450 = vmatpush1.bf16.msra.mxu0 %v352
  %451 = vmatprep.subr.bf16.mxu0 0
  %452 = vmatpush1.bf16.msra.mxu0 %v353
  %453 = vmatprep.subr.bf16.mxu0 0
  %454 = vmatpush1.bf16.msra.mxu0 %v354
  %455 = vmatprep.subr.bf16.mxu0 0
  %456 = vmatpush1.bf16.msra.mxu0 0
  %457 = vmatprep.subr.bf16.mxu0 0
  %458 = vmatpush1.bf16.msra.mxu0 0
  %459 = vmatprep.subr.bf16.mxu0 0
  %460 = vmatpush1.bf16.msra.mxu0 0
  %461 = vmatprep.subr.bf16.mxu0 0
  %462 = vmatpush1.bf16.msra.mxu0 0
  %463 = vmatprep.mubr.bf16.mxu0 %v369
  %464 = vmatmul.mubr.bf16.gmra.mrb[0].mxu0 %v232
  %v465 = vpop.f32.mrb[0].mxu0
  %v466 = vadd.f32 0.0, %v465
  %v467 = vpop.f32.mrb[0].mxu0
  %v468 = vpop.f32.mrb[0].mxu0
  %v469 = vadd.f32 0.0, %v468
  %v470 = vpop.f32.mrb[0].mxu0
  %471 = vmatprep.mubr.bf16.mxu0 %v372
  %472 = vmatmul.mubr.bf16.gmra.mrb[0].mxu0 %v234
  %v473 = vpop.f32.mrb[0].mxu0
  %v474 = vadd.f32 0.0, %v473
  %v475 = vpop.f32.mrb[0].mxu0
  %v476 = vpop.f32.mrb[0].mxu0
  %v477 = vadd.f32 0.0, %v476
  %v478 = vpop.f32.mrb[0].mxu0
  %479 = vmatprep.mubr.bf16.mxu0 %v375
  %480 = vmatmul.mubr.bf16.gmra.mrb[0].mxu0 %v236
  %v481 = vpop.f32.mrb[0].mxu0
  %v482 = vadd.f32 0.0, %v481
  %v483 = vpop.f32.mrb[0].mxu0
  %v484 = vpop.f32.mrb[0].mxu0
  %v485 = vadd.f32 0.0, %v484
  %v486 = vpop.f32.mrb[0].mxu0
  %487 = vmatprep.mubr.bf16.mxu0 %v378
  %488 = vmatmul.mubr.bf16.gmra.mrb[0].mxu0 %v238
  %v489 = vpop.f32.mrb[0].mxu0
  %v490 = vadd.f32 0.0, %v489
  %v491 = vpop.f32.mrb[0].mxu0
  %v492 = vpop.f32.mrb[0].mxu0
  %v493 = vadd.f32 0.0, %v492
  %v494 = vpop.f32.mrb[0].mxu0
  %495 = vmatprep.mubr.bf16.mxu0 %v381
  %496 = vmatmul.mubr.bf16.gmra.mrb[0].mxu0 %v240
  %v497 = vpop.f32.mrb[0].mxu0
  %v498 = vadd.f32 0.0, %v497
  %v499 = vpop.f32.mrb[0].mxu0
  %v500 = vpop.f32.mrb[0].mxu0
  %v501 = vadd.f32 0.0, %v500
  %v502 = vpop.f32.mrb[0].mxu0
  %503 = vmatprep.mubr.bf16.mxu0 %v384
  %504 = vmatmul.mubr.bf16.gmra.mrb[0].mxu0 %v242
  %v505 = vpop.f32.mrb[0].mxu0
  %v506 = vadd.f32 0.0, %v505
  %v507 = vpop.f32.mrb[0].mxu0
  %v508 = vpop.f32.mrb[0].mxu0
  %v509 = vadd.f32 0.0, %v508
  %v510 = vpop.f32.mrb[0].mxu0
  %511 = vmatprep.mubr.bf16.mxu0 %v387
  %512 = vmatmul.mubr.bf16.gmra.mrb[0].mxu0 %v244
  %v513 = vpop.f32.mrb[0].mxu0
  %v514 = vadd.f32 0.0, %v513
  %v515 = vpop.f32.mrb[0].mxu0
  %v516 = vpop.f32.mrb[0].mxu0
  %v517 = vadd.f32 0.0, %v516
  %v518 = vpop.f32.mrb[0].mxu0
  %519 = vmatprep.mubr.bf16.mxu0 %v390
  %520 = vmatmul.mubr.bf16.gmra.mrb[0].mxu0 %v246
  %v521 = vpop.f32.mrb[0].mxu0
  %v522 = vadd.f32 0.0, %v521
  %v523 = vpop.f32.mrb[0].mxu0
  %v524 = vpop.f32.mrb[0].mxu0
  %v525 = vadd.f32 0.0, %v524
  %v526 = vpop.f32.mrb[0].mxu0
  %527 = vmatprep.mubr.bf16.mxu0 %v393
  %528 = vmatmul.mubr.bf16.gmra.mrb[0].mxu0 %v248
  %v529 = vpop.f32.mrb[0].mxu0
  %v530 = vadd.f32 0.0, %v529
  %v531 = vpop.f32.mrb[0].mxu0
  %v532 = vpop.f32.mrb[0].mxu0
  %v533 = vadd.f32 0.0, %v532
  %v534 = vpop.f32.mrb[0].mxu0
  %535 = vmatprep.mubr.bf16.mxu0 %v396
  %536 = vmatmul.mubr.bf16.gmra.mrb[0].mxu0 %v250
  %v537 = vpop.f32.mrb[0].mxu0
  %v538 = vadd.f32 0.0, %v537
  %v539 = vpop.f32.mrb[0].mxu0
  %v540 = vpop.f32.mrb[0].mxu0
  %v541 = vadd.f32 0.0, %v540
  %v542 = vpop.f32.mrb[0].mxu0
  %543 = vmatprep.mubr.bf16.mxu0 %v399
  %544 = vmatmul.mubr.bf16.gmra.mrb[0].mxu0 %v252
  %v545 = vpop.f32.mrb[0].mxu0
  %v546 = vadd.f32 0.0, %v545
  %v547 = vpop.f32.mrb[0].mxu0
  %v548 = vpop.f32.mrb[0].mxu0
  %v549 = vadd.f32 0.0, %v548
  %v550 = vpop.f32.mrb[0].mxu0
  %551 = vmatprep.mubr.bf16.mxu0 %v402
  %552 = vmatmul.mubr.bf16.gmra.mrb[0].mxu0 %v254
  %v553 = vpop.f32.mrb[0].mxu0
  %v554 = vadd.f32 0.0, %v553
  %v555 = vpop.f32.mrb[0].mxu0
  %v556 = vpop.f32.mrb[0].mxu0
  %v557 = vadd.f32 0.0, %v556
  %v558 = vpop.f32.mrb[0].mxu0
  %559 = vmatprep.mubr.bf16.mxu0 %v405
  %560 = vmatmul.mubr.bf16.gmra.mrb[0].mxu0 %v256
  %v561 = vpop.f32.mrb[0].mxu0
  %v562 = vadd.f32 0.0, %v561
  %v563 = vpop.f32.mrb[0].mxu0
  %v564 = vpop.f32.mrb[0].mxu0
  %v565 = vadd.f32 0.0, %v564
  %v566 = vpop.f32.mrb[0].mxu0
  %567 = vmatprep.mubr.bf16.mxu0 %v408
  %568 = vmatmul.mubr.bf16.gmra.mrb[0].mxu0 %v258
  %v569 = vpop.f32.mrb[0].mxu0
  %v570 = vadd.f32 0.0, %v569
  %v571 = vpop.f32.mrb[0].mxu0
  %v572 = vpop.f32.mrb[0].mxu0
  %v573 = vadd.f32 0.0, %v572
  %v574 = vpop.f32.mrb[0].mxu0
  %575 = vmatprep.mubr.bf16.mxu0 %v411
  %576 = vmatmul.mubr.bf16.gmra.mrb[0].mxu0 %v260
  %v577 = vpop.f32.mrb[0].mxu0
  %v578 = vadd.f32 0.0, %v577
  %v579 = vpop.f32.mrb[0].mxu0
  %v580 = vpop.f32.mrb[0].mxu0
  %v581 = vadd.f32 0.0, %v580
  %v582 = vpop.f32.mrb[0].mxu0
  %583 = vmatprep.mubr.bf16.mxu0 %v414
  %584 = vmatmul.mubr.bf16.gmra.mrb[0].mxu0 %v262
  %v585 = vpop.f32.mrb[0].mxu0
  %v586 = vadd.f32 0.0, %v585
  %v587 = vpop.f32.mrb[0].mxu0
  %v588 = vpop.f32.mrb[0].mxu0
  %v589 = vadd.f32 0.0, %v588
  %v590 = vpop.f32.mrb[0].mxu0
  %591 = vmatprep.mubr.bf16.mxu0 %v417
  %592 = vmatmul.mubr.bf16.gmra.mrb[0].mxu0 %v264
  %v593 = vpop.f32.mrb[0].mxu0
  %v594 = vadd.f32 0.0, %v593
  %v595 = vpop.f32.mrb[0].mxu0
  %v596 = vpop.f32.mrb[0].mxu0
  %v597 = vadd.f32 0.0, %v596
  %v598 = vpop.f32.mrb[0].mxu0
  %599 = vmatprep.mubr.bf16.mxu0 %v420
  %600 = vmatmul.mubr.bf16.gmra.mrb[0].mxu0 %v266
  %v601 = vpop.f32.mrb[0].mxu0
  %v602 = vadd.f32 0.0, %v601
  %v603 = vpop.f32.mrb[0].mxu0
  %v604 = vpop.f32.mrb[0].mxu0
  %v605 = vadd.f32 0.0, %v604
  %v606 = vpop.f32.mrb[0].mxu0
  %607 = vmatprep.mubr.bf16.mxu0 %v423
  %608 = vmatmul.mubr.bf16.gmra.mrb[0].mxu0 %v268
  %v609 = vpop.f32.mrb[0].mxu0
  %v610 = vadd.f32 0.0, %v609
  %v611 = vpop.f32.mrb[0].mxu0
  %v612 = vpop.f32.mrb[0].mxu0
  %v613 = vadd.f32 0.0, %v612
  %v614 = vpop.f32.mrb[0].mxu0
  %615 = vmatprep.mubr.bf16.mxu0 %v426
  %616 = vmatmul.mubr.bf16.gmra.mrb[0].mxu0 %v270
  %v617 = vpop.f32.mrb[0].mxu0
  %v618 = vadd.f32 0.0, %v617
  %v619 = vpop.f32.mrb[0].mxu0
  %v620 = vpop.f32.mrb[0].mxu0
  %v621 = vadd.f32 0.0, %v620
  %v622 = vpop.f32.mrb[0].mxu0
  %623 = vmatprep.mubr.bf16.mxu0 %v429
  %624 = vmatmul.mubr.bf16.gmra.mrb[0].mxu0 %v272
  %v625 = vpop.f32.mrb[0].mxu0
  %v626 = vadd.f32 0.0, %v625
  %v627 = vpop.f32.mrb[0].mxu0
  %v628 = vpop.f32.mrb[0].mxu0
  %v629 = vadd.f32 0.0, %v628
  %v630 = vpop.f32.mrb[0].mxu0
  %631 = vdwg.mxu0
  %v632 = vrot.slane %v466, 1
  %v633 = vrot.slane %v469, 1
  %v634 = vrot.slane %v474, 1
  %v635 = vrot.slane %v477, 1
  %v636 = vrot.slane %v482, 1
  %v637 = vrot.slane %v485, 1
  %v638 = vrot.slane %v490, 1
  %v639 = vrot.slane %v493, 1
  %v640 = vrot.slane %v498, 1
  %v641 = vrot.slane %v501, 1
  %v642 = vrot.slane %v506, 1
  %v643 = vrot.slane %v509, 1
  %v644 = vrot.slane %v514, 1
  %v645 = vrot.slane %v517, 1
  %v646 = vrot.slane %v522, 1
  %v647 = vrot.slane %v525, 1
  %v648 = vrot.slane %v530, 1
  %v649 = vrot.slane %v533, 1
  %v650 = vrot.slane %v538, 1
  %v651 = vrot.slane %v541, 1
  %v652 = vrot.slane %v546, 1
  %v653 = vrot.slane %v549, 1
  %v654 = vrot.slane %v554, 1
  %v655 = vrot.slane %v557, 1
  %v656 = vrot.slane %v562, 1
  %v657 = vrot.slane %v565, 1
  %v658 = vrot.slane %v570, 1
  %v659 = vrot.slane %v573, 1
  %v660 = vrot.slane %v578, 1
  %v661 = vrot.slane %v581, 1
  %v662 = vrot.slane %v586, 1
  %v663 = vrot.slane %v589, 1
  %v664 = vrot.slane %v594, 1
  %v665 = vrot.slane %v597, 1
  %v666 = vrot.slane %v602, 1
  %v667 = vrot.slane %v605, 1
  %v668 = vrot.slane %v610, 1
  %v669 = vrot.slane %v613, 1
  %v670 = vrot.slane %v618, 1
  %v671 = vrot.slane %v621, 1
  %v672 = vrot.slane %v626, 1
  %v673 = vrot.slane %v629, 1
  %v674 = vlaneseq
  %v675 = vshrl.u32 %v674, 7
  %vm676 = vcmp.lt.s32.totalorder %v675, 7
  %v677 = vsel %vm676, %v672, %v673
  %v678 = vsel %vm676, %v671, %v672
  %v679 = vsel %vm676, %v670, %v671
  %v680 = vsel %vm676, %v669, %v670
  %v681 = vsel %vm676, %v668, %v669
  %v682 = vsel %vm676, %v667, %v668
  %v683 = vsel %vm676, %v666, %v667
  %v684 = vsel %vm676, %v665, %v666
  %v685 = vsel %vm676, %v664, %v665
  %v686 = vsel %vm676, %v663, %v664
  %v687 = vsel %vm676, %v662, %v663
  %v688 = vsel %vm676, %v661, %v662
  %v689 = vsel %vm676, %v660, %v661
  %v690 = vsel %vm676, %v659, %v660
  %v691 = vsel %vm676, %v658, %v659
  %v692 = vsel %vm676, %v657, %v658
  %v693 = vsel %vm676, %v656, %v657
  %v694 = vsel %vm676, %v655, %v656
  %v695 = vsel %vm676, %v654, %v655
  %v696 = vsel %vm676, %v653, %v654
  %v697 = vsel %vm676, %v652, %v653
  %v698 = vsel %vm676, %v651, %v652
  %v699 = vsel %vm676, %v650, %v651
  %v700 = vsel %vm676, %v649, %v650
  %v701 = vsel %vm676, %v648, %v649
  %v702 = vsel %vm676, %v647, %v648
  %v703 = vsel %vm676, %v646, %v647
  %v704 = vsel %vm676, %v645, %v646
  %v705 = vsel %vm676, %v644, %v645
  %v706 = vsel %vm676, %v643, %v644
  %v707 = vsel %vm676, %v642, %v643
  %v708 = vsel %vm676, %v641, %v642
  %v709 = vsel %vm676, %v640, %v641
  %v710 = vsel %vm676, %v639, %v640
  %v711 = vsel %vm676, %v638, %v639
  %v712 = vsel %vm676, %v637, %v638
  %v713 = vsel %vm676, %v636, %v637
  %v714 = vsel %vm676, %v635, %v636
  %v715 = vsel %vm676, %v634, %v635
  %v716 = vsel %vm676, %v633, %v634
  %v717 = vsel %vm676, %v632, %v633
  %v718 = vsel %vm676, %v673, %v632
  %v743 = vunpack.c.l.b16 %v57
  %v744 = vunpack.c.l.b16 %v58
  %v745 = vunpack.c.l.b16 %v59
  %v746 = vunpack.c.l.b16 %v60
  %v747 = vunpack.c.l.b16 %v61
  %v748 = vunpack.c.l.b16 %v62
  %v749 = vunpack.c.l.b16 %v63
  %v750 = vunpack.c.l.b16 %v64
  %v751 = vunpack.c.l.b16 %v65
  %v752 = vunpack.c.l.b16 %v66
  %v753 = vunpack.c.l.b16 %v67
  %v754 = vunpack.c.l.b16 %v68
  %v755 = vunpack.c.l.b16 %v69
  %v756 = vunpack.c.l.b16 %v70
  %v757 = vunpack.c.l.b16 %v71
  %v758 = vunpack.c.l.b16 %v72
  %v759 = vunpack.c.l.b16 %v73
  %v760 = vunpack.c.l.b16 %v74
  %v761 = vunpack.c.l.b16 %v75
  %v762 = vunpack.c.l.b16 %v76
  %v763 = vunpack.c.l.b16 %v77
  %v764 = vunpack.c.l.b16 %v78
  %v765 = vunpack.c.l.b16 %v79
  %v766 = vunpack.c.l.b16 %v80
  %v767 = vpack.c.b16 %v744, %v743
  %v768 = vpack.c.b16 %v746, %v745
  %v769 = vpack.c.b16 %v748, %v747
  %v770 = vpack.c.b16 %v750, %v749
  %v771 = vpack.c.b16 %v752, %v751
  %v772 = vpack.c.b16 %v754, %v753
  %v773 = vpack.c.b16 %v756, %v755
  %v774 = vpack.c.b16 %v758, %v757
  %v775 = vpack.c.b16 %v760, %v759
  %v776 = vpack.c.b16 %v762, %v761
  %v777 = vpack.c.b16 %v764, %v763
  %v778 = vpack.c.b16 %v766, %v765
  %791 = vmatprep.subr.bf16.mxu0 0
  %792 = vmatpush1.bf16.msra.mxu0 %v767
  %793 = vmatprep.subr.bf16.mxu0 0
  %794 = vmatpush1.bf16.msra.mxu0 %v768
  %795 = vmatprep.subr.bf16.mxu0 0
  %796 = vmatpush1.bf16.msra.mxu0 %v769
  %797 = vmatprep.subr.bf16.mxu0 0
  %798 = vmatpush1.bf16.msra.mxu0 %v770
  %799 = vmatprep.subr.bf16.mxu0 0
  %800 = vmatpush1.bf16.msra.mxu0 %v771
  %801 = vmatprep.subr.bf16.mxu0 0
  %802 = vmatpush1.bf16.msra.mxu0 %v772
  %803 = vmatprep.subr.bf16.mxu0 0
  %804 = vmatpush1.bf16.msra.mxu0 %v773
  %805 = vmatprep.subr.bf16.mxu0 0
  %806 = vmatpush1.bf16.msra.mxu0 %v774
  %807 = vmatprep.subr.bf16.mxu0 0
  %808 = vmatpush1.bf16.msra.mxu0 %v775
  %809 = vmatprep.subr.bf16.mxu0 0
  %810 = vmatpush1.bf16.msra.mxu0 %v776
  %811 = vmatprep.subr.bf16.mxu0 0
  %812 = vmatpush1.bf16.msra.mxu0 %v777
  %813 = vmatprep.subr.bf16.mxu0 0
  %814 = vmatpush1.bf16.msra.mxu0 %v778
  %815 = vmatprep.subr.bf16.mxu0 0
  %816 = vmatpush1.bf16.msra.mxu0 0
  %817 = vmatprep.subr.bf16.mxu0 0
  %818 = vmatpush1.bf16.msra.mxu0 0
  %819 = vmatprep.subr.bf16.mxu0 0
  %820 = vmatpush1.bf16.msra.mxu0 0
  %821 = vmatprep.subr.bf16.mxu0 0
  %822 = vmatpush1.bf16.msra.mxu0 0
  %823 = vmatprep.mubr.bf16.mxu0 %v369
  %824 = vmatmul.mubr.bf16.gmra.mrb[0].mxu0 %v232
  %v825 = vpop.f32.mrb[0].mxu0
  %v826 = vadd.f32 %v717, %v825
  %v827 = vpop.f32.mrb[0].mxu0
  %v828 = vpop.f32.mrb[0].mxu0
  %v829 = vadd.f32 %v716, %v828
  %v830 = vpop.f32.mrb[0].mxu0
  %831 = vmatprep.mubr.bf16.mxu0 %v372
  %832 = vmatmul.mubr.bf16.gmra.mrb[0].mxu0 %v234
  %v833 = vpop.f32.mrb[0].mxu0
  %v834 = vadd.f32 %v715, %v833
  %v835 = vpop.f32.mrb[0].mxu0
  %v836 = vpop.f32.mrb[0].mxu0
  %v837 = vadd.f32 %v714, %v836
  %v838 = vpop.f32.mrb[0].mxu0
  %839 = vmatprep.mubr.bf16.mxu0 %v375
  %840 = vmatmul.mubr.bf16.gmra.mrb[0].mxu0 %v236
  %v841 = vpop.f32.mrb[0].mxu0
  %v842 = vadd.f32 %v713, %v841
  %v843 = vpop.f32.mrb[0].mxu0
  %v844 = vpop.f32.mrb[0].mxu0
  %v845 = vadd.f32 %v712, %v844
  %v846 = vpop.f32.mrb[0].mxu0
  %847 = vmatprep.mubr.bf16.mxu0 %v378
  %848 = vmatmul.mubr.bf16.gmra.mrb[0].mxu0 %v238
  %v849 = vpop.f32.mrb[0].mxu0
  %v850 = vadd.f32 %v711, %v849
  %v851 = vpop.f32.mrb[0].mxu0
  %v852 = vpop.f32.mrb[0].mxu0
  %v853 = vadd.f32 %v710, %v852
  %v854 = vpop.f32.mrb[0].mxu0
  %855 = vmatprep.mubr.bf16.mxu0 %v381
  %856 = vmatmul.mubr.bf16.gmra.mrb[0].mxu0 %v240
  %v857 = vpop.f32.mrb[0].mxu0
  %v858 = vadd.f32 %v709, %v857
  %v859 = vpop.f32.mrb[0].mxu0
  %v860 = vpop.f32.mrb[0].mxu0
  %v861 = vadd.f32 %v708, %v860
  %v862 = vpop.f32.mrb[0].mxu0
  %863 = vmatprep.mubr.bf16.mxu0 %v384
  %864 = vmatmul.mubr.bf16.gmra.mrb[0].mxu0 %v242
  %v865 = vpop.f32.mrb[0].mxu0
  %v866 = vadd.f32 %v707, %v865
  %v867 = vpop.f32.mrb[0].mxu0
  %v868 = vpop.f32.mrb[0].mxu0
  %v869 = vadd.f32 %v706, %v868
  %v870 = vpop.f32.mrb[0].mxu0
  %871 = vmatprep.mubr.bf16.mxu0 %v387
  %872 = vmatmul.mubr.bf16.gmra.mrb[0].mxu0 %v244
  %v873 = vpop.f32.mrb[0].mxu0
  %v874 = vadd.f32 %v705, %v873
  %v875 = vpop.f32.mrb[0].mxu0
  %v876 = vpop.f32.mrb[0].mxu0
  %v877 = vadd.f32 %v704, %v876
  %v878 = vpop.f32.mrb[0].mxu0
  %879 = vmatprep.mubr.bf16.mxu0 %v390
  %880 = vmatmul.mubr.bf16.gmra.mrb[0].mxu0 %v246
  %v881 = vpop.f32.mrb[0].mxu0
  %v882 = vadd.f32 %v703, %v881
  %v883 = vpop.f32.mrb[0].mxu0
  %v884 = vpop.f32.mrb[0].mxu0
  %v885 = vadd.f32 %v702, %v884
  %v886 = vpop.f32.mrb[0].mxu0
  %887 = vmatprep.mubr.bf16.mxu0 %v393
  %888 = vmatmul.mubr.bf16.gmra.mrb[0].mxu0 %v248
  %v889 = vpop.f32.mrb[0].mxu0
  %v890 = vadd.f32 %v701, %v889
  %v891 = vpop.f32.mrb[0].mxu0
  %v892 = vpop.f32.mrb[0].mxu0
  %v893 = vadd.f32 %v700, %v892
  %v894 = vpop.f32.mrb[0].mxu0
  %895 = vmatprep.mubr.bf16.mxu0 %v396
  %896 = vmatmul.mubr.bf16.gmra.mrb[0].mxu0 %v250
  %v897 = vpop.f32.mrb[0].mxu0
  %v898 = vadd.f32 %v699, %v897
  %v899 = vpop.f32.mrb[0].mxu0
  %v900 = vpop.f32.mrb[0].mxu0
  %v901 = vadd.f32 %v698, %v900
  %v902 = vpop.f32.mrb[0].mxu0
  %903 = vmatprep.mubr.bf16.mxu0 %v399
  %904 = vmatmul.mubr.bf16.gmra.mrb[0].mxu0 %v252
  %v905 = vpop.f32.mrb[0].mxu0
  %v906 = vadd.f32 %v697, %v905
  %v907 = vpop.f32.mrb[0].mxu0
  %v908 = vpop.f32.mrb[0].mxu0
  %v909 = vadd.f32 %v696, %v908
  %v910 = vpop.f32.mrb[0].mxu0
  %911 = vmatprep.mubr.bf16.mxu0 %v402
  %912 = vmatmul.mubr.bf16.gmra.mrb[0].mxu0 %v254
  %v913 = vpop.f32.mrb[0].mxu0
  %v914 = vadd.f32 %v695, %v913
  %v915 = vpop.f32.mrb[0].mxu0
  %v916 = vpop.f32.mrb[0].mxu0
  %v917 = vadd.f32 %v694, %v916
  %v918 = vpop.f32.mrb[0].mxu0
  %919 = vmatprep.mubr.bf16.mxu0 %v405
  %920 = vmatmul.mubr.bf16.gmra.mrb[0].mxu0 %v256
  %v921 = vpop.f32.mrb[0].mxu0
  %v922 = vadd.f32 %v693, %v921
  %v923 = vpop.f32.mrb[0].mxu0
  %v924 = vpop.f32.mrb[0].mxu0
  %v925 = vadd.f32 %v692, %v924
  %v926 = vpop.f32.mrb[0].mxu0
  %927 = vmatprep.mubr.bf16.mxu0 %v408
  %928 = vmatmul.mubr.bf16.gmra.mrb[0].mxu0 %v258
  %v929 = vpop.f32.mrb[0].mxu0
  %v930 = vadd.f32 %v691, %v929
  %v931 = vpop.f32.mrb[0].mxu0
  %v932 = vpop.f32.mrb[0].mxu0
  %v933 = vadd.f32 %v690, %v932
  %v934 = vpop.f32.mrb[0].mxu0
  %935 = vmatprep.mubr.bf16.mxu0 %v411
  %936 = vmatmul.mubr.bf16.gmra.mrb[0].mxu0 %v260
  %v937 = vpop.f32.mrb[0].mxu0
  %v938 = vadd.f32 %v689, %v937
  %v939 = vpop.f32.mrb[0].mxu0
  %v940 = vpop.f32.mrb[0].mxu0
  %v941 = vadd.f32 %v688, %v940
  %v942 = vpop.f32.mrb[0].mxu0
  %943 = vmatprep.mubr.bf16.mxu0 %v414
  %944 = vmatmul.mubr.bf16.gmra.mrb[0].mxu0 %v262
  %v945 = vpop.f32.mrb[0].mxu0
  %v946 = vadd.f32 %v687, %v945
  %v947 = vpop.f32.mrb[0].mxu0
  %v948 = vpop.f32.mrb[0].mxu0
  %v949 = vadd.f32 %v686, %v948
  %v950 = vpop.f32.mrb[0].mxu0
  %951 = vmatprep.mubr.bf16.mxu0 %v417
  %952 = vmatmul.mubr.bf16.gmra.mrb[0].mxu0 %v264
  %v953 = vpop.f32.mrb[0].mxu0
  %v954 = vadd.f32 %v685, %v953
  %v955 = vpop.f32.mrb[0].mxu0
  %v956 = vpop.f32.mrb[0].mxu0
  %v957 = vadd.f32 %v684, %v956
  %v958 = vpop.f32.mrb[0].mxu0
  %959 = vmatprep.mubr.bf16.mxu0 %v420
  %960 = vmatmul.mubr.bf16.gmra.mrb[0].mxu0 %v266
  %v961 = vpop.f32.mrb[0].mxu0
  %v962 = vadd.f32 %v683, %v961
  %v963 = vpop.f32.mrb[0].mxu0
  %v964 = vpop.f32.mrb[0].mxu0
  %v965 = vadd.f32 %v682, %v964
  %v966 = vpop.f32.mrb[0].mxu0
  %967 = vmatprep.mubr.bf16.mxu0 %v423
  %968 = vmatmul.mubr.bf16.gmra.mrb[0].mxu0 %v268
  %v969 = vpop.f32.mrb[0].mxu0
  %v970 = vadd.f32 %v681, %v969
  %v971 = vpop.f32.mrb[0].mxu0
  %v972 = vpop.f32.mrb[0].mxu0
  %v973 = vadd.f32 %v680, %v972
  %v974 = vpop.f32.mrb[0].mxu0
  %975 = vmatprep.mubr.bf16.mxu0 %v426
  %976 = vmatmul.mubr.bf16.gmra.mrb[0].mxu0 %v270
  %v977 = vpop.f32.mrb[0].mxu0
  %v978 = vadd.f32 %v679, %v977
  %v979 = vpop.f32.mrb[0].mxu0
  %v980 = vpop.f32.mrb[0].mxu0
  %v981 = vadd.f32 %v678, %v980
  %v982 = vpop.f32.mrb[0].mxu0
  %983 = vmatprep.mubr.bf16.mxu0 %v429
  %984 = vmatmul.mubr.bf16.gmra.mrb[0].mxu0 %v272
  %v985 = vpop.f32.mrb[0].mxu0
  %v986 = vadd.f32 %v677, %v985
  %v987 = vpop.f32.mrb[0].mxu0
  %v988 = vpop.f32.mrb[0].mxu0
  %v989 = vadd.f32 %v718, %v988
  %v990 = vpop.f32.mrb[0].mxu0
  %991 = vdwg.mxu0
  %s992 = scalar_lea.vmem %s1, 192
  %v993 = vld [vmem:[%s992] sm:$0xf]
  %v994 = vld [vmem:[%s992 + $0x4] sm:$0xf]
  %v995 = vld [vmem:[%s992 + $0x8] sm:$0xf]
  %v996 = vld [vmem:[%s992 + $0xc] sm:$0xf]
  %v997 = vld [vmem:[%s992 + $0x10] sm:$0xf]
  %v998 = vld [vmem:[%s992 + $0x14] sm:$0xf]
  %v999 = vld [vmem:[%s992 + $0x18] sm:$0xf]
  %v1000 = vld [vmem:[%s992 + $0x1c] sm:$0xf]
  %v1001 = vld [vmem:[%s992 + $0x20] sm:$0xf]
  %v1002 = vld [vmem:[%s992 + $0x24] sm:$0xf]
  %v1003 = vld [vmem:[%s992 + $0x28] sm:$0xf]
  %v1004 = vld [vmem:[%s992 + $0x2c] sm:$0xf]
  %v1005 = vld [vmem:[%s992 + $0x30] sm:$0xf]
  %v1006 = vld [vmem:[%s992 + $0x34] sm:$0xf]
  %v1007 = vld [vmem:[%s992 + $0x38] sm:$0xf]
  %v1008 = vld [vmem:[%s992 + $0x3c] sm:$0xf]
  %v1009 = vld [vmem:[%s992 + $0x40] sm:$0xf]
  %v1010 = vld [vmem:[%s992 + $0x44] sm:$0xf]
  %v1011 = vld [vmem:[%s992 + $0x48] sm:$0xf]
  %v1012 = vld [vmem:[%s992 + $0x4c] sm:$0xf]
  %v1013 = vld [vmem:[%s992 + $0x50] sm:$0xf]
  %v1014 = vld [vmem:[%s992 + $0x54] sm:$0xf]
  %v1015 = vld [vmem:[%s992 + $0x58] sm:$0xf]
  %v1016 = vld [vmem:[%s992 + $0x5c] sm:$0xf]
  %v1041 = vunpack.c.l.b16 %v993
  %v1042 = vunpack.c.l.b16 %v994
  %v1043 = vunpack.c.l.b16 %v995
  %v1044 = vunpack.c.l.b16 %v996
  %v1045 = vunpack.c.l.b16 %v997
  %v1046 = vunpack.c.l.b16 %v998
  %v1047 = vunpack.c.l.b16 %v999
  %v1048 = vunpack.c.l.b16 %v1000
  %v1049 = vunpack.c.l.b16 %v1001
  %v1050 = vunpack.c.l.b16 %v1002
  %v1051 = vunpack.c.l.b16 %v1003
  %v1052 = vunpack.c.l.b16 %v1004
  %v1053 = vunpack.c.l.b16 %v1005
  %v1054 = vunpack.c.l.b16 %v1006
  %v1055 = vunpack.c.l.b16 %v1007
  %v1056 = vunpack.c.l.b16 %v1008
  %v1057 = vunpack.c.l.b16 %v1009
  %v1058 = vunpack.c.l.b16 %v1010
  %v1059 = vunpack.c.l.b16 %v1011
  %v1060 = vunpack.c.l.b16 %v1012
  %v1061 = vunpack.c.l.b16 %v1013
  %v1062 = vunpack.c.l.b16 %v1014
  %v1063 = vunpack.c.l.b16 %v1015
  %v1064 = vunpack.c.l.b16 %v1016
  %v1065 = vpack.c.b16 %v1042, %v1041
  %v1066 = vpack.c.b16 %v1044, %v1043
  %v1067 = vpack.c.b16 %v1046, %v1045
  %v1068 = vpack.c.b16 %v1048, %v1047
  %v1069 = vpack.c.b16 %v1050, %v1049
  %v1070 = vpack.c.b16 %v1052, %v1051
  %v1071 = vpack.c.b16 %v1054, %v1053
  %v1072 = vpack.c.b16 %v1056, %v1055
  %v1073 = vpack.c.b16 %v1058, %v1057
  %v1074 = vpack.c.b16 %v1060, %v1059
  %v1075 = vpack.c.b16 %v1062, %v1061
  %v1076 = vpack.c.b16 %v1064, %v1063
  %1089 = vmatprep.subr.bf16.mxu0 0
  %1090 = vmatpush1.bf16.msra.mxu0 %v1065
  %1091 = vmatprep.subr.bf16.mxu0 0
  %1092 = vmatpush1.bf16.msra.mxu0 %v1066
  %1093 = vmatprep.subr.bf16.mxu0 0
  %1094 = vmatpush1.bf16.msra.mxu0 %v1067
  %1095 = vmatprep.subr.bf16.mxu0 0
  %1096 = vmatpush1.bf16.msra.mxu0 %v1068
  %1097 = vmatprep.subr.bf16.mxu0 0
  %1098 = vmatpush1.bf16.msra.mxu0 %v1069
  %1099 = vmatprep.subr.bf16.mxu0 0
  %1100 = vmatpush1.bf16.msra.mxu0 %v1070
  %1101 = vmatprep.subr.bf16.mxu0 0
  %1102 = vmatpush1.bf16.msra.mxu0 %v1071
  %1103 = vmatprep.subr.bf16.mxu0 0
  %1104 = vmatpush1.bf16.msra.mxu0 %v1072
  %1105 = vmatprep.subr.bf16.mxu0 0
  %1106 = vmatpush1.bf16.msra.mxu0 %v1073
  %1107 = vmatprep.subr.bf16.mxu0 0
  %1108 = vmatpush1.bf16.msra.mxu0 %v1074
  %1109 = vmatprep.subr.bf16.mxu0 0
  %1110 = vmatpush1.bf16.msra.mxu0 %v1075
  %1111 = vmatprep.subr.bf16.mxu0 0
  %1112 = vmatpush1.bf16.msra.mxu0 %v1076
  %1113 = vmatprep.subr.bf16.mxu0 0
  %1114 = vmatpush1.bf16.msra.mxu0 0
  %1115 = vmatprep.subr.bf16.mxu0 0
  %1116 = vmatpush1.bf16.msra.mxu0 0
  %1117 = vmatprep.subr.bf16.mxu0 0
  %1118 = vmatpush1.bf16.msra.mxu0 0
  %1119 = vmatprep.subr.bf16.mxu0 0
  %1120 = vmatpush1.bf16.msra.mxu0 0
  %1121 = vmatprep.mubr.bf16.mxu0 %v369
  %1122 = vmatmul.mubr.bf16.gmra.mrb[0].mxu0 %v232
  %v1123 = vpop.f32.mrb[0].mxu0
  %v1124 = vadd.f32 0.0, %v1123
  %v1125 = vpop.f32.mrb[0].mxu0
  %v1126 = vpop.f32.mrb[0].mxu0
  %v1127 = vadd.f32 0.0, %v1126
  %v1128 = vpop.f32.mrb[0].mxu0
  %1129 = vmatprep.mubr.bf16.mxu0 %v372
  %1130 = vmatmul.mubr.bf16.gmra.mrb[0].mxu0 %v234
  %v1131 = vpop.f32.mrb[0].mxu0
  %v1132 = vadd.f32 0.0, %v1131
  %v1133 = vpop.f32.mrb[0].mxu0
  %v1134 = vpop.f32.mrb[0].mxu0
  %v1135 = vadd.f32 0.0, %v1134
  %v1136 = vpop.f32.mrb[0].mxu0
  %1137 = vmatprep.mubr.bf16.mxu0 %v375
  %1138 = vmatmul.mubr.bf16.gmra.mrb[0].mxu0 %v236
  %v1139 = vpop.f32.mrb[0].mxu0
  %v1140 = vadd.f32 0.0, %v1139
  %v1141 = vpop.f32.mrb[0].mxu0
  %v1142 = vpop.f32.mrb[0].mxu0
  %v1143 = vadd.f32 0.0, %v1142
  %v1144 = vpop.f32.mrb[0].mxu0
  %1145 = vmatprep.mubr.bf16.mxu0 %v378
  %1146 = vmatmul.mubr.bf16.gmra.mrb[0].mxu0 %v238
  %v1147 = vpop.f32.mrb[0].mxu0
  %v1148 = vadd.f32 0.0, %v1147
  %v1149 = vpop.f32.mrb[0].mxu0
  %v1150 = vpop.f32.mrb[0].mxu0
  %v1151 = vadd.f32 0.0, %v1150
  %v1152 = vpop.f32.mrb[0].mxu0
  %1153 = vmatprep.mubr.bf16.mxu0 %v381
  %1154 = vmatmul.mubr.bf16.gmra.mrb[0].mxu0 %v240
  %v1155 = vpop.f32.mrb[0].mxu0
  %v1156 = vadd.f32 0.0, %v1155
  %v1157 = vpop.f32.mrb[0].mxu0
  %v1158 = vpop.f32.mrb[0].mxu0
  %v1159 = vadd.f32 0.0, %v1158
  %v1160 = vpop.f32.mrb[0].mxu0
  %1161 = vmatprep.mubr.bf16.mxu0 %v384
  %1162 = vmatmul.mubr.bf16.gmra.mrb[0].mxu0 %v242
  %v1163 = vpop.f32.mrb[0].mxu0
  %v1164 = vadd.f32 0.0, %v1163
  %v1165 = vpop.f32.mrb[0].mxu0
  %v1166 = vpop.f32.mrb[0].mxu0
  %v1167 = vadd.f32 0.0, %v1166
  %v1168 = vpop.f32.mrb[0].mxu0
  %1169 = vmatprep.mubr.bf16.mxu0 %v387
  %1170 = vmatmul.mubr.bf16.gmra.mrb[0].mxu0 %v244
  %v1171 = vpop.f32.mrb[0].mxu0
  %v1172 = vadd.f32 0.0, %v1171
  %v1173 = vpop.f32.mrb[0].mxu0
  %v1174 = vpop.f32.mrb[0].mxu0
  %v1175 = vadd.f32 0.0, %v1174
  %v1176 = vpop.f32.mrb[0].mxu0
  %1177 = vmatprep.mubr.bf16.mxu0 %v390
  %1178 = vmatmul.mubr.bf16.gmra.mrb[0].mxu0 %v246
  %v1179 = vpop.f32.mrb[0].mxu0
  %v1180 = vadd.f32 0.0, %v1179
  %v1181 = vpop.f32.mrb[0].mxu0
  %v1182 = vpop.f32.mrb[0].mxu0
  %v1183 = vadd.f32 0.0, %v1182
  %v1184 = vpop.f32.mrb[0].mxu0
  %1185 = vmatprep.mubr.bf16.mxu0 %v393
  %1186 = vmatmul.mubr.bf16.gmra.mrb[0].mxu0 %v248
  %v1187 = vpop.f32.mrb[0].mxu0
  %v1188 = vadd.f32 0.0, %v1187
  %v1189 = vpop.f32.mrb[0].mxu0
  %v1190 = vpop.f32.mrb[0].mxu0
  %v1191 = vadd.f32 0.0, %v1190
  %v1192 = vpop.f32.mrb[0].mxu0
  %1193 = vmatprep.mubr.bf16.mxu0 %v396
  %1194 = vmatmul.mubr.bf16.gmra.mrb[0].mxu0 %v250
  %v1195 = vpop.f32.mrb[0].mxu0
  %v1196 = vadd.f32 0.0, %v1195
  %v1197 = vpop.f32.mrb[0].mxu0
  %v1198 = vpop.f32.mrb[0].mxu0
  %v1199 = vadd.f32 0.0, %v1198
  %v1200 = vpop.f32.mrb[0].mxu0
  %1201 = vmatprep.mubr.bf16.mxu0 %v399
  %1202 = vmatmul.mubr.bf16.gmra.mrb[0].mxu0 %v252
  %v1203 = vpop.f32.mrb[0].mxu0
  %v1204 = vadd.f32 0.0, %v1203
  %v1205 = vpop.f32.mrb[0].mxu0
  %v1206 = vpop.f32.mrb[0].mxu0
  %v1207 = vadd.f32 0.0, %v1206
  %v1208 = vpop.f32.mrb[0].mxu0
  %1209 = vmatprep.mubr.bf16.mxu0 %v402
  %1210 = vmatmul.mubr.bf16.gmra.mrb[0].mxu0 %v254
  %v1211 = vpop.f32.mrb[0].mxu0
  %v1212 = vadd.f32 0.0, %v1211
  %v1213 = vpop.f32.mrb[0].mxu0
  %v1214 = vpop.f32.mrb[0].mxu0
  %v1215 = vadd.f32 0.0, %v1214
  %v1216 = vpop.f32.mrb[0].mxu0
  %1217 = vmatprep.mubr.bf16.mxu0 %v405
  %1218 = vmatmul.mubr.bf16.gmra.mrb[0].mxu0 %v256
  %v1219 = vpop.f32.mrb[0].mxu0
  %v1220 = vadd.f32 0.0, %v1219
  %v1221 = vpop.f32.mrb[0].mxu0
  %v1222 = vpop.f32.mrb[0].mxu0
  %v1223 = vadd.f32 0.0, %v1222
  %v1224 = vpop.f32.mrb[0].mxu0
  %1225 = vmatprep.mubr.bf16.mxu0 %v408
  %1226 = vmatmul.mubr.bf16.gmra.mrb[0].mxu0 %v258
  %v1227 = vpop.f32.mrb[0].mxu0
  %v1228 = vadd.f32 0.0, %v1227
  %v1229 = vpop.f32.mrb[0].mxu0
  %v1230 = vpop.f32.mrb[0].mxu0
  %v1231 = vadd.f32 0.0, %v1230
  %v1232 = vpop.f32.mrb[0].mxu0
  %1233 = vmatprep.mubr.bf16.mxu0 %v411
  %1234 = vmatmul.mubr.bf16.gmra.mrb[0].mxu0 %v260
  %v1235 = vpop.f32.mrb[0].mxu0
  %v1236 = vadd.f32 0.0, %v1235
  %v1237 = vpop.f32.mrb[0].mxu0
  %v1238 = vpop.f32.mrb[0].mxu0
  %v1239 = vadd.f32 0.0, %v1238
  %v1240 = vpop.f32.mrb[0].mxu0
  %1241 = vmatprep.mubr.bf16.mxu0 %v414
  %1242 = vmatmul.mubr.bf16.gmra.mrb[0].mxu0 %v262
  %v1243 = vpop.f32.mrb[0].mxu0
  %v1244 = vadd.f32 0.0, %v1243
  %v1245 = vpop.f32.mrb[0].mxu0
  %v1246 = vpop.f32.mrb[0].mxu0
  %v1247 = vadd.f32 0.0, %v1246
  %v1248 = vpop.f32.mrb[0].mxu0
  %1249 = vmatprep.mubr.bf16.mxu0 %v417
  %1250 = vmatmul.mubr.bf16.gmra.mrb[0].mxu0 %v264
  %v1251 = vpop.f32.mrb[0].mxu0
  %v1252 = vadd.f32 0.0, %v1251
  %v1253 = vpop.f32.mrb[0].mxu0
  %v1254 = vpop.f32.mrb[0].mxu0
  %v1255 = vadd.f32 0.0, %v1254
  %v1256 = vpop.f32.mrb[0].mxu0
  %1257 = vmatprep.mubr.bf16.mxu0 %v420
  %1258 = vmatmul.mubr.bf16.gmra.mrb[0].mxu0 %v266
  %v1259 = vpop.f32.mrb[0].mxu0
  %v1260 = vadd.f32 0.0, %v1259
  %v1261 = vpop.f32.mrb[0].mxu0
  %v1262 = vpop.f32.mrb[0].mxu0
  %v1263 = vadd.f32 0.0, %v1262
  %v1264 = vpop.f32.mrb[0].mxu0
  %1265 = vmatprep.mubr.bf16.mxu0 %v423
  %1266 = vmatmul.mubr.bf16.gmra.mrb[0].mxu0 %v268
  %v1267 = vpop.f32.mrb[0].mxu0
  %v1268 = vadd.f32 0.0, %v1267
  %v1269 = vpop.f32.mrb[0].mxu0
  %v1270 = vpop.f32.mrb[0].mxu0
  %v1271 = vadd.f32 0.0, %v1270
  %v1272 = vpop.f32.mrb[0].mxu0
  %1273 = vmatprep.mubr.bf16.mxu0 %v426
  %1274 = vmatmul.mubr.bf16.gmra.mrb[0].mxu0 %v270
  %v1275 = vpop.f32.mrb[0].mxu0
  %v1276 = vadd.f32 0.0, %v1275
  %v1277 = vpop.f32.mrb[0].mxu0
  %v1278 = vpop.f32.mrb[0].mxu0
  %v1279 = vadd.f32 0.0, %v1278
  %v1280 = vpop.f32.mrb[0].mxu0
  %1281 = vmatprep.mubr.bf16.mxu0 %v429
  %1282 = vmatmul.mubr.bf16.gmra.mrb[0].mxu0 %v272
  %v1283 = vpop.f32.mrb[0].mxu0
  %v1284 = vadd.f32 0.0, %v1283
  %v1285 = vpop.f32.mrb[0].mxu0
  %v1286 = vpop.f32.mrb[0].mxu0
  %v1287 = vadd.f32 0.0, %v1286
  %v1288 = vpop.f32.mrb[0].mxu0
  %1289 = vdwg.mxu0
  %v1290 = vrot.slane %v1124, 2
  %v1291 = vrot.slane %v1127, 2
  %v1292 = vrot.slane %v1132, 2
  %v1293 = vrot.slane %v1135, 2
  %v1294 = vrot.slane %v1140, 2
  %v1295 = vrot.slane %v1143, 2
  %v1296 = vrot.slane %v1148, 2
  %v1297 = vrot.slane %v1151, 2
  %v1298 = vrot.slane %v1156, 2
  %v1299 = vrot.slane %v1159, 2
  %v1300 = vrot.slane %v1164, 2
  %v1301 = vrot.slane %v1167, 2
  %v1302 = vrot.slane %v1172, 2
  %v1303 = vrot.slane %v1175, 2
  %v1304 = vrot.slane %v1180, 2
  %v1305 = vrot.slane %v1183, 2
  %v1306 = vrot.slane %v1188, 2
  %v1307 = vrot.slane %v1191, 2
  %v1308 = vrot.slane %v1196, 2
  %v1309 = vrot.slane %v1199, 2
  %v1310 = vrot.slane %v1204, 2
  %v1311 = vrot.slane %v1207, 2
  %v1312 = vrot.slane %v1212, 2
  %v1313 = vrot.slane %v1215, 2
  %v1314 = vrot.slane %v1220, 2
  %v1315 = vrot.slane %v1223, 2
  %v1316 = vrot.slane %v1228, 2
  %v1317 = vrot.slane %v1231, 2
  %v1318 = vrot.slane %v1236, 2
  %v1319 = vrot.slane %v1239, 2
  %v1320 = vrot.slane %v1244, 2
  %v1321 = vrot.slane %v1247, 2
  %v1322 = vrot.slane %v1252, 2
  %v1323 = vrot.slane %v1255, 2
  %v1324 = vrot.slane %v1260, 2
  %v1325 = vrot.slane %v1263, 2
  %v1326 = vrot.slane %v1268, 2
  %v1327 = vrot.slane %v1271, 2
  %v1328 = vrot.slane %v1276, 2
  %v1329 = vrot.slane %v1279, 2
  %v1330 = vrot.slane %v1284, 2
  %v1331 = vrot.slane %v1287, 2
  %vm1332 = vcmp.lt.s32.totalorder %v675, 6
  %v1333 = vsel %vm1332, %v1330, %v1331
  %v1334 = vsel %vm1332, %v1329, %v1330
  %v1335 = vsel %vm1332, %v1328, %v1329
  %v1336 = vsel %vm1332, %v1327, %v1328
  %v1337 = vsel %vm1332, %v1326, %v1327
  %v1338 = vsel %vm1332, %v1325, %v1326
  %v1339 = vsel %vm1332, %v1324, %v1325
  %v1340 = vsel %vm1332, %v1323, %v1324
  %v1341 = vsel %vm1332, %v1322, %v1323
  %v1342 = vsel %vm1332, %v1321, %v1322
  %v1343 = vsel %vm1332, %v1320, %v1321
  %v1344 = vsel %vm1332, %v1319, %v1320
  %v1345 = vsel %vm1332, %v1318, %v1319
  %v1346 = vsel %vm1332, %v1317, %v1318
  %v1347 = vsel %vm1332, %v1316, %v1317
  %v1348 = vsel %vm1332, %v1315, %v1316
  %v1349 = vsel %vm1332, %v1314, %v1315
  %v1350 = vsel %vm1332, %v1313, %v1314
  %v1351 = vsel %vm1332, %v1312, %v1313
  %v1352 = vsel %vm1332, %v1311, %v1312
  %v1353 = vsel %vm1332, %v1310, %v1311
  %v1354 = vsel %vm1332, %v1309, %v1310
  %v1355 = vsel %vm1332, %v1308, %v1309
  %v1356 = vsel %vm1332, %v1307, %v1308
  %v1357 = vsel %vm1332, %v1306, %v1307
  %v1358 = vsel %vm1332, %v1305, %v1306
  %v1359 = vsel %vm1332, %v1304, %v1305
  %v1360 = vsel %vm1332, %v1303, %v1304
  %v1361 = vsel %vm1332, %v1302, %v1303
  %v1362 = vsel %vm1332, %v1301, %v1302
  %v1363 = vsel %vm1332, %v1300, %v1301
  %v1364 = vsel %vm1332, %v1299, %v1300
  %v1365 = vsel %vm1332, %v1298, %v1299
  %v1366 = vsel %vm1332, %v1297, %v1298
  %v1367 = vsel %vm1332, %v1296, %v1297
  %v1368 = vsel %vm1332, %v1295, %v1296
  %v1369 = vsel %vm1332, %v1294, %v1295
  %v1370 = vsel %vm1332, %v1293, %v1294
  %v1371 = vsel %vm1332, %v1292, %v1293
  %v1372 = vsel %vm1332, %v1291, %v1292
  %v1373 = vsel %vm1332, %v1290, %v1291
  %v1374 = vsel %vm1332, %v1331, %v1290
  %v1375 = vadd.f32 %v826, %v1373
  %v1376 = vadd.f32 %v829, %v1372
  %v1377 = vadd.f32 %v834, %v1371
  %v1378 = vadd.f32 %v837, %v1370
  %v1379 = vadd.f32 %v842, %v1369
  %v1380 = vadd.f32 %v845, %v1368
  %v1381 = vadd.f32 %v850, %v1367
  %v1382 = vadd.f32 %v853, %v1366
  %v1383 = vadd.f32 %v858, %v1365
  %v1384 = vadd.f32 %v861, %v1364
  %v1385 = vadd.f32 %v866, %v1363
  %v1386 = vadd.f32 %v869, %v1362
  %v1387 = vadd.f32 %v874, %v1361
  %v1388 = vadd.f32 %v877, %v1360
  %v1389 = vadd.f32 %v882, %v1359
  %v1390 = vadd.f32 %v885, %v1358
  %v1391 = vadd.f32 %v890, %v1357
  %v1392 = vadd.f32 %v893, %v1356
  %v1393 = vadd.f32 %v898, %v1355
  %v1394 = vadd.f32 %v901, %v1354
  %v1395 = vadd.f32 %v906, %v1353
  %v1396 = vadd.f32 %v909, %v1352
  %v1397 = vadd.f32 %v914, %v1351
  %v1398 = vadd.f32 %v917, %v1350
  %v1399 = vadd.f32 %v922, %v1349
  %v1400 = vadd.f32 %v925, %v1348
  %v1401 = vadd.f32 %v930, %v1347
  %v1402 = vadd.f32 %v933, %v1346
  %v1403 = vadd.f32 %v938, %v1345
  %v1404 = vadd.f32 %v941, %v1344
  %v1405 = vadd.f32 %v946, %v1343
  %v1406 = vadd.f32 %v949, %v1342
  %v1407 = vadd.f32 %v954, %v1341
  %v1408 = vadd.f32 %v957, %v1340
  %v1409 = vadd.f32 %v962, %v1339
  %v1410 = vadd.f32 %v965, %v1338
  %v1411 = vadd.f32 %v970, %v1337
  %v1412 = vadd.f32 %v973, %v1336
  %v1413 = vadd.f32 %v978, %v1335
  %v1414 = vadd.f32 %v981, %v1334
  %v1415 = vadd.f32 %v986, %v1333
  %v1416 = vadd.f32 %v989, %v1374
  %v1417 = vld [vmem:[%s2] sm:$0x1]
  %v1419 = vlaneseq
  %v1420 = vshrl.u32 %v1419, 7
  %v1421 = vsub.s32 0, %v1420
  %v1422 = vrot.slane %v1417, %v1421
  %v1424 = vadd.f32 %v1375, %v1422
  %v1425 = vadd.f32 %v1376, %v1422
  %v1426 = vadd.f32 %v1377, %v1422
  %v1427 = vadd.f32 %v1378, %v1422
  %v1428 = vadd.f32 %v1379, %v1422
  %v1429 = vadd.f32 %v1380, %v1422
  %v1430 = vadd.f32 %v1381, %v1422
  %v1431 = vadd.f32 %v1382, %v1422
  %v1432 = vadd.f32 %v1383, %v1422
  %v1433 = vadd.f32 %v1384, %v1422
  %v1434 = vadd.f32 %v1385, %v1422
  %v1435 = vadd.f32 %v1386, %v1422
  %v1436 = vadd.f32 %v1387, %v1422
  %v1437 = vadd.f32 %v1388, %v1422
  %v1438 = vadd.f32 %v1389, %v1422
  %v1439 = vadd.f32 %v1390, %v1422
  %v1440 = vadd.f32 %v1391, %v1422
  %v1441 = vadd.f32 %v1392, %v1422
  %v1442 = vadd.f32 %v1393, %v1422
  %v1443 = vadd.f32 %v1394, %v1422
  %v1444 = vadd.f32 %v1395, %v1422
  %v1445 = vadd.f32 %v1396, %v1422
  %v1446 = vadd.f32 %v1397, %v1422
  %v1447 = vadd.f32 %v1398, %v1422
  %v1448 = vadd.f32 %v1399, %v1422
  %v1449 = vadd.f32 %v1400, %v1422
  %v1450 = vadd.f32 %v1401, %v1422
  %v1451 = vadd.f32 %v1402, %v1422
  %v1452 = vadd.f32 %v1403, %v1422
  %v1453 = vadd.f32 %v1404, %v1422
  %v1454 = vadd.f32 %v1405, %v1422
  %v1455 = vadd.f32 %v1406, %v1422
  %v1456 = vadd.f32 %v1407, %v1422
  %v1457 = vadd.f32 %v1408, %v1422
  %v1458 = vadd.f32 %v1409, %v1422
  %v1459 = vadd.f32 %v1410, %v1422
  %v1460 = vadd.f32 %v1411, %v1422
  %v1461 = vadd.f32 %v1412, %v1422
  %v1462 = vadd.f32 %v1413, %v1422
  %v1463 = vadd.f32 %v1414, %v1422
  %v1464 = vadd.f32 %v1415, %v1422
  %v1465 = vadd.f32 %v1416, %v1422
  %v1466 = vmax.f32 %v1424, 0.0
  %v1467 = vmax.f32 %v1425, 0.0
  %v1468 = vmax.f32 %v1426, 0.0
  %v1469 = vmax.f32 %v1427, 0.0
  %v1470 = vmax.f32 %v1428, 0.0
  %v1471 = vmax.f32 %v1429, 0.0
  %v1472 = vmax.f32 %v1430, 0.0
  %v1473 = vmax.f32 %v1431, 0.0
  %v1474 = vmax.f32 %v1432, 0.0
  %v1475 = vmax.f32 %v1433, 0.0
  %v1476 = vmax.f32 %v1434, 0.0
  %v1477 = vmax.f32 %v1435, 0.0
  %v1478 = vmax.f32 %v1436, 0.0
  %v1479 = vmax.f32 %v1437, 0.0
  %v1480 = vmax.f32 %v1438, 0.0
  %v1481 = vmax.f32 %v1439, 0.0
  %v1482 = vmax.f32 %v1440, 0.0
  %v1483 = vmax.f32 %v1441, 0.0
  %v1484 = vmax.f32 %v1442, 0.0
  %v1485 = vmax.f32 %v1443, 0.0
  %v1486 = vmax.f32 %v1444, 0.0
  %v1487 = vmax.f32 %v1445, 0.0
  %v1488 = vmax.f32 %v1446, 0.0
  %v1489 = vmax.f32 %v1447, 0.0
  %v1490 = vmax.f32 %v1448, 0.0
  %v1491 = vmax.f32 %v1449, 0.0
  %v1492 = vmax.f32 %v1450, 0.0
  %v1493 = vmax.f32 %v1451, 0.0
  %v1494 = vmax.f32 %v1452, 0.0
  %v1495 = vmax.f32 %v1453, 0.0
  %v1496 = vmax.f32 %v1454, 0.0
  %v1497 = vmax.f32 %v1455, 0.0
  %v1498 = vmax.f32 %v1456, 0.0
  %v1499 = vmax.f32 %v1457, 0.0
  %v1500 = vmax.f32 %v1458, 0.0
  %v1501 = vmax.f32 %v1459, 0.0
  %v1502 = vmax.f32 %v1460, 0.0
  %v1503 = vmax.f32 %v1461, 0.0
  %v1504 = vmax.f32 %v1462, 0.0
  %v1505 = vmax.f32 %v1463, 0.0
  %v1506 = vmax.f32 %v1464, 0.0
  %v1507 = vmax.f32 %v1465, 0.0
  %v1508 = vpack.c.bf16 %v1467, %v1466
  %v1509 = vpack.c.bf16 %v1469, %v1468
  %v1510 = vpack.c.bf16 %v1471, %v1470
  %v1511 = vpack.c.bf16 %v1473, %v1472
  %v1512 = vpack.c.bf16 %v1475, %v1474
  %v1513 = vpack.c.bf16 %v1477, %v1476
  %v1514 = vpack.c.bf16 %v1479, %v1478
  %v1515 = vpack.c.bf16 %v1481, %v1480
  %v1516 = vpack.c.bf16 %v1483, %v1482
  %v1517 = vpack.c.bf16 %v1485, %v1484
  %v1518 = vpack.c.bf16 %v1487, %v1486
  %v1519 = vpack.c.bf16 %v1489, %v1488
  %v1520 = vpack.c.bf16 %v1491, %v1490
  %v1521 = vpack.c.bf16 %v1493, %v1492
  %v1522 = vpack.c.bf16 %v1495, %v1494
  %v1523 = vpack.c.bf16 %v1497, %v1496
  %v1524 = vpack.c.bf16 %v1499, %v1498
  %v1525 = vpack.c.bf16 %v1501, %v1500
  %v1526 = vpack.c.bf16 %v1503, %v1502
  %v1527 = vpack.c.bf16 %v1505, %v1504
  %v1528 = vpack.c.bf16 %v1507, %v1506
  %v1550 = vunpack.c.l.b16 %v1508
  %v1551 = vunpack.c.h.b16 %v1508
  %v1552 = vunpack.c.l.b16 %v1509
  %v1553 = vunpack.c.h.b16 %v1509
  %v1554 = vunpack.c.l.b16 %v1510
  %v1555 = vunpack.c.h.b16 %v1510
  %v1556 = vunpack.c.l.b16 %v1511
  %v1557 = vunpack.c.h.b16 %v1511
  %v1558 = vunpack.c.l.b16 %v1512
  %v1559 = vunpack.c.h.b16 %v1512
  %v1560 = vunpack.c.l.b16 %v1513
  %v1561 = vunpack.c.h.b16 %v1513
  %v1562 = vunpack.c.l.b16 %v1514
  %v1563 = vunpack.c.h.b16 %v1514
  %v1564 = vunpack.c.l.b16 %v1515
  %v1565 = vunpack.c.h.b16 %v1515
  %v1566 = vunpack.c.l.b16 %v1516
  %v1567 = vunpack.c.h.b16 %v1516
  %v1568 = vunpack.c.l.b16 %v1517
  %v1569 = vunpack.c.h.b16 %v1517
  %v1570 = vunpack.c.l.b16 %v1518
  %v1571 = vunpack.c.h.b16 %v1518
  %v1572 = vunpack.c.l.b16 %v1519
  %v1573 = vunpack.c.h.b16 %v1519
  %v1574 = vunpack.c.l.b16 %v1520
  %v1575 = vunpack.c.h.b16 %v1520
  %v1576 = vunpack.c.l.b16 %v1521
  %v1577 = vunpack.c.h.b16 %v1521
  %v1578 = vunpack.c.l.b16 %v1522
  %v1579 = vunpack.c.h.b16 %v1522
  %v1580 = vunpack.c.l.b16 %v1523
  %v1581 = vunpack.c.h.b16 %v1523
  %v1582 = vunpack.c.l.b16 %v1524
  %v1583 = vunpack.c.h.b16 %v1524
  %v1584 = vunpack.c.l.b16 %v1525
  %v1585 = vunpack.c.h.b16 %v1525
  %v1586 = vunpack.c.l.b16 %v1526
  %v1587 = vunpack.c.h.b16 %v1526
  %v1588 = vunpack.c.l.b16 %v1527
  %v1589 = vunpack.c.h.b16 %v1527
  %v1590 = vunpack.c.l.b16 %v1528
  %v1591 = vunpack.c.h.b16 %v1528
  %v1592 = vpack.c.b16 %v1550, %v1550
  %v1593 = vpack.c.b16 %v1551, %v1551
  %v1594 = vpack.c.b16 %v1552, %v1552
  %v1595 = vpack.c.b16 %v1553, %v1553
  %v1596 = vpack.c.b16 %v1554, %v1554
  %v1597 = vpack.c.b16 %v1555, %v1555
  %v1598 = vpack.c.b16 %v1556, %v1556
  %v1599 = vpack.c.b16 %v1557, %v1557
  %v1600 = vpack.c.b16 %v1558, %v1558
  %v1601 = vpack.c.b16 %v1559, %v1559
  %v1602 = vpack.c.b16 %v1560, %v1560
  %v1603 = vpack.c.b16 %v1561, %v1561
  %v1604 = vpack.c.b16 %v1562, %v1562
  %v1605 = vpack.c.b16 %v1563, %v1563
  %v1606 = vpack.c.b16 %v1564, %v1564
  %v1607 = vpack.c.b16 %v1565, %v1565
  %v1608 = vpack.c.b16 %v1566, %v1566
  %v1609 = vpack.c.b16 %v1567, %v1567
  %v1610 = vpack.c.b16 %v1568, %v1568
  %v1611 = vpack.c.b16 %v1569, %v1569
  %v1612 = vpack.c.b16 %v1570, %v1570
  %v1613 = vpack.c.b16 %v1571, %v1571
  %v1614 = vpack.c.b16 %v1572, %v1572
  %v1615 = vpack.c.b16 %v1573, %v1573
  %v1616 = vpack.c.b16 %v1574, %v1574
  %v1617 = vpack.c.b16 %v1575, %v1575
  %v1618 = vpack.c.b16 %v1576, %v1576
  %v1619 = vpack.c.b16 %v1577, %v1577
  %v1620 = vpack.c.b16 %v1578, %v1578
  %v1621 = vpack.c.b16 %v1579, %v1579
  %v1622 = vpack.c.b16 %v1580, %v1580
  %v1623 = vpack.c.b16 %v1581, %v1581
  %v1624 = vpack.c.b16 %v1582, %v1582
  %v1625 = vpack.c.b16 %v1583, %v1583
  %v1626 = vpack.c.b16 %v1584, %v1584
  %v1627 = vpack.c.b16 %v1585, %v1585
  %v1628 = vpack.c.b16 %v1586, %v1586
  %v1629 = vpack.c.b16 %v1587, %v1587
  %v1630 = vpack.c.b16 %v1588, %v1588
  %v1631 = vpack.c.b16 %v1589, %v1589
  %v1632 = vpack.c.b16 %v1590, %v1590
  %v1633 = vpack.c.b16 %v1591, %v1591
  %vm1676 = vcmask 519168
  %1677 = vst.msk [vmem:[%s3] sm:$0xf] %vm1676, %v1592
  %1678 = vst.msk [vmem:[%s3 + $0x4] sm:$0xf] %vm1676, %v1593
  %1679 = vst.msk [vmem:[%s3 + $0x8] sm:$0xf] %vm1676, %v1594
  %1680 = vst.msk [vmem:[%s3 + $0xc] sm:$0xf] %vm1676, %v1595
  %1681 = vst.msk [vmem:[%s3 + $0x10] sm:$0xf] %vm1676, %v1596
  %1682 = vst.msk [vmem:[%s3 + $0x14] sm:$0xf] %vm1676, %v1597
  %1683 = vst.msk [vmem:[%s3 + $0x18] sm:$0xf] %vm1676, %v1598
  %1684 = vst.msk [vmem:[%s3 + $0x1c] sm:$0xf] %vm1676, %v1599
  %1685 = vst.msk [vmem:[%s3 + $0x20] sm:$0xf] %vm1676, %v1600
  %1686 = vst.msk [vmem:[%s3 + $0x24] sm:$0xf] %vm1676, %v1601
  %1687 = vst.msk [vmem:[%s3 + $0x28] sm:$0xf] %vm1676, %v1602
  %1688 = vst.msk [vmem:[%s3 + $0x2c] sm:$0xf] %vm1676, %v1603
  %1689 = vst.msk [vmem:[%s3 + $0x30] sm:$0xf] %vm1676, %v1604
  %1690 = vst.msk [vmem:[%s3 + $0x34] sm:$0xf] %vm1676, %v1605
  %1691 = vst.msk [vmem:[%s3 + $0x38] sm:$0xf] %vm1676, %v1606
  %1692 = vst.msk [vmem:[%s3 + $0x3c] sm:$0xf] %vm1676, %v1607
  %1693 = vst.msk [vmem:[%s3 + $0x40] sm:$0xf] %vm1676, %v1608
  %1694 = vst.msk [vmem:[%s3 + $0x44] sm:$0xf] %vm1676, %v1609
  %1695 = vst.msk [vmem:[%s3 + $0x48] sm:$0xf] %vm1676, %v1610
  %1696 = vst.msk [vmem:[%s3 + $0x4c] sm:$0xf] %vm1676, %v1611
  %1697 = vst.msk [vmem:[%s3 + $0x50] sm:$0xf] %vm1676, %v1612
  %1698 = vst.msk [vmem:[%s3 + $0x54] sm:$0xf] %vm1676, %v1613
  %1699 = vst.msk [vmem:[%s3 + $0x58] sm:$0xf] %vm1676, %v1614
  %1700 = vst.msk [vmem:[%s3 + $0x5c] sm:$0xf] %vm1676, %v1615
  %1701 = vst.msk [vmem:[%s3 + $0x60] sm:$0xf] %vm1676, %v1616
  %1702 = vst.msk [vmem:[%s3 + $0x64] sm:$0xf] %vm1676, %v1617
  %1703 = vst.msk [vmem:[%s3 + $0x68] sm:$0xf] %vm1676, %v1618
  %1704 = vst.msk [vmem:[%s3 + $0x6c] sm:$0xf] %vm1676, %v1619
  %1705 = vst.msk [vmem:[%s3 + $0x70] sm:$0xf] %vm1676, %v1620
  %1706 = vst.msk [vmem:[%s3 + $0x74] sm:$0xf] %vm1676, %v1621
  %1707 = vst.msk [vmem:[%s3 + $0x78] sm:$0xf] %vm1676, %v1622
  %1708 = vst.msk [vmem:[%s3 + $0x7c] sm:$0xf] %vm1676, %v1623
  %1709 = vst.msk [vmem:[%s3 + $0x80] sm:$0xf] %vm1676, %v1624
  %1710 = vst.msk [vmem:[%s3 + $0x84] sm:$0xf] %vm1676, %v1625
  %1711 = vst.msk [vmem:[%s3 + $0x88] sm:$0xf] %vm1676, %v1626
  %1712 = vst.msk [vmem:[%s3 + $0x8c] sm:$0xf] %vm1676, %v1627
  %1713 = vst.msk [vmem:[%s3 + $0x90] sm:$0xf] %vm1676, %v1628
  %1714 = vst.msk [vmem:[%s3 + $0x94] sm:$0xf] %vm1676, %v1629
  %1715 = vst.msk [vmem:[%s3 + $0x98] sm:$0xf] %vm1676, %v1630
  %1716 = vst.msk [vmem:[%s3 + $0x9c] sm:$0xf] %vm1676, %v1631
  %1717 = vst.msk [vmem:[%s3 + $0xa0] sm:$0xf] %vm1676, %v1632
  %1718 = vst.msk [vmem:[%s3 + $0xa4] sm:$0xf] %vm1676, %v1633
  // Predicated region
  $region14: #{unet_dec_forward.4} parent=0 // pred_check
    _
  $region15: #{unet_dec_forward.4} parent=0 // pred_check_branch
    %1720 = sbr.rel (0) target = $region17
  $region16: #{unet_dec_forward.4} parent=0 // pred_region
    _
  $region17: #{unet_dec_forward.4} parent=0 // pred_fallthru
    _
  // Predicated region
  $region18: #{unet_dec_forward.4} parent=0 // pred_check
    _
  $region19: #{unet_dec_forward.4} parent=0 // pred_check_branch
    %1722 = sbr.rel (0) target = $region21
  $region20: #{unet_dec_forward.4} parent=0 // pred_region
    _
  $region21: #{unet_dec_forward.4} parent=0 // pred_fallthru
    _

</llo_original>
